<compile_context>
chip_gen: v7x
topology: tpu7x:2x2x1
jax: 0.10.0
libtpu: 0.0.40
codegen_flags: <defaults>
</compile_context>

<pallas_src>
import math
import numpy as np

import jax
import jax.numpy as jnp
from jax import lax
from jax.experimental import pallas as pl
from jax.experimental.pallas import tpu as pltpu

# ---------------- config (small, consistent with the module) ----------------
BATCH = 2
SEQ = 8            # seq_len
D_MODEL = 32       # input_size
HEADS = 4
N_LAYERS = 2       # N
D_FF = 400         # FeedForward default
D_FF_PAD = 512     # hidden dim zero-padded to a multiple of 128 lanes
EPS = 1e-6         # Norm eps

DK = D_MODEL // HEADS          # 8
BS = BATCH * SEQ               # 16

# packed-slab layout constants
W_ROWS_PER_LAYER = 4 * D_MODEL                 # wqkv | wo | w1 | w2^T blocks (32 rows each)
W_ROWS = N_LAYERS * W_ROWS_PER_LAYER           # 256
V_ROWS_PER_LAYER = 8                           # bqkv, b1, a1, n1b, bo, a2, n2b, b2
V_ROWS = SEQ + N_LAYERS * V_ROWS_PER_LAYER + 8  # pe + per-layer vectors + final norm (8-padded) = 32


# ---------------- kernel-side math ----------------
def _norm(v, alpha, bias):
    # PyTorch Norm: alpha * (x - mean) / (std + eps) + bias ; std unbiased (ddof=1)
    d = v.shape[-1]
    mean = jnp.mean(v, axis=-1, keepdims=True)
    c = v - mean
    std = jnp.sqrt(jnp.sum(c * c, axis=-1, keepdims=True) * (1.0 / (d - 1)))
    return alpha * c * pl.reciprocal(std + EPS, approx=False) + bias


def _encoder_layer(x, wqkv, bqkv, wo, bo, a1, n1b, a2, n2b, w1, b1, w2t, b2):
    # ----- x2 = norm_1(x); fused Q/K/V projection -----
    x2 = _norm(x, a1, n1b)
    qkv = jnp.dot(x2, wqkv, preferred_element_type=jnp.float32) + bqkv     # (BS, 3D)

    # ----- multi-head self attention: per-(batch, head) (8,8) blocks -----
    scale = 1.0 / math.sqrt(DK)
    out_rows = []
    for b in range(BATCH):
        r0, r1 = b * SEQ, (b + 1) * SEQ
        head_outs = []
        for h in range(HEADS):
            c0 = h * DK
            q = qkv[r0:r1, c0:c0 + DK]                                     # (S, DK)
            k = qkv[r0:r1, D_MODEL + c0:D_MODEL + c0 + DK]
            v = qkv[r0:r1, 2 * D_MODEL + c0:2 * D_MODEL + c0 + DK]
            s = lax.dot_general(q, k, (((1,), (1,)), ((), ())),
                                preferred_element_type=jnp.float32) * scale  # (S, S)
            m = jnp.max(s, axis=-1, keepdims=True)
            e = jnp.exp(s - m)
            p = e * pl.reciprocal(jnp.sum(e, axis=-1, keepdims=True), approx=False)
            head_outs.append(jnp.dot(p, v, preferred_element_type=jnp.float32))  # (S, DK)
        out_rows.append(jnp.concatenate(head_outs, axis=1))                 # (S, D)
    concat = jnp.concatenate(out_rows, axis=0)                              # (BS, D)

    # ----- residual 1 -----
    x = x + jnp.dot(concat, wo, preferred_element_type=jnp.float32) + bo

    # ----- norm_2 + feed-forward (zero-padded hidden dim) + residual 2 -----
    x2 = _norm(x, a2, n2b)
    h1 = jnp.maximum(jnp.dot(x2, w1, preferred_element_type=jnp.float32) + b1, 0.0)  # (BS, 512)
    ff = lax.dot_general(h1, w2t, (((1,), (1,)), ((), ())),
                         preferred_element_type=jnp.float32) + b2                    # (BS, D)
    return x + ff


def encoder_kernel(x_ref, w_ref, v_ref, out_ref):
    # x = x * sqrt(d_model) + pe  (pe broadcast over batch inside the kernel)
    pe = v_ref[0:SEQ, 0:D_MODEL]                                            # (S, D)
    x = x_ref[...] * math.sqrt(D_MODEL) + jnp.concatenate([pe] * BATCH, axis=0)

    for layer in range(N_LAYERS):                    # static unroll, N_LAYERS = 2
        wb = layer * W_ROWS_PER_LAYER
        vb = SEQ + layer * V_ROWS_PER_LAYER

        # weights: static windows of the packed slab (loaded directly from VMEM)
        wqkv = w_ref[wb + 0 * D_MODEL:wb + 1 * D_MODEL, 0:3 * D_MODEL]      # (D, 3D)
        wo   = w_ref[wb + 1 * D_MODEL:wb + 2 * D_MODEL, 0:D_MODEL]          # (D, D)
        w1   = w_ref[wb + 2 * D_MODEL:wb + 3 * D_MODEL, :]                  # (D, 512)
        w2t  = w_ref[wb + 3 * D_MODEL:wb + 4 * D_MODEL, :]                  # (D, 512) = padded w2^T

        # bias / norm vectors: one lane-dense row each
        bqkv = v_ref[vb + 0:vb + 1, 0:3 * D_MODEL]
        b1   = v_ref[vb + 1:vb + 2, :]
        a1   = v_ref[vb + 2:vb + 3, 0:D_MODEL]
        n1b  = v_ref[vb + 3:vb + 4, 0:D_MODEL]
        bo   = v_ref[vb + 4:vb + 5, 0:D_MODEL]
        a2   = v_ref[vb + 5:vb + 6, 0:D_MODEL]
        n2b  = v_ref[vb + 6:vb + 7, 0:D_MODEL]
        b2   = v_ref[vb + 7:vb + 8, 0:D_MODEL]

        x = _encoder_layer(x, wqkv, bqkv, wo, bo, a1, n1b, a2, n2b, w1, b1, w2t, b2)

    fb = SEQ + N_LAYERS * V_ROWS_PER_LAYER
    out_ref[...] = _norm(x, v_ref[fb:fb + 1, 0:D_MODEL], v_ref[fb + 1:fb + 2, 0:D_MODEL])


# ---------------- wrapper (single fused pallas_call, no grid, 3 operands) ----------------
@jax.jit
def encoder_forward(x, w_slab, v_slab):
    B_, S_, D_ = x.shape
    x_flat = x.reshape(B_ * S_, D_)              # contiguous reshape (no copy)
    out_flat = pl.pallas_call(
        encoder_kernel,
        out_shape=jax.ShapeDtypeStruct((B_ * S_, D_), jnp.float32),
        compiler_params=pltpu.CompilerParams(vmem_limit_bytes=32 * 1024 * 1024),
    )(x_flat, w_slab, v_slab)
    return out_flat.reshape(B_, S_, D_)


# ---------------- host-side, one-time parameter packing (outside jit) ----------------
def pack_params(pe, layer_params, final_norm):
    """Pack all weights / biases / norm vectors into two slabs. Runs once on host."""
    W = np.zeros((W_ROWS, D_FF_PAD), np.float32)
    V = np.zeros((V_ROWS, D_FF_PAD), np.float32)

    V[0:SEQ, 0:D_MODEL] = np.asarray(pe)                                     # PE table

    for l, p in enumerate(layer_params):
        wb = l * W_ROWS_PER_LAYER
        W[wb + 0 * D_MODEL:wb + 1 * D_MODEL, 0:3 * D_MODEL] = np.concatenate(
            [np.asarray(p["wq"]), np.asarray(p["wk"]), np.asarray(p["wv"])], axis=1)
        W[wb + 1 * D_MODEL:wb + 2 * D_MODEL, 0:D_MODEL] = np.asarray(p["wo"])
        W[wb + 2 * D_MODEL:wb + 3 * D_MODEL, 0:D_FF] = np.asarray(p["w1"])
        W[wb + 3 * D_MODEL:wb + 4 * D_MODEL, 0:D_FF] = np.asarray(p["w2"]).T  # w2^T (padded cols stay 0)

        vb = SEQ + l * V_ROWS_PER_LAYER
        V[vb + 0, 0:3 * D_MODEL] = np.concatenate(
            [np.asarray(p["bq"]), np.asarray(p["bk"]), np.asarray(p["bv"])], axis=1)[0]
        V[vb + 1, 0:D_FF] = np.asarray(p["b1"])[0]
        V[vb + 2, 0:D_MODEL] = np.asarray(p["a1"])[0]
        V[vb + 3, 0:D_MODEL] = np.asarray(p["n1b"])[0]
        V[vb + 4, 0:D_MODEL] = np.asarray(p["bo"])[0]
        V[vb + 5, 0:D_MODEL] = np.asarray(p["a2"])[0]
        V[vb + 6, 0:D_MODEL] = np.asarray(p["n2b"])[0]
        V[vb + 7, 0:D_MODEL] = np.asarray(p["b2"])[0]

    fb = SEQ + N_LAYERS * V_ROWS_PER_LAYER
    V[fb + 0, 0:D_MODEL] = np.asarray(final_norm["alpha"])[0]
    V[fb + 1, 0:D_MODEL] = np.asarray(final_norm["bias"])[0]
    return jnp.asarray(W), jnp.asarray(V)


# ---------------- deterministic parameter construction ----------------
def build_pe_table():
    # Mirrors the PyTorch PositionalEncoder exactly (including its cos exponent).
    pe = np.zeros((SEQ, D_MODEL), dtype=np.float32)
    for pos in range(SEQ):
        for i in range(0, D_MODEL, 2):
            pe[pos, i] = math.sin(pos / 10000 ** (2 * i / D_MODEL))
            pe[pos, i + 1] = math.cos(pos / 10000 ** (2 * (i + 1) / D_MODEL))
    return jnp.asarray(pe)  # (S, D)


def build_params(key):
    layer_params = []
    for _ in range(N_LAYERS):
        keys = jax.random.split(key, 7)
        key = keys[0]
        p = {
            "wq": jax.random.normal(keys[1], (D_MODEL, D_MODEL), jnp.float32) * 0.05,
            "wk": jax.random.normal(keys[2], (D_MODEL, D_MODEL), jnp.float32) * 0.05,
            "wv": jax.random.normal(keys[3], (D_MODEL, D_MODEL), jnp.float32) * 0.05,
            "wo": jax.random.normal(keys[4], (D_MODEL, D_MODEL), jnp.float32) * 0.05,
            "w1": jax.random.normal(keys[5], (D_MODEL, D_FF), jnp.float32) * 0.05,
            "w2": jax.random.normal(keys[6], (D_FF, D_MODEL), jnp.float32) * 0.05,
            "bq": jnp.zeros((1, D_MODEL), jnp.float32) + 0.01,
            "bk": jnp.zeros((1, D_MODEL), jnp.float32) - 0.01,
            "bv": jnp.zeros((1, D_MODEL), jnp.float32) + 0.02,
            "bo": jnp.zeros((1, D_MODEL), jnp.float32),
            "b1": jnp.zeros((1, D_FF), jnp.float32) + 0.01,
            "b2": jnp.zeros((1, D_MODEL), jnp.float32),
            "a1": jnp.ones((1, D_MODEL), jnp.float32),
            "n1b": jnp.zeros((1, D_MODEL), jnp.float32),
            "a2": jnp.ones((1, D_MODEL), jnp.float32),
            "n2b": jnp.zeros((1, D_MODEL), jnp.float32),
        }
        layer_params.append(p)
    final_norm = {"alpha": jnp.ones((1, D_MODEL), jnp.float32),
                  "bias": jnp.zeros((1, D_MODEL), jnp.float32)}
    return layer_params, final_norm


# ---------------- pure-JAX reference (mirrors PyTorch forward, eval mode) ----------------
def _norm_ref(x, alpha, bias):
    d = x.shape[-1]
    mean = x.mean(-1, keepdims=True)
    c = x - mean
    std = jnp.sqrt((c * c).sum(-1, keepdims=True) / (d - 1))
    return alpha * c / (std + EPS) + bias


def encoder_ref(x, pe, layer_params, final_norm):
    B, S, D = x.shape
    dk = D // HEADS
    x = x * math.sqrt(D_MODEL) + pe
    for p in layer_params:
        x2 = _norm_ref(x, p["a1"], p["n1b"])
        q = x2 @ p["wq"] + p["bq"]
        k = x2 @ p["wk"] + p["bk"]
        v = x2 @ p["wv"] + p["bv"]
        qh = q.reshape(B, S, HEADS, dk).transpose(0, 2, 1, 3)
        kh = k.reshape(B, S, HEADS, dk).transpose(0, 2, 1, 3)
        vh = v.reshape(B, S, HEADS, dk).transpose(0, 2, 1, 3)
        scores = jnp.einsum("bhqd,bhkd->bhqk", qh, kh) / math.sqrt(dk)
        probs = jax.nn.softmax(scores, axis=-1)
        o = jnp.einsum("bhqk,bhkd->bhqd", probs, vh)
        concat = o.transpose(0, 2, 1, 3).reshape(B, S, D)
        x = x + (concat @ p["wo"] + p["bo"])
        x2 = _norm_ref(x, p["a2"], p["n2b"])
        ff = jnp.maximum(x2 @ p["w1"] + p["b1"], 0.0) @ p["w2"] + p["b2"]
        x = x + ff
    return _norm_ref(x, final_norm["alpha"], final_norm["bias"])


# ---------------- main ----------------
if __name__ == "__main__":
    key = jax.random.PRNGKey(0)
    k_x, k_p = jax.random.split(key)
    x = jax.random.normal(k_x, (BATCH, SEQ, D_MODEL), jnp.float32)

    pe = build_pe_table()
    layer_params, final_norm = build_params(k_p)

    # One-time host-side packing (outside the jitted per-call path).
    w_slab, v_slab = pack_params(pe, layer_params, final_norm)

    out = encoder_forward(x, w_slab, v_slab)
    out = jax.block_until_ready(out)

    ref = jax.block_until_ready(encoder_ref(x, pe, layer_params, final_norm))

    assert out.shape == (BATCH, SEQ, D_MODEL)
    np.testing.assert_allclose(np.asarray(out), np.asarray(ref), rtol=1e-4, atol=1e-4)
    print("KERNEL_OK")
</pallas_src>

<mosaic_0001>
module attributes {stable_mosaic.version = 11 : i64} {
  func.func @encoder_kernel(%arg0: memref<16x32xf32, #tpu.memory_space<vmem>>, %arg1: memref<256x512xf32, #tpu.memory_space<vmem>>, %arg2: memref<32x512xf32, #tpu.memory_space<vmem>>, %arg3: memref<16x32xf32, #tpu.memory_space<vmem>>) attributes {dimension_semantics = [], scalar_prefetch = 0 : i64, scratch_operands = 0 : i64, tpu.core_type = #tpu.core_type<tc>} {
    %c0 = arith.constant 0 : index
    %c0_0 = arith.constant 0 : index
    %0 = vector.load %arg2[%c0, %c0_0] : memref<32x512xf32, #tpu.memory_space<vmem>>, vector<8x32xf32>
    %c0_1 = arith.constant 0 : index
    %c0_2 = arith.constant 0 : index
    %1 = vector.load %arg0[%c0_1, %c0_2] : memref<16x32xf32, #tpu.memory_space<vmem>>, vector<16x32xf32>
    %cst = arith.constant 5.65685415 : f32
    %2 = vector.broadcast %cst : f32 to vector<16x32xf32>
    %3 = arith.mulf %1, %2 : vector<16x32xf32>
    %4 = tpu.concatenate %0, %0 in 0 : vector<8x32xf32>, vector<8x32xf32> -> vector<16x32xf32>
    %5 = arith.addf %3, %4 : vector<16x32xf32>
    %c0_3 = arith.constant 0 : index
    %c0_4 = arith.constant 0 : index
    %6 = vector.load %arg1[%c0_3, %c0_4] : memref<256x512xf32, #tpu.memory_space<vmem>>, vector<32x96xf32>
    %c32 = arith.constant 32 : index
    %c0_5 = arith.constant 0 : index
    %7 = vector.load %arg1[%c32, %c0_5] : memref<256x512xf32, #tpu.memory_space<vmem>>, vector<32x32xf32>
    %c64 = arith.constant 64 : index
    %c0_6 = arith.constant 0 : index
    %8 = vector.load %arg1[%c64, %c0_6] : memref<256x512xf32, #tpu.memory_space<vmem>>, vector<32x512xf32>
    %c96 = arith.constant 96 : index
    %c0_7 = arith.constant 0 : index
    %9 = vector.load %arg1[%c96, %c0_7] : memref<256x512xf32, #tpu.memory_space<vmem>>, vector<32x512xf32>
    %c8 = arith.constant 8 : index
    %c0_8 = arith.constant 0 : index
    %10 = vector.load %arg2[%c8, %c0_8] : memref<32x512xf32, #tpu.memory_space<vmem>>, vector<1x96xf32>
    %c9 = arith.constant 9 : index
    %c0_9 = arith.constant 0 : index
    %11 = vector.load %arg2[%c9, %c0_9] : memref<32x512xf32, #tpu.memory_space<vmem>>, vector<1x512xf32>
    %c10 = arith.constant 10 : index
    %c0_10 = arith.constant 0 : index
    %12 = vector.load %arg2[%c10, %c0_10] : memref<32x512xf32, #tpu.memory_space<vmem>>, vector<1x32xf32>
    %c11 = arith.constant 11 : index
    %c0_11 = arith.constant 0 : index
    %13 = vector.load %arg2[%c11, %c0_11] : memref<32x512xf32, #tpu.memory_space<vmem>>, vector<1x32xf32>
    %c12 = arith.constant 12 : index
    %c0_12 = arith.constant 0 : index
    %14 = vector.load %arg2[%c12, %c0_12] : memref<32x512xf32, #tpu.memory_space<vmem>>, vector<1x32xf32>
    %c13 = arith.constant 13 : index
    %c0_13 = arith.constant 0 : index
    %15 = vector.load %arg2[%c13, %c0_13] : memref<32x512xf32, #tpu.memory_space<vmem>>, vector<1x32xf32>
    %c14 = arith.constant 14 : index
    %c0_14 = arith.constant 0 : index
    %16 = vector.load %arg2[%c14, %c0_14] : memref<32x512xf32, #tpu.memory_space<vmem>>, vector<1x32xf32>
    %c15 = arith.constant 15 : index
    %c0_15 = arith.constant 0 : index
    %17 = vector.load %arg2[%c15, %c0_15] : memref<32x512xf32, #tpu.memory_space<vmem>>, vector<1x32xf32>
    %cst_16 = arith.constant dense<0.000000e+00> : vector<16xf32>
    %18 = vector.multi_reduction <add>, %5, %cst_16 [1] : vector<16x32xf32> to vector<16xf32>
    %19 = vector.shape_cast %18 : vector<16xf32> to vector<16x1xf32>
    %cst_17 = arith.constant 3.200000e+01 : f32
    %20 = vector.broadcast %cst_17 : f32 to vector<16x1xf32>
    %21 = arith.divf %19, %20 : vector<16x1xf32>
    %22 = vector.broadcast %21 : vector<16x1xf32> to vector<16x32xf32>
    %23 = arith.subf %5, %22 : vector<16x32xf32>
    %24 = arith.mulf %23, %23 : vector<16x32xf32>
    %cst_18 = arith.constant dense<0.000000e+00> : vector<16xf32>
    %25 = vector.multi_reduction <add>, %24, %cst_18 [1] : vector<16x32xf32> to vector<16xf32>
    %26 = vector.shape_cast %25 : vector<16xf32> to vector<16x1xf32>
    %cst_19 = arith.constant 0.0322580636 : f32
    %27 = vector.broadcast %cst_19 : f32 to vector<16x1xf32>
    %28 = arith.mulf %26, %27 : vector<16x1xf32>
    %29 = math.sqrt %28 : vector<16x1xf32>
    %30 = vector.broadcast %12 : vector<1x32xf32> to vector<16x32xf32>
    %31 = arith.mulf %30, %23 : vector<16x32xf32>
    %cst_20 = arith.constant 9.99999997E-7 : f32
    %32 = vector.broadcast %cst_20 : f32 to vector<16x1xf32>
    %33 = arith.addf %29, %32 : vector<16x1xf32>
    %34 = tpu.reciprocal %33 : vector<16x1xf32> -> vector<16x1xf32>
    %35 = vector.broadcast %34 : vector<16x1xf32> to vector<16x32xf32>
    %36 = arith.mulf %31, %35 : vector<16x32xf32>
    %37 = vector.broadcast %13 : vector<1x32xf32> to vector<16x32xf32>
    %38 = arith.addf %36, %37 : vector<16x32xf32>
    %cst_21 = arith.constant dense<0.000000e+00> : vector<16x96xf32>
    %39 = tpu.matmul %38, %6, %cst_21 {dimension_numbers = #tpu.dot_dimension_numbers<[1], [0], [0], [1], [0, 0, 1, 1], [], []>} : vector<16x32xf32>, vector<32x96xf32>, vector<16x96xf32> -> vector<16x96xf32>
    %40 = vector.broadcast %10 : vector<1x96xf32> to vector<16x96xf32>
    %41 = arith.addf %39, %40 : vector<16x96xf32>
    %42 = vector.extract_strided_slice %41 {offsets = [0, 0], sizes = [8, 8], strides = [1, 1]} : vector<16x96xf32> to vector<8x8xf32>
    %43 = vector.extract_strided_slice %41 {offsets = [0, 32], sizes = [8, 8], strides = [1, 1]} : vector<16x96xf32> to vector<8x8xf32>
    %44 = vector.extract_strided_slice %41 {offsets = [0, 64], sizes = [8, 8], strides = [1, 1]} : vector<16x96xf32> to vector<8x8xf32>
    %cst_22 = arith.constant dense<0.000000e+00> : vector<8x8xf32>
    %45 = tpu.matmul %42, %43, %cst_22 {dimension_numbers = #tpu.dot_dimension_numbers<[1], [1], [0], [0], [0, 0, 1, 0], [], []>} : vector<8x8xf32>, vector<8x8xf32>, vector<8x8xf32> -> vector<8x8xf32>
    %cst_23 = arith.constant 0.353553385 : f32
    %46 = vector.broadcast %cst_23 : f32 to vector<8x8xf32>
    %47 = arith.mulf %45, %46 : vector<8x8xf32>
    %cst_24 = arith.constant dense<0xFF800000> : vector<8xf32>
    %48 = vector.multi_reduction <maximumf>, %47, %cst_24 [1] : vector<8x8xf32> to vector<8xf32>
    %49 = vector.shape_cast %48 : vector<8xf32> to vector<8x1xf32>
    %50 = vector.broadcast %49 : vector<8x1xf32> to vector<8x8xf32>
    %51 = arith.subf %47, %50 : vector<8x8xf32>
    %52 = math.exp %51 : vector<8x8xf32>
    %cst_25 = arith.constant dense<0.000000e+00> : vector<8xf32>
    %53 = vector.multi_reduction <add>, %52, %cst_25 [1] : vector<8x8xf32> to vector<8xf32>
    %54 = vector.shape_cast %53 : vector<8xf32> to vector<8x1xf32>
    %55 = tpu.reciprocal %54 : vector<8x1xf32> -> vector<8x1xf32>
    %56 = vector.broadcast %55 : vector<8x1xf32> to vector<8x8xf32>
    %57 = arith.mulf %52, %56 : vector<8x8xf32>
    %cst_26 = arith.constant dense<0.000000e+00> : vector<8x8xf32>
    %58 = tpu.matmul %57, %44, %cst_26 {dimension_numbers = #tpu.dot_dimension_numbers<[1], [0], [0], [1], [0, 0, 1, 1], [], []>} : vector<8x8xf32>, vector<8x8xf32>, vector<8x8xf32> -> vector<8x8xf32>
    %59 = vector.extract_strided_slice %41 {offsets = [0, 8], sizes = [8, 8], strides = [1, 1]} : vector<16x96xf32> to vector<8x8xf32>
    %60 = vector.extract_strided_slice %41 {offsets = [0, 40], sizes = [8, 8], strides = [1, 1]} : vector<16x96xf32> to vector<8x8xf32>
    %61 = vector.extract_strided_slice %41 {offsets = [0, 72], sizes = [8, 8], strides = [1, 1]} : vector<16x96xf32> to vector<8x8xf32>
    %cst_27 = arith.constant dense<0.000000e+00> : vector<8x8xf32>
    %62 = tpu.matmul %59, %60, %cst_27 {dimension_numbers = #tpu.dot_dimension_numbers<[1], [1], [0], [0], [0, 0, 1, 0], [], []>} : vector<8x8xf32>, vector<8x8xf32>, vector<8x8xf32> -> vector<8x8xf32>
    %cst_28 = arith.constant 0.353553385 : f32
    %63 = vector.broadcast %cst_28 : f32 to vector<8x8xf32>
    %64 = arith.mulf %62, %63 : vector<8x8xf32>
    %cst_29 = arith.constant dense<0xFF800000> : vector<8xf32>
    %65 = vector.multi_reduction <maximumf>, %64, %cst_29 [1] : vector<8x8xf32> to vector<8xf32>
    %66 = vector.shape_cast %65 : vector<8xf32> to vector<8x1xf32>
    %67 = vector.broadcast %66 : vector<8x1xf32> to vector<8x8xf32>
    %68 = arith.subf %64, %67 : vector<8x8xf32>
    %69 = math.exp %68 : vector<8x8xf32>
    %cst_30 = arith.constant dense<0.000000e+00> : vector<8xf32>
    %70 = vector.multi_reduction <add>, %69, %cst_30 [1] : vector<8x8xf32> to vector<8xf32>
    %71 = vector.shape_cast %70 : vector<8xf32> to vector<8x1xf32>
    %72 = tpu.reciprocal %71 : vector<8x1xf32> -> vector<8x1xf32>
    %73 = vector.broadcast %72 : vector<8x1xf32> to vector<8x8xf32>
    %74 = arith.mulf %69, %73 : vector<8x8xf32>
    %cst_31 = arith.constant dense<0.000000e+00> : vector<8x8xf32>
    %75 = tpu.matmul %74, %61, %cst_31 {dimension_numbers = #tpu.dot_dimension_numbers<[1], [0], [0], [1], [0, 0, 1, 1], [], []>} : vector<8x8xf32>, vector<8x8xf32>, vector<8x8xf32> -> vector<8x8xf32>
    %76 = vector.extract_strided_slice %41 {offsets = [0, 16], sizes = [8, 8], strides = [1, 1]} : vector<16x96xf32> to vector<8x8xf32>
    %77 = vector.extract_strided_slice %41 {offsets = [0, 48], sizes = [8, 8], strides = [1, 1]} : vector<16x96xf32> to vector<8x8xf32>
    %78 = vector.extract_strided_slice %41 {offsets = [0, 80], sizes = [8, 8], strides = [1, 1]} : vector<16x96xf32> to vector<8x8xf32>
    %cst_32 = arith.constant dense<0.000000e+00> : vector<8x8xf32>
    %79 = tpu.matmul %76, %77, %cst_32 {dimension_numbers = #tpu.dot_dimension_numbers<[1], [1], [0], [0], [0, 0, 1, 0], [], []>} : vector<8x8xf32>, vector<8x8xf32>, vector<8x8xf32> -> vector<8x8xf32>
    %cst_33 = arith.constant 0.353553385 : f32
    %80 = vector.broadcast %cst_33 : f32 to vector<8x8xf32>
    %81 = arith.mulf %79, %80 : vector<8x8xf32>
    %cst_34 = arith.constant dense<0xFF800000> : vector<8xf32>
    %82 = vector.multi_reduction <maximumf>, %81, %cst_34 [1] : vector<8x8xf32> to vector<8xf32>
    %83 = vector.shape_cast %82 : vector<8xf32> to vector<8x1xf32>
    %84 = vector.broadcast %83 : vector<8x1xf32> to vector<8x8xf32>
    %85 = arith.subf %81, %84 : vector<8x8xf32>
    %86 = math.exp %85 : vector<8x8xf32>
    %cst_35 = arith.constant dense<0.000000e+00> : vector<8xf32>
    %87 = vector.multi_reduction <add>, %86, %cst_35 [1] : vector<8x8xf32> to vector<8xf32>
    %88 = vector.shape_cast %87 : vector<8xf32> to vector<8x1xf32>
    %89 = tpu.reciprocal %88 : vector<8x1xf32> -> vector<8x1xf32>
    %90 = vector.broadcast %89 : vector<8x1xf32> to vector<8x8xf32>
    %91 = arith.mulf %86, %90 : vector<8x8xf32>
    %cst_36 = arith.constant dense<0.000000e+00> : vector<8x8xf32>
    %92 = tpu.matmul %91, %78, %cst_36 {dimension_numbers = #tpu.dot_dimension_numbers<[1], [0], [0], [1], [0, 0, 1, 1], [], []>} : vector<8x8xf32>, vector<8x8xf32>, vector<8x8xf32> -> vector<8x8xf32>
    %93 = vector.extract_strided_slice %41 {offsets = [0, 24], sizes = [8, 8], strides = [1, 1]} : vector<16x96xf32> to vector<8x8xf32>
    %94 = vector.extract_strided_slice %41 {offsets = [0, 56], sizes = [8, 8], strides = [1, 1]} : vector<16x96xf32> to vector<8x8xf32>
    %95 = vector.extract_strided_slice %41 {offsets = [0, 88], sizes = [8, 8], strides = [1, 1]} : vector<16x96xf32> to vector<8x8xf32>
    %cst_37 = arith.constant dense<0.000000e+00> : vector<8x8xf32>
    %96 = tpu.matmul %93, %94, %cst_37 {dimension_numbers = #tpu.dot_dimension_numbers<[1], [1], [0], [0], [0, 0, 1, 0], [], []>} : vector<8x8xf32>, vector<8x8xf32>, vector<8x8xf32> -> vector<8x8xf32>
    %cst_38 = arith.constant 0.353553385 : f32
    %97 = vector.broadcast %cst_38 : f32 to vector<8x8xf32>
    %98 = arith.mulf %96, %97 : vector<8x8xf32>
    %cst_39 = arith.constant dense<0xFF800000> : vector<8xf32>
    %99 = vector.multi_reduction <maximumf>, %98, %cst_39 [1] : vector<8x8xf32> to vector<8xf32>
    %100 = vector.shape_cast %99 : vector<8xf32> to vector<8x1xf32>
    %101 = vector.broadcast %100 : vector<8x1xf32> to vector<8x8xf32>
    %102 = arith.subf %98, %101 : vector<8x8xf32>
    %103 = math.exp %102 : vector<8x8xf32>
    %cst_40 = arith.constant dense<0.000000e+00> : vector<8xf32>
    %104 = vector.multi_reduction <add>, %103, %cst_40 [1] : vector<8x8xf32> to vector<8xf32>
    %105 = vector.shape_cast %104 : vector<8xf32> to vector<8x1xf32>
    %106 = tpu.reciprocal %105 : vector<8x1xf32> -> vector<8x1xf32>
    %107 = vector.broadcast %106 : vector<8x1xf32> to vector<8x8xf32>
    %108 = arith.mulf %103, %107 : vector<8x8xf32>
    %cst_41 = arith.constant dense<0.000000e+00> : vector<8x8xf32>
    %109 = tpu.matmul %108, %95, %cst_41 {dimension_numbers = #tpu.dot_dimension_numbers<[1], [0], [0], [1], [0, 0, 1, 1], [], []>} : vector<8x8xf32>, vector<8x8xf32>, vector<8x8xf32> -> vector<8x8xf32>
    %110 = tpu.concatenate %58, %75, %92, %109 in 1 : vector<8x8xf32>, vector<8x8xf32>, vector<8x8xf32>, vector<8x8xf32> -> vector<8x32xf32>
    %111 = vector.extract_strided_slice %41 {offsets = [8, 0], sizes = [8, 8], strides = [1, 1]} : vector<16x96xf32> to vector<8x8xf32>
    %112 = vector.extract_strided_slice %41 {offsets = [8, 32], sizes = [8, 8], strides = [1, 1]} : vector<16x96xf32> to vector<8x8xf32>
    %113 = vector.extract_strided_slice %41 {offsets = [8, 64], sizes = [8, 8], strides = [1, 1]} : vector<16x96xf32> to vector<8x8xf32>
    %cst_42 = arith.constant dense<0.000000e+00> : vector<8x8xf32>
    %114 = tpu.matmul %111, %112, %cst_42 {dimension_numbers = #tpu.dot_dimension_numbers<[1], [1], [0], [0], [0, 0, 1, 0], [], []>} : vector<8x8xf32>, vector<8x8xf32>, vector<8x8xf32> -> vector<8x8xf32>
    %cst_43 = arith.constant 0.353553385 : f32
    %115 = vector.broadcast %cst_43 : f32 to vector<8x8xf32>
    %116 = arith.mulf %114, %115 : vector<8x8xf32>
    %cst_44 = arith.constant dense<0xFF800000> : vector<8xf32>
    %117 = vector.multi_reduction <maximumf>, %116, %cst_44 [1] : vector<8x8xf32> to vector<8xf32>
    %118 = vector.shape_cast %117 : vector<8xf32> to vector<8x1xf32>
    %119 = vector.broadcast %118 : vector<8x1xf32> to vector<8x8xf32>
    %120 = arith.subf %116, %119 : vector<8x8xf32>
    %121 = math.exp %120 : vector<8x8xf32>
    %cst_45 = arith.constant dense<0.000000e+00> : vector<8xf32>
    %122 = vector.multi_reduction <add>, %121, %cst_45 [1] : vector<8x8xf32> to vector<8xf32>
    %123 = vector.shape_cast %122 : vector<8xf32> to vector<8x1xf32>
    %124 = tpu.reciprocal %123 : vector<8x1xf32> -> vector<8x1xf32>
    %125 = vector.broadcast %124 : vector<8x1xf32> to vector<8x8xf32>
    %126 = arith.mulf %121, %125 : vector<8x8xf32>
    %cst_46 = arith.constant dense<0.000000e+00> : vector<8x8xf32>
    %127 = tpu.matmul %126, %113, %cst_46 {dimension_numbers = #tpu.dot_dimension_numbers<[1], [0], [0], [1], [0, 0, 1, 1], [], []>} : vector<8x8xf32>, vector<8x8xf32>, vector<8x8xf32> -> vector<8x8xf32>
    %128 = vector.extract_strided_slice %41 {offsets = [8, 8], sizes = [8, 8], strides = [1, 1]} : vector<16x96xf32> to vector<8x8xf32>
    %129 = vector.extract_strided_slice %41 {offsets = [8, 40], sizes = [8, 8], strides = [1, 1]} : vector<16x96xf32> to vector<8x8xf32>
    %130 = vector.extract_strided_slice %41 {offsets = [8, 72], sizes = [8, 8], strides = [1, 1]} : vector<16x96xf32> to vector<8x8xf32>
    %cst_47 = arith.constant dense<0.000000e+00> : vector<8x8xf32>
    %131 = tpu.matmul %128, %129, %cst_47 {dimension_numbers = #tpu.dot_dimension_numbers<[1], [1], [0], [0], [0, 0, 1, 0], [], []>} : vector<8x8xf32>, vector<8x8xf32>, vector<8x8xf32> -> vector<8x8xf32>
    %cst_48 = arith.constant 0.353553385 : f32
    %132 = vector.broadcast %cst_48 : f32 to vector<8x8xf32>
    %133 = arith.mulf %131, %132 : vector<8x8xf32>
    %cst_49 = arith.constant dense<0xFF800000> : vector<8xf32>
    %134 = vector.multi_reduction <maximumf>, %133, %cst_49 [1] : vector<8x8xf32> to vector<8xf32>
    %135 = vector.shape_cast %134 : vector<8xf32> to vector<8x1xf32>
    %136 = vector.broadcast %135 : vector<8x1xf32> to vector<8x8xf32>
    %137 = arith.subf %133, %136 : vector<8x8xf32>
    %138 = math.exp %137 : vector<8x8xf32>
    %cst_50 = arith.constant dense<0.000000e+00> : vector<8xf32>
    %139 = vector.multi_reduction <add>, %138, %cst_50 [1] : vector<8x8xf32> to vector<8xf32>
    %140 = vector.shape_cast %139 : vector<8xf32> to vector<8x1xf32>
    %141 = tpu.reciprocal %140 : vector<8x1xf32> -> vector<8x1xf32>
    %142 = vector.broadcast %141 : vector<8x1xf32> to vector<8x8xf32>
    %143 = arith.mulf %138, %142 : vector<8x8xf32>
    %cst_51 = arith.constant dense<0.000000e+00> : vector<8x8xf32>
    %144 = tpu.matmul %143, %130, %cst_51 {dimension_numbers = #tpu.dot_dimension_numbers<[1], [0], [0], [1], [0, 0, 1, 1], [], []>} : vector<8x8xf32>, vector<8x8xf32>, vector<8x8xf32> -> vector<8x8xf32>
    %145 = vector.extract_strided_slice %41 {offsets = [8, 16], sizes = [8, 8], strides = [1, 1]} : vector<16x96xf32> to vector<8x8xf32>
    %146 = vector.extract_strided_slice %41 {offsets = [8, 48], sizes = [8, 8], strides = [1, 1]} : vector<16x96xf32> to vector<8x8xf32>
    %147 = vector.extract_strided_slice %41 {offsets = [8, 80], sizes = [8, 8], strides = [1, 1]} : vector<16x96xf32> to vector<8x8xf32>
    %cst_52 = arith.constant dense<0.000000e+00> : vector<8x8xf32>
    %148 = tpu.matmul %145, %146, %cst_52 {dimension_numbers = #tpu.dot_dimension_numbers<[1], [1], [0], [0], [0, 0, 1, 0], [], []>} : vector<8x8xf32>, vector<8x8xf32>, vector<8x8xf32> -> vector<8x8xf32>
    %cst_53 = arith.constant 0.353553385 : f32
    %149 = vector.broadcast %cst_53 : f32 to vector<8x8xf32>
    %150 = arith.mulf %148, %149 : vector<8x8xf32>
    %cst_54 = arith.constant dense<0xFF800000> : vector<8xf32>
    %151 = vector.multi_reduction <maximumf>, %150, %cst_54 [1] : vector<8x8xf32> to vector<8xf32>
    %152 = vector.shape_cast %151 : vector<8xf32> to vector<8x1xf32>
    %153 = vector.broadcast %152 : vector<8x1xf32> to vector<8x8xf32>
    %154 = arith.subf %150, %153 : vector<8x8xf32>
    %155 = math.exp %154 : vector<8x8xf32>
    %cst_55 = arith.constant dense<0.000000e+00> : vector<8xf32>
    %156 = vector.multi_reduction <add>, %155, %cst_55 [1] : vector<8x8xf32> to vector<8xf32>
    %157 = vector.shape_cast %156 : vector<8xf32> to vector<8x1xf32>
    %158 = tpu.reciprocal %157 : vector<8x1xf32> -> vector<8x1xf32>
    %159 = vector.broadcast %158 : vector<8x1xf32> to vector<8x8xf32>
    %160 = arith.mulf %155, %159 : vector<8x8xf32>
    %cst_56 = arith.constant dense<0.000000e+00> : vector<8x8xf32>
    %161 = tpu.matmul %160, %147, %cst_56 {dimension_numbers = #tpu.dot_dimension_numbers<[1], [0], [0], [1], [0, 0, 1, 1], [], []>} : vector<8x8xf32>, vector<8x8xf32>, vector<8x8xf32> -> vector<8x8xf32>
    %162 = vector.extract_strided_slice %41 {offsets = [8, 24], sizes = [8, 8], strides = [1, 1]} : vector<16x96xf32> to vector<8x8xf32>
    %163 = vector.extract_strided_slice %41 {offsets = [8, 56], sizes = [8, 8], strides = [1, 1]} : vector<16x96xf32> to vector<8x8xf32>
    %164 = vector.extract_strided_slice %41 {offsets = [8, 88], sizes = [8, 8], strides = [1, 1]} : vector<16x96xf32> to vector<8x8xf32>
    %cst_57 = arith.constant dense<0.000000e+00> : vector<8x8xf32>
    %165 = tpu.matmul %162, %163, %cst_57 {dimension_numbers = #tpu.dot_dimension_numbers<[1], [1], [0], [0], [0, 0, 1, 0], [], []>} : vector<8x8xf32>, vector<8x8xf32>, vector<8x8xf32> -> vector<8x8xf32>
    %cst_58 = arith.constant 0.353553385 : f32
    %166 = vector.broadcast %cst_58 : f32 to vector<8x8xf32>
    %167 = arith.mulf %165, %166 : vector<8x8xf32>
    %cst_59 = arith.constant dense<0xFF800000> : vector<8xf32>
    %168 = vector.multi_reduction <maximumf>, %167, %cst_59 [1] : vector<8x8xf32> to vector<8xf32>
    %169 = vector.shape_cast %168 : vector<8xf32> to vector<8x1xf32>
    %170 = vector.broadcast %169 : vector<8x1xf32> to vector<8x8xf32>
    %171 = arith.subf %167, %170 : vector<8x8xf32>
    %172 = math.exp %171 : vector<8x8xf32>
    %cst_60 = arith.constant dense<0.000000e+00> : vector<8xf32>
    %173 = vector.multi_reduction <add>, %172, %cst_60 [1] : vector<8x8xf32> to vector<8xf32>
    %174 = vector.shape_cast %173 : vector<8xf32> to vector<8x1xf32>
    %175 = tpu.reciprocal %174 : vector<8x1xf32> -> vector<8x1xf32>
    %176 = vector.broadcast %175 : vector<8x1xf32> to vector<8x8xf32>
    %177 = arith.mulf %172, %176 : vector<8x8xf32>
    %cst_61 = arith.constant dense<0.000000e+00> : vector<8x8xf32>
    %178 = tpu.matmul %177, %164, %cst_61 {dimension_numbers = #tpu.dot_dimension_numbers<[1], [0], [0], [1], [0, 0, 1, 1], [], []>} : vector<8x8xf32>, vector<8x8xf32>, vector<8x8xf32> -> vector<8x8xf32>
    %179 = tpu.concatenate %127, %144, %161, %178 in 1 : vector<8x8xf32>, vector<8x8xf32>, vector<8x8xf32>, vector<8x8xf32> -> vector<8x32xf32>
    %180 = tpu.concatenate %110, %179 in 0 : vector<8x32xf32>, vector<8x32xf32> -> vector<16x32xf32>
    %cst_62 = arith.constant dense<0.000000e+00> : vector<16x32xf32>
    %181 = tpu.matmul %180, %7, %cst_62 {dimension_numbers = #tpu.dot_dimension_numbers<[1], [0], [0], [1], [0, 0, 1, 1], [], []>} : vector<16x32xf32>, vector<32x32xf32>, vector<16x32xf32> -> vector<16x32xf32>
    %182 = arith.addf %5, %181 : vector<16x32xf32>
    %183 = vector.broadcast %14 : vector<1x32xf32> to vector<16x32xf32>
    %184 = arith.addf %182, %183 : vector<16x32xf32>
    %cst_63 = arith.constant dense<0.000000e+00> : vector<16xf32>
    %185 = vector.multi_reduction <add>, %184, %cst_63 [1] : vector<16x32xf32> to vector<16xf32>
    %186 = vector.shape_cast %185 : vector<16xf32> to vector<16x1xf32>
    %cst_64 = arith.constant 3.200000e+01 : f32
    %187 = vector.broadcast %cst_64 : f32 to vector<16x1xf32>
    %188 = arith.divf %186, %187 : vector<16x1xf32>
    %189 = vector.broadcast %188 : vector<16x1xf32> to vector<16x32xf32>
    %190 = arith.subf %184, %189 : vector<16x32xf32>
    %191 = arith.mulf %190, %190 : vector<16x32xf32>
    %cst_65 = arith.constant dense<0.000000e+00> : vector<16xf32>
    %192 = vector.multi_reduction <add>, %191, %cst_65 [1] : vector<16x32xf32> to vector<16xf32>
    %193 = vector.shape_cast %192 : vector<16xf32> to vector<16x1xf32>
    %cst_66 = arith.constant 0.0322580636 : f32
    %194 = vector.broadcast %cst_66 : f32 to vector<16x1xf32>
    %195 = arith.mulf %193, %194 : vector<16x1xf32>
    %196 = math.sqrt %195 : vector<16x1xf32>
    %197 = vector.broadcast %15 : vector<1x32xf32> to vector<16x32xf32>
    %198 = arith.mulf %197, %190 : vector<16x32xf32>
    %cst_67 = arith.constant 9.99999997E-7 : f32
    %199 = vector.broadcast %cst_67 : f32 to vector<16x1xf32>
    %200 = arith.addf %196, %199 : vector<16x1xf32>
    %201 = tpu.reciprocal %200 : vector<16x1xf32> -> vector<16x1xf32>
    %202 = vector.broadcast %201 : vector<16x1xf32> to vector<16x32xf32>
    %203 = arith.mulf %198, %202 : vector<16x32xf32>
    %204 = vector.broadcast %16 : vector<1x32xf32> to vector<16x32xf32>
    %205 = arith.addf %203, %204 : vector<16x32xf32>
    %cst_68 = arith.constant dense<0.000000e+00> : vector<16x512xf32>
    %206 = tpu.matmul %205, %8, %cst_68 {dimension_numbers = #tpu.dot_dimension_numbers<[1], [0], [0], [1], [0, 0, 1, 1], [], []>} : vector<16x32xf32>, vector<32x512xf32>, vector<16x512xf32> -> vector<16x512xf32>
    %207 = vector.broadcast %11 : vector<1x512xf32> to vector<16x512xf32>
    %208 = arith.addf %206, %207 : vector<16x512xf32>
    %cst_69 = arith.constant 0.000000e+00 : f32
    %209 = vector.broadcast %cst_69 : f32 to vector<16x512xf32>
    %210 = arith.maximumf %208, %209 : vector<16x512xf32>
    %cst_70 = arith.constant dense<0.000000e+00> : vector<16x32xf32>
    %211 = tpu.matmul %210, %9, %cst_70 {dimension_numbers = #tpu.dot_dimension_numbers<[1], [1], [0], [0], [0, 0, 1, 0], [], []>} : vector<16x512xf32>, vector<32x512xf32>, vector<16x32xf32> -> vector<16x32xf32>
    %212 = vector.broadcast %17 : vector<1x32xf32> to vector<16x32xf32>
    %213 = arith.addf %211, %212 : vector<16x32xf32>
    %214 = arith.addf %184, %213 : vector<16x32xf32>
    %c128 = arith.constant 128 : index
    %c0_71 = arith.constant 0 : index
    %215 = vector.load %arg1[%c128, %c0_71] : memref<256x512xf32, #tpu.memory_space<vmem>>, vector<32x96xf32>
    %c160 = arith.constant 160 : index
    %c0_72 = arith.constant 0 : index
    %216 = vector.load %arg1[%c160, %c0_72] : memref<256x512xf32, #tpu.memory_space<vmem>>, vector<32x32xf32>
    %c192 = arith.constant 192 : index
    %c0_73 = arith.constant 0 : index
    %217 = vector.load %arg1[%c192, %c0_73] : memref<256x512xf32, #tpu.memory_space<vmem>>, vector<32x512xf32>
    %c224 = arith.constant 224 : index
    %c0_74 = arith.constant 0 : index
    %218 = vector.load %arg1[%c224, %c0_74] : memref<256x512xf32, #tpu.memory_space<vmem>>, vector<32x512xf32>
    %c16 = arith.constant 16 : index
    %c0_75 = arith.constant 0 : index
    %219 = vector.load %arg2[%c16, %c0_75] : memref<32x512xf32, #tpu.memory_space<vmem>>, vector<1x96xf32>
    %c17 = arith.constant 17 : index
    %c0_76 = arith.constant 0 : index
    %220 = vector.load %arg2[%c17, %c0_76] : memref<32x512xf32, #tpu.memory_space<vmem>>, vector<1x512xf32>
    %c18 = arith.constant 18 : index
    %c0_77 = arith.constant 0 : index
    %221 = vector.load %arg2[%c18, %c0_77] : memref<32x512xf32, #tpu.memory_space<vmem>>, vector<1x32xf32>
    %c19 = arith.constant 19 : index
    %c0_78 = arith.constant 0 : index
    %222 = vector.load %arg2[%c19, %c0_78] : memref<32x512xf32, #tpu.memory_space<vmem>>, vector<1x32xf32>
    %c20 = arith.constant 20 : index
    %c0_79 = arith.constant 0 : index
    %223 = vector.load %arg2[%c20, %c0_79] : memref<32x512xf32, #tpu.memory_space<vmem>>, vector<1x32xf32>
    %c21 = arith.constant 21 : index
    %c0_80 = arith.constant 0 : index
    %224 = vector.load %arg2[%c21, %c0_80] : memref<32x512xf32, #tpu.memory_space<vmem>>, vector<1x32xf32>
    %c22 = arith.constant 22 : index
    %c0_81 = arith.constant 0 : index
    %225 = vector.load %arg2[%c22, %c0_81] : memref<32x512xf32, #tpu.memory_space<vmem>>, vector<1x32xf32>
    %c23 = arith.constant 23 : index
    %c0_82 = arith.constant 0 : index
    %226 = vector.load %arg2[%c23, %c0_82] : memref<32x512xf32, #tpu.memory_space<vmem>>, vector<1x32xf32>
    %cst_83 = arith.constant dense<0.000000e+00> : vector<16xf32>
    %227 = vector.multi_reduction <add>, %214, %cst_83 [1] : vector<16x32xf32> to vector<16xf32>
    %228 = vector.shape_cast %227 : vector<16xf32> to vector<16x1xf32>
    %cst_84 = arith.constant 3.200000e+01 : f32
    %229 = vector.broadcast %cst_84 : f32 to vector<16x1xf32>
    %230 = arith.divf %228, %229 : vector<16x1xf32>
    %231 = vector.broadcast %230 : vector<16x1xf32> to vector<16x32xf32>
    %232 = arith.subf %214, %231 : vector<16x32xf32>
    %233 = arith.mulf %232, %232 : vector<16x32xf32>
    %cst_85 = arith.constant dense<0.000000e+00> : vector<16xf32>
    %234 = vector.multi_reduction <add>, %233, %cst_85 [1] : vector<16x32xf32> to vector<16xf32>
    %235 = vector.shape_cast %234 : vector<16xf32> to vector<16x1xf32>
    %cst_86 = arith.constant 0.0322580636 : f32
    %236 = vector.broadcast %cst_86 : f32 to vector<16x1xf32>
    %237 = arith.mulf %235, %236 : vector<16x1xf32>
    %238 = math.sqrt %237 : vector<16x1xf32>
    %239 = vector.broadcast %221 : vector<1x32xf32> to vector<16x32xf32>
    %240 = arith.mulf %239, %232 : vector<16x32xf32>
    %cst_87 = arith.constant 9.99999997E-7 : f32
    %241 = vector.broadcast %cst_87 : f32 to vector<16x1xf32>
    %242 = arith.addf %238, %241 : vector<16x1xf32>
    %243 = tpu.reciprocal %242 : vector<16x1xf32> -> vector<16x1xf32>
    %244 = vector.broadcast %243 : vector<16x1xf32> to vector<16x32xf32>
    %245 = arith.mulf %240, %244 : vector<16x32xf32>
    %246 = vector.broadcast %222 : vector<1x32xf32> to vector<16x32xf32>
    %247 = arith.addf %245, %246 : vector<16x32xf32>
    %cst_88 = arith.constant dense<0.000000e+00> : vector<16x96xf32>
    %248 = tpu.matmul %247, %215, %cst_88 {dimension_numbers = #tpu.dot_dimension_numbers<[1], [0], [0], [1], [0, 0, 1, 1], [], []>} : vector<16x32xf32>, vector<32x96xf32>, vector<16x96xf32> -> vector<16x96xf32>
    %249 = vector.broadcast %219 : vector<1x96xf32> to vector<16x96xf32>
    %250 = arith.addf %248, %249 : vector<16x96xf32>
    %251 = vector.extract_strided_slice %250 {offsets = [0, 0], sizes = [8, 8], strides = [1, 1]} : vector<16x96xf32> to vector<8x8xf32>
    %252 = vector.extract_strided_slice %250 {offsets = [0, 32], sizes = [8, 8], strides = [1, 1]} : vector<16x96xf32> to vector<8x8xf32>
    %253 = vector.extract_strided_slice %250 {offsets = [0, 64], sizes = [8, 8], strides = [1, 1]} : vector<16x96xf32> to vector<8x8xf32>
    %cst_89 = arith.constant dense<0.000000e+00> : vector<8x8xf32>
    %254 = tpu.matmul %251, %252, %cst_89 {dimension_numbers = #tpu.dot_dimension_numbers<[1], [1], [0], [0], [0, 0, 1, 0], [], []>} : vector<8x8xf32>, vector<8x8xf32>, vector<8x8xf32> -> vector<8x8xf32>
    %cst_90 = arith.constant 0.353553385 : f32
    %255 = vector.broadcast %cst_90 : f32 to vector<8x8xf32>
    %256 = arith.mulf %254, %255 : vector<8x8xf32>
    %cst_91 = arith.constant dense<0xFF800000> : vector<8xf32>
    %257 = vector.multi_reduction <maximumf>, %256, %cst_91 [1] : vector<8x8xf32> to vector<8xf32>
    %258 = vector.shape_cast %257 : vector<8xf32> to vector<8x1xf32>
    %259 = vector.broadcast %258 : vector<8x1xf32> to vector<8x8xf32>
    %260 = arith.subf %256, %259 : vector<8x8xf32>
    %261 = math.exp %260 : vector<8x8xf32>
    %cst_92 = arith.constant dense<0.000000e+00> : vector<8xf32>
    %262 = vector.multi_reduction <add>, %261, %cst_92 [1] : vector<8x8xf32> to vector<8xf32>
    %263 = vector.shape_cast %262 : vector<8xf32> to vector<8x1xf32>
    %264 = tpu.reciprocal %263 : vector<8x1xf32> -> vector<8x1xf32>
    %265 = vector.broadcast %264 : vector<8x1xf32> to vector<8x8xf32>
    %266 = arith.mulf %261, %265 : vector<8x8xf32>
    %cst_93 = arith.constant dense<0.000000e+00> : vector<8x8xf32>
    %267 = tpu.matmul %266, %253, %cst_93 {dimension_numbers = #tpu.dot_dimension_numbers<[1], [0], [0], [1], [0, 0, 1, 1], [], []>} : vector<8x8xf32>, vector<8x8xf32>, vector<8x8xf32> -> vector<8x8xf32>
    %268 = vector.extract_strided_slice %250 {offsets = [0, 8], sizes = [8, 8], strides = [1, 1]} : vector<16x96xf32> to vector<8x8xf32>
    %269 = vector.extract_strided_slice %250 {offsets = [0, 40], sizes = [8, 8], strides = [1, 1]} : vector<16x96xf32> to vector<8x8xf32>
    %270 = vector.extract_strided_slice %250 {offsets = [0, 72], sizes = [8, 8], strides = [1, 1]} : vector<16x96xf32> to vector<8x8xf32>
    %cst_94 = arith.constant dense<0.000000e+00> : vector<8x8xf32>
    %271 = tpu.matmul %268, %269, %cst_94 {dimension_numbers = #tpu.dot_dimension_numbers<[1], [1], [0], [0], [0, 0, 1, 0], [], []>} : vector<8x8xf32>, vector<8x8xf32>, vector<8x8xf32> -> vector<8x8xf32>
    %cst_95 = arith.constant 0.353553385 : f32
    %272 = vector.broadcast %cst_95 : f32 to vector<8x8xf32>
    %273 = arith.mulf %271, %272 : vector<8x8xf32>
    %cst_96 = arith.constant dense<0xFF800000> : vector<8xf32>
    %274 = vector.multi_reduction <maximumf>, %273, %cst_96 [1] : vector<8x8xf32> to vector<8xf32>
    %275 = vector.shape_cast %274 : vector<8xf32> to vector<8x1xf32>
    %276 = vector.broadcast %275 : vector<8x1xf32> to vector<8x8xf32>
    %277 = arith.subf %273, %276 : vector<8x8xf32>
    %278 = math.exp %277 : vector<8x8xf32>
    %cst_97 = arith.constant dense<0.000000e+00> : vector<8xf32>
    %279 = vector.multi_reduction <add>, %278, %cst_97 [1] : vector<8x8xf32> to vector<8xf32>
    %280 = vector.shape_cast %279 : vector<8xf32> to vector<8x1xf32>
    %281 = tpu.reciprocal %280 : vector<8x1xf32> -> vector<8x1xf32>
    %282 = vector.broadcast %281 : vector<8x1xf32> to vector<8x8xf32>
    %283 = arith.mulf %278, %282 : vector<8x8xf32>
    %cst_98 = arith.constant dense<0.000000e+00> : vector<8x8xf32>
    %284 = tpu.matmul %283, %270, %cst_98 {dimension_numbers = #tpu.dot_dimension_numbers<[1], [0], [0], [1], [0, 0, 1, 1], [], []>} : vector<8x8xf32>, vector<8x8xf32>, vector<8x8xf32> -> vector<8x8xf32>
    %285 = vector.extract_strided_slice %250 {offsets = [0, 16], sizes = [8, 8], strides = [1, 1]} : vector<16x96xf32> to vector<8x8xf32>
    %286 = vector.extract_strided_slice %250 {offsets = [0, 48], sizes = [8, 8], strides = [1, 1]} : vector<16x96xf32> to vector<8x8xf32>
    %287 = vector.extract_strided_slice %250 {offsets = [0, 80], sizes = [8, 8], strides = [1, 1]} : vector<16x96xf32> to vector<8x8xf32>
    %cst_99 = arith.constant dense<0.000000e+00> : vector<8x8xf32>
    %288 = tpu.matmul %285, %286, %cst_99 {dimension_numbers = #tpu.dot_dimension_numbers<[1], [1], [0], [0], [0, 0, 1, 0], [], []>} : vector<8x8xf32>, vector<8x8xf32>, vector<8x8xf32> -> vector<8x8xf32>
    %cst_100 = arith.constant 0.353553385 : f32
    %289 = vector.broadcast %cst_100 : f32 to vector<8x8xf32>
    %290 = arith.mulf %288, %289 : vector<8x8xf32>
    %cst_101 = arith.constant dense<0xFF800000> : vector<8xf32>
    %291 = vector.multi_reduction <maximumf>, %290, %cst_101 [1] : vector<8x8xf32> to vector<8xf32>
    %292 = vector.shape_cast %291 : vector<8xf32> to vector<8x1xf32>
    %293 = vector.broadcast %292 : vector<8x1xf32> to vector<8x8xf32>
    %294 = arith.subf %290, %293 : vector<8x8xf32>
    %295 = math.exp %294 : vector<8x8xf32>
    %cst_102 = arith.constant dense<0.000000e+00> : vector<8xf32>
    %296 = vector.multi_reduction <add>, %295, %cst_102 [1] : vector<8x8xf32> to vector<8xf32>
    %297 = vector.shape_cast %296 : vector<8xf32> to vector<8x1xf32>
    %298 = tpu.reciprocal %297 : vector<8x1xf32> -> vector<8x1xf32>
    %299 = vector.broadcast %298 : vector<8x1xf32> to vector<8x8xf32>
    %300 = arith.mulf %295, %299 : vector<8x8xf32>
    %cst_103 = arith.constant dense<0.000000e+00> : vector<8x8xf32>
    %301 = tpu.matmul %300, %287, %cst_103 {dimension_numbers = #tpu.dot_dimension_numbers<[1], [0], [0], [1], [0, 0, 1, 1], [], []>} : vector<8x8xf32>, vector<8x8xf32>, vector<8x8xf32> -> vector<8x8xf32>
    %302 = vector.extract_strided_slice %250 {offsets = [0, 24], sizes = [8, 8], strides = [1, 1]} : vector<16x96xf32> to vector<8x8xf32>
    %303 = vector.extract_strided_slice %250 {offsets = [0, 56], sizes = [8, 8], strides = [1, 1]} : vector<16x96xf32> to vector<8x8xf32>
    %304 = vector.extract_strided_slice %250 {offsets = [0, 88], sizes = [8, 8], strides = [1, 1]} : vector<16x96xf32> to vector<8x8xf32>
    %cst_104 = arith.constant dense<0.000000e+00> : vector<8x8xf32>
    %305 = tpu.matmul %302, %303, %cst_104 {dimension_numbers = #tpu.dot_dimension_numbers<[1], [1], [0], [0], [0, 0, 1, 0], [], []>} : vector<8x8xf32>, vector<8x8xf32>, vector<8x8xf32> -> vector<8x8xf32>
    %cst_105 = arith.constant 0.353553385 : f32
    %306 = vector.broadcast %cst_105 : f32 to vector<8x8xf32>
    %307 = arith.mulf %305, %306 : vector<8x8xf32>
    %cst_106 = arith.constant dense<0xFF800000> : vector<8xf32>
    %308 = vector.multi_reduction <maximumf>, %307, %cst_106 [1] : vector<8x8xf32> to vector<8xf32>
    %309 = vector.shape_cast %308 : vector<8xf32> to vector<8x1xf32>
    %310 = vector.broadcast %309 : vector<8x1xf32> to vector<8x8xf32>
    %311 = arith.subf %307, %310 : vector<8x8xf32>
    %312 = math.exp %311 : vector<8x8xf32>
    %cst_107 = arith.constant dense<0.000000e+00> : vector<8xf32>
    %313 = vector.multi_reduction <add>, %312, %cst_107 [1] : vector<8x8xf32> to vector<8xf32>
    %314 = vector.shape_cast %313 : vector<8xf32> to vector<8x1xf32>
    %315 = tpu.reciprocal %314 : vector<8x1xf32> -> vector<8x1xf32>
    %316 = vector.broadcast %315 : vector<8x1xf32> to vector<8x8xf32>
    %317 = arith.mulf %312, %316 : vector<8x8xf32>
    %cst_108 = arith.constant dense<0.000000e+00> : vector<8x8xf32>
    %318 = tpu.matmul %317, %304, %cst_108 {dimension_numbers = #tpu.dot_dimension_numbers<[1], [0], [0], [1], [0, 0, 1, 1], [], []>} : vector<8x8xf32>, vector<8x8xf32>, vector<8x8xf32> -> vector<8x8xf32>
    %319 = tpu.concatenate %267, %284, %301, %318 in 1 : vector<8x8xf32>, vector<8x8xf32>, vector<8x8xf32>, vector<8x8xf32> -> vector<8x32xf32>
    %320 = vector.extract_strided_slice %250 {offsets = [8, 0], sizes = [8, 8], strides = [1, 1]} : vector<16x96xf32> to vector<8x8xf32>
    %321 = vector.extract_strided_slice %250 {offsets = [8, 32], sizes = [8, 8], strides = [1, 1]} : vector<16x96xf32> to vector<8x8xf32>
    %322 = vector.extract_strided_slice %250 {offsets = [8, 64], sizes = [8, 8], strides = [1, 1]} : vector<16x96xf32> to vector<8x8xf32>
    %cst_109 = arith.constant dense<0.000000e+00> : vector<8x8xf32>
    %323 = tpu.matmul %320, %321, %cst_109 {dimension_numbers = #tpu.dot_dimension_numbers<[1], [1], [0], [0], [0, 0, 1, 0], [], []>} : vector<8x8xf32>, vector<8x8xf32>, vector<8x8xf32> -> vector<8x8xf32>
    %cst_110 = arith.constant 0.353553385 : f32
    %324 = vector.broadcast %cst_110 : f32 to vector<8x8xf32>
    %325 = arith.mulf %323, %324 : vector<8x8xf32>
    %cst_111 = arith.constant dense<0xFF800000> : vector<8xf32>
    %326 = vector.multi_reduction <maximumf>, %325, %cst_111 [1] : vector<8x8xf32> to vector<8xf32>
    %327 = vector.shape_cast %326 : vector<8xf32> to vector<8x1xf32>
    %328 = vector.broadcast %327 : vector<8x1xf32> to vector<8x8xf32>
    %329 = arith.subf %325, %328 : vector<8x8xf32>
    %330 = math.exp %329 : vector<8x8xf32>
    %cst_112 = arith.constant dense<0.000000e+00> : vector<8xf32>
    %331 = vector.multi_reduction <add>, %330, %cst_112 [1] : vector<8x8xf32> to vector<8xf32>
    %332 = vector.shape_cast %331 : vector<8xf32> to vector<8x1xf32>
    %333 = tpu.reciprocal %332 : vector<8x1xf32> -> vector<8x1xf32>
    %334 = vector.broadcast %333 : vector<8x1xf32> to vector<8x8xf32>
    %335 = arith.mulf %330, %334 : vector<8x8xf32>
    %cst_113 = arith.constant dense<0.000000e+00> : vector<8x8xf32>
    %336 = tpu.matmul %335, %322, %cst_113 {dimension_numbers = #tpu.dot_dimension_numbers<[1], [0], [0], [1], [0, 0, 1, 1], [], []>} : vector<8x8xf32>, vector<8x8xf32>, vector<8x8xf32> -> vector<8x8xf32>
    %337 = vector.extract_strided_slice %250 {offsets = [8, 8], sizes = [8, 8], strides = [1, 1]} : vector<16x96xf32> to vector<8x8xf32>
    %338 = vector.extract_strided_slice %250 {offsets = [8, 40], sizes = [8, 8], strides = [1, 1]} : vector<16x96xf32> to vector<8x8xf32>
    %339 = vector.extract_strided_slice %250 {offsets = [8, 72], sizes = [8, 8], strides = [1, 1]} : vector<16x96xf32> to vector<8x8xf32>
    %cst_114 = arith.constant dense<0.000000e+00> : vector<8x8xf32>
    %340 = tpu.matmul %337, %338, %cst_114 {dimension_numbers = #tpu.dot_dimension_numbers<[1], [1], [0], [0], [0, 0, 1, 0], [], []>} : vector<8x8xf32>, vector<8x8xf32>, vector<8x8xf32> -> vector<8x8xf32>
    %cst_115 = arith.constant 0.353553385 : f32
    %341 = vector.broadcast %cst_115 : f32 to vector<8x8xf32>
    %342 = arith.mulf %340, %341 : vector<8x8xf32>
    %cst_116 = arith.constant dense<0xFF800000> : vector<8xf32>
    %343 = vector.multi_reduction <maximumf>, %342, %cst_116 [1] : vector<8x8xf32> to vector<8xf32>
    %344 = vector.shape_cast %343 : vector<8xf32> to vector<8x1xf32>
    %345 = vector.broadcast %344 : vector<8x1xf32> to vector<8x8xf32>
    %346 = arith.subf %342, %345 : vector<8x8xf32>
    %347 = math.exp %346 : vector<8x8xf32>
    %cst_117 = arith.constant dense<0.000000e+00> : vector<8xf32>
    %348 = vector.multi_reduction <add>, %347, %cst_117 [1] : vector<8x8xf32> to vector<8xf32>
    %349 = vector.shape_cast %348 : vector<8xf32> to vector<8x1xf32>
    %350 = tpu.reciprocal %349 : vector<8x1xf32> -> vector<8x1xf32>
    %351 = vector.broadcast %350 : vector<8x1xf32> to vector<8x8xf32>
    %352 = arith.mulf %347, %351 : vector<8x8xf32>
    %cst_118 = arith.constant dense<0.000000e+00> : vector<8x8xf32>
    %353 = tpu.matmul %352, %339, %cst_118 {dimension_numbers = #tpu.dot_dimension_numbers<[1], [0], [0], [1], [0, 0, 1, 1], [], []>} : vector<8x8xf32>, vector<8x8xf32>, vector<8x8xf32> -> vector<8x8xf32>
    %354 = vector.extract_strided_slice %250 {offsets = [8, 16], sizes = [8, 8], strides = [1, 1]} : vector<16x96xf32> to vector<8x8xf32>
    %355 = vector.extract_strided_slice %250 {offsets = [8, 48], sizes = [8, 8], strides = [1, 1]} : vector<16x96xf32> to vector<8x8xf32>
    %356 = vector.extract_strided_slice %250 {offsets = [8, 80], sizes = [8, 8], strides = [1, 1]} : vector<16x96xf32> to vector<8x8xf32>
    %cst_119 = arith.constant dense<0.000000e+00> : vector<8x8xf32>
    %357 = tpu.matmul %354, %355, %cst_119 {dimension_numbers = #tpu.dot_dimension_numbers<[1], [1], [0], [0], [0, 0, 1, 0], [], []>} : vector<8x8xf32>, vector<8x8xf32>, vector<8x8xf32> -> vector<8x8xf32>
    %cst_120 = arith.constant 0.353553385 : f32
    %358 = vector.broadcast %cst_120 : f32 to vector<8x8xf32>
    %359 = arith.mulf %357, %358 : vector<8x8xf32>
    %cst_121 = arith.constant dense<0xFF800000> : vector<8xf32>
    %360 = vector.multi_reduction <maximumf>, %359, %cst_121 [1] : vector<8x8xf32> to vector<8xf32>
    %361 = vector.shape_cast %360 : vector<8xf32> to vector<8x1xf32>
    %362 = vector.broadcast %361 : vector<8x1xf32> to vector<8x8xf32>
    %363 = arith.subf %359, %362 : vector<8x8xf32>
    %364 = math.exp %363 : vector<8x8xf32>
    %cst_122 = arith.constant dense<0.000000e+00> : vector<8xf32>
    %365 = vector.multi_reduction <add>, %364, %cst_122 [1] : vector<8x8xf32> to vector<8xf32>
    %366 = vector.shape_cast %365 : vector<8xf32> to vector<8x1xf32>
    %367 = tpu.reciprocal %366 : vector<8x1xf32> -> vector<8x1xf32>
    %368 = vector.broadcast %367 : vector<8x1xf32> to vector<8x8xf32>
    %369 = arith.mulf %364, %368 : vector<8x8xf32>
    %cst_123 = arith.constant dense<0.000000e+00> : vector<8x8xf32>
    %370 = tpu.matmul %369, %356, %cst_123 {dimension_numbers = #tpu.dot_dimension_numbers<[1], [0], [0], [1], [0, 0, 1, 1], [], []>} : vector<8x8xf32>, vector<8x8xf32>, vector<8x8xf32> -> vector<8x8xf32>
    %371 = vector.extract_strided_slice %250 {offsets = [8, 24], sizes = [8, 8], strides = [1, 1]} : vector<16x96xf32> to vector<8x8xf32>
    %372 = vector.extract_strided_slice %250 {offsets = [8, 56], sizes = [8, 8], strides = [1, 1]} : vector<16x96xf32> to vector<8x8xf32>
    %373 = vector.extract_strided_slice %250 {offsets = [8, 88], sizes = [8, 8], strides = [1, 1]} : vector<16x96xf32> to vector<8x8xf32>
    %cst_124 = arith.constant dense<0.000000e+00> : vector<8x8xf32>
    %374 = tpu.matmul %371, %372, %cst_124 {dimension_numbers = #tpu.dot_dimension_numbers<[1], [1], [0], [0], [0, 0, 1, 0], [], []>} : vector<8x8xf32>, vector<8x8xf32>, vector<8x8xf32> -> vector<8x8xf32>
    %cst_125 = arith.constant 0.353553385 : f32
    %375 = vector.broadcast %cst_125 : f32 to vector<8x8xf32>
    %376 = arith.mulf %374, %375 : vector<8x8xf32>
    %cst_126 = arith.constant dense<0xFF800000> : vector<8xf32>
    %377 = vector.multi_reduction <maximumf>, %376, %cst_126 [1] : vector<8x8xf32> to vector<8xf32>
    %378 = vector.shape_cast %377 : vector<8xf32> to vector<8x1xf32>
    %379 = vector.broadcast %378 : vector<8x1xf32> to vector<8x8xf32>
    %380 = arith.subf %376, %379 : vector<8x8xf32>
    %381 = math.exp %380 : vector<8x8xf32>
    %cst_127 = arith.constant dense<0.000000e+00> : vector<8xf32>
    %382 = vector.multi_reduction <add>, %381, %cst_127 [1] : vector<8x8xf32> to vector<8xf32>
    %383 = vector.shape_cast %382 : vector<8xf32> to vector<8x1xf32>
    %384 = tpu.reciprocal %383 : vector<8x1xf32> -> vector<8x1xf32>
    %385 = vector.broadcast %384 : vector<8x1xf32> to vector<8x8xf32>
    %386 = arith.mulf %381, %385 : vector<8x8xf32>
    %cst_128 = arith.constant dense<0.000000e+00> : vector<8x8xf32>
    %387 = tpu.matmul %386, %373, %cst_128 {dimension_numbers = #tpu.dot_dimension_numbers<[1], [0], [0], [1], [0, 0, 1, 1], [], []>} : vector<8x8xf32>, vector<8x8xf32>, vector<8x8xf32> -> vector<8x8xf32>
    %388 = tpu.concatenate %336, %353, %370, %387 in 1 : vector<8x8xf32>, vector<8x8xf32>, vector<8x8xf32>, vector<8x8xf32> -> vector<8x32xf32>
    %389 = tpu.concatenate %319, %388 in 0 : vector<8x32xf32>, vector<8x32xf32> -> vector<16x32xf32>
    %cst_129 = arith.constant dense<0.000000e+00> : vector<16x32xf32>
    %390 = tpu.matmul %389, %216, %cst_129 {dimension_numbers = #tpu.dot_dimension_numbers<[1], [0], [0], [1], [0, 0, 1, 1], [], []>} : vector<16x32xf32>, vector<32x32xf32>, vector<16x32xf32> -> vector<16x32xf32>
    %391 = arith.addf %214, %390 : vector<16x32xf32>
    %392 = vector.broadcast %223 : vector<1x32xf32> to vector<16x32xf32>
    %393 = arith.addf %391, %392 : vector<16x32xf32>
    %cst_130 = arith.constant dense<0.000000e+00> : vector<16xf32>
    %394 = vector.multi_reduction <add>, %393, %cst_130 [1] : vector<16x32xf32> to vector<16xf32>
    %395 = vector.shape_cast %394 : vector<16xf32> to vector<16x1xf32>
    %cst_131 = arith.constant 3.200000e+01 : f32
    %396 = vector.broadcast %cst_131 : f32 to vector<16x1xf32>
    %397 = arith.divf %395, %396 : vector<16x1xf32>
    %398 = vector.broadcast %397 : vector<16x1xf32> to vector<16x32xf32>
    %399 = arith.subf %393, %398 : vector<16x32xf32>
    %400 = arith.mulf %399, %399 : vector<16x32xf32>
    %cst_132 = arith.constant dense<0.000000e+00> : vector<16xf32>
    %401 = vector.multi_reduction <add>, %400, %cst_132 [1] : vector<16x32xf32> to vector<16xf32>
    %402 = vector.shape_cast %401 : vector<16xf32> to vector<16x1xf32>
    %cst_133 = arith.constant 0.0322580636 : f32
    %403 = vector.broadcast %cst_133 : f32 to vector<16x1xf32>
    %404 = arith.mulf %402, %403 : vector<16x1xf32>
    %405 = math.sqrt %404 : vector<16x1xf32>
    %406 = vector.broadcast %224 : vector<1x32xf32> to vector<16x32xf32>
    %407 = arith.mulf %406, %399 : vector<16x32xf32>
    %cst_134 = arith.constant 9.99999997E-7 : f32
    %408 = vector.broadcast %cst_134 : f32 to vector<16x1xf32>
    %409 = arith.addf %405, %408 : vector<16x1xf32>
    %410 = tpu.reciprocal %409 : vector<16x1xf32> -> vector<16x1xf32>
    %411 = vector.broadcast %410 : vector<16x1xf32> to vector<16x32xf32>
    %412 = arith.mulf %407, %411 : vector<16x32xf32>
    %413 = vector.broadcast %225 : vector<1x32xf32> to vector<16x32xf32>
    %414 = arith.addf %412, %413 : vector<16x32xf32>
    %cst_135 = arith.constant dense<0.000000e+00> : vector<16x512xf32>
    %415 = tpu.matmul %414, %217, %cst_135 {dimension_numbers = #tpu.dot_dimension_numbers<[1], [0], [0], [1], [0, 0, 1, 1], [], []>} : vector<16x32xf32>, vector<32x512xf32>, vector<16x512xf32> -> vector<16x512xf32>
    %416 = vector.broadcast %220 : vector<1x512xf32> to vector<16x512xf32>
    %417 = arith.addf %415, %416 : vector<16x512xf32>
    %cst_136 = arith.constant 0.000000e+00 : f32
    %418 = vector.broadcast %cst_136 : f32 to vector<16x512xf32>
    %419 = arith.maximumf %417, %418 : vector<16x512xf32>
    %cst_137 = arith.constant dense<0.000000e+00> : vector<16x32xf32>
    %420 = tpu.matmul %419, %218, %cst_137 {dimension_numbers = #tpu.dot_dimension_numbers<[1], [1], [0], [0], [0, 0, 1, 0], [], []>} : vector<16x512xf32>, vector<32x512xf32>, vector<16x32xf32> -> vector<16x32xf32>
    %421 = vector.broadcast %226 : vector<1x32xf32> to vector<16x32xf32>
    %422 = arith.addf %420, %421 : vector<16x32xf32>
    %423 = arith.addf %393, %422 : vector<16x32xf32>
    %c24 = arith.constant 24 : index
    %c0_138 = arith.constant 0 : index
    %424 = vector.load %arg2[%c24, %c0_138] : memref<32x512xf32, #tpu.memory_space<vmem>>, vector<1x32xf32>
    %c25 = arith.constant 25 : index
    %c0_139 = arith.constant 0 : index
    %425 = vector.load %arg2[%c25, %c0_139] : memref<32x512xf32, #tpu.memory_space<vmem>>, vector<1x32xf32>
    %cst_140 = arith.constant dense<0.000000e+00> : vector<16xf32>
    %426 = vector.multi_reduction <add>, %423, %cst_140 [1] : vector<16x32xf32> to vector<16xf32>
    %427 = vector.shape_cast %426 : vector<16xf32> to vector<16x1xf32>
    %cst_141 = arith.constant 3.200000e+01 : f32
    %428 = vector.broadcast %cst_141 : f32 to vector<16x1xf32>
    %429 = arith.divf %427, %428 : vector<16x1xf32>
    %430 = vector.broadcast %429 : vector<16x1xf32> to vector<16x32xf32>
    %431 = arith.subf %423, %430 : vector<16x32xf32>
    %432 = arith.mulf %431, %431 : vector<16x32xf32>
    %cst_142 = arith.constant dense<0.000000e+00> : vector<16xf32>
    %433 = vector.multi_reduction <add>, %432, %cst_142 [1] : vector<16x32xf32> to vector<16xf32>
    %434 = vector.shape_cast %433 : vector<16xf32> to vector<16x1xf32>
    %cst_143 = arith.constant 0.0322580636 : f32
    %435 = vector.broadcast %cst_143 : f32 to vector<16x1xf32>
    %436 = arith.mulf %434, %435 : vector<16x1xf32>
    %437 = math.sqrt %436 : vector<16x1xf32>
    %438 = vector.broadcast %424 : vector<1x32xf32> to vector<16x32xf32>
    %439 = arith.mulf %438, %431 : vector<16x32xf32>
    %cst_144 = arith.constant 9.99999997E-7 : f32
    %440 = vector.broadcast %cst_144 : f32 to vector<16x1xf32>
    %441 = arith.addf %437, %440 : vector<16x1xf32>
    %442 = tpu.reciprocal %441 : vector<16x1xf32> -> vector<16x1xf32>
    %443 = vector.broadcast %442 : vector<16x1xf32> to vector<16x32xf32>
    %444 = arith.mulf %439, %443 : vector<16x32xf32>
    %445 = vector.broadcast %425 : vector<1x32xf32> to vector<16x32xf32>
    %446 = arith.addf %444, %445 : vector<16x32xf32>
    %c0_145 = arith.constant 0 : index
    %c0_146 = arith.constant 0 : index
    %447 = vector.load %arg3[%c0_145, %c0_146] : memref<16x32xf32, #tpu.memory_space<vmem>>, vector<16x32xf32>
    tpu.vector_store %arg3[%c0_145, %c0_146], %446 {strides = array<i32>} : memref<16x32xf32, #tpu.memory_space<vmem>>, vector<16x32xf32>,
    return
  }
}

</mosaic_0001>

<llo_original>
// kernel: encoder_forward.1
$region0: #{encoder_forward.1}
  #allocation0 [shape = 'u32[]', space=smem, size = 0x4, offset = 0x4, fixed_abs, tag = 'smem constant byte address 0x4 - core index']
  #allocation1 [shape = 'u32[144,128]{1,0:T(1,128)}', space=vmem, size = 0x12000, scoped, tag = 'internal scratch']
  %s0 = inlined_call_operand.hbm [shape: f32[16,32], index: 0, kind: input, shape index: {}]
  %s1 = inlined_call_operand.hbm [shape: f32[256,512], index: 1, kind: input, shape index: {}]
  %s2 = inlined_call_operand.hbm [shape: f32[32,512], index: 2, kind: input, shape index: {}]
  %s3 = inlined_call_operand.hbm [shape: f32[16,32], index: 3, kind: output, shape index: {}]
  %s4 = sld [smem:[#allocation0]]
  $region34: #{encoder_forward.1} parent=0
    _
  %s6 = ssub.s32 1, %s4
  %s7 = scalar_select 0, %s6, %s4
  $region1: #{encoder_forward.1} parent=0
    #allocation2 [shape = 'u8[8192]{0}', space=vmem, size = 0x2000, scoped, tag = 'input window, operand 0, single buffered']
    #allocation3 [shape = 's32[1]{0}', space=sflag, size = 0x4, scoped, tag = 'scoped memory for encoder_forward.1']
    #allocation4 [shape = 's32[1]{0}', space=sflag, size = 0x4, scoped, tag = 'scoped memory for encoder_forward.1']
    #allocation5 [shape = 'u8[524288]{0}', space=vmem, size = 0x80000, scoped, tag = 'input window, operand 1, single buffered']
    #allocation6 [shape = 's32[1]{0}', space=sflag, size = 0x4, scoped, tag = 'scoped memory for encoder_forward.1']
    #allocation7 [shape = 'u8[65536]{0}', space=vmem, size = 0x10000, scoped, tag = 'input window, operand 2, single buffered']
    #allocation8 [shape = 'u8[8192]{0}', space=vmem, size = 0x2000, scoped, tag = 'output window, operand 0, single buffered']
    %8 = vsyncpa [#allocation3], 0
    %9 = vsyncpa [#allocation6], 0
    %10 = vsyncpa [#allocation4], 0
    // Predicated region
    $region2: #{encoder_forward.1} parent=1 // pred_check
      _
    $region3: #{encoder_forward.1} parent=1 // pred_check_branch
      %12 = sbr.rel (0) target = $region5
    $region4: #{encoder_forward.1} parent=1 // pred_region
      %s14 = ssub.s32 256, 256
      %15 = vsyncadd [#allocation3], %s14
      %s16 = sshll.u32 [#allocation2], 4
      %s17 = int_to_ptr.vmem [resolvable:$true] %s16
      %22 = dma.hbm_to_vmem [thread:$0]  %s0, 256, %s17, [#allocation3], 128, 128, 8
    $region5: #{encoder_forward.1} parent=1 // pred_fallthru
      _
    // Predicated region
    $region6: #{encoder_forward.1} parent=1 // pred_check
      _
    $region7: #{encoder_forward.1} parent=1 // pred_check_branch
      %24 = sbr.rel (0) target = $region9
    $region8: #{encoder_forward.1} parent=1 // pred_region
      %s26 = ssub.s32 16384, 16384
      %27 = vsyncadd [#allocation6], %s26
      %s28 = sshll.u32 [#allocation5], 4
      %s29 = int_to_ptr.vmem [resolvable:$true] %s28
      %34 = dma.hbm_to_vmem [thread:$0]  %s1, 16384, %s29, [#allocation6], 512, 512, 32
    $region9: #{encoder_forward.1} parent=1 // pred_fallthru
      _
    // Predicated region
    $region10: #{encoder_forward.1} parent=1 // pred_check
      _
    $region11: #{encoder_forward.1} parent=1 // pred_check_branch
      %36 = sbr.rel (0) target = $region13
    $region12: #{encoder_forward.1} parent=1 // pred_region
      %s38 = ssub.s32 2048, 2048
      %39 = vsyncadd [#allocation6], %s38
      %s40 = sshll.u32 [#allocation7], 4
      %s41 = int_to_ptr.vmem [resolvable:$true] %s40
      %46 = dma.hbm_to_vmem [thread:$0]  %s2, 2048, %s41, [#allocation6], 512, 512, 32
    $region13: #{encoder_forward.1} parent=1 // pred_fallthru
      _
    // Predicated region
    $region14: #{encoder_forward.1} parent=1 // pred_check
      _
    $region15: #{encoder_forward.1} parent=1 // pred_check_branch
      %48 = sbr.rel (0) target = $region17
    $region16: #{encoder_forward.1} parent=1 // pred_region
      %49 = dma.done [#allocation3], 256
    $region17: #{encoder_forward.1} parent=1 // pred_fallthru
      _
    // Predicated region
    $region18: #{encoder_forward.1} parent=1 // pred_check
      _
    $region19: #{encoder_forward.1} parent=1 // pred_check_branch
      %51 = sbr.rel (0) target = $region21
    $region20: #{encoder_forward.1} parent=1 // pred_region
      %52 = dma.done [#allocation6], 16384
    $region21: #{encoder_forward.1} parent=1 // pred_fallthru
      _
    // Predicated region
    $region22: #{encoder_forward.1} parent=1 // pred_check
      _
    $region23: #{encoder_forward.1} parent=1 // pred_check_branch
      %54 = sbr.rel (0) target = $region25
    $region24: #{encoder_forward.1} parent=1 // pred_region
      %55 = dma.done [#allocation6], 2048
    $region25: #{encoder_forward.1} parent=1 // pred_fallthru
      _
    %v56 = vld [vmem:[#allocation7] sm:$0xff]
    %v57 = vld [vmem:[#allocation2] sm:$0xff]
    %v58 = vld [vmem:[#allocation2 + $0x8] sm:$0xff]
    %v59 = vmul.f32 %v57, 5.656854
    %v60 = vmul.f32 %v58, 5.656854
    %v61 = vadd.f32 %v59, %v56
    %v62 = vadd.f32 %v60, %v56
    %v63 = vld [vmem:[#allocation5] sm:$0xff]
    %v64 = vld [vmem:[#allocation5 + $0x20] sm:$0xff]
    %v65 = vld [vmem:[#allocation5 + $0x40] sm:$0xff]
    %v66 = vld [vmem:[#allocation5 + $0x60] sm:$0xff]
    %v67 = vld [vmem:[#allocation5 + $0x80] sm:$0xff]
    %v68 = vld [vmem:[#allocation5 + $0xa0] sm:$0xff]
    %v69 = vld [vmem:[#allocation5 + $0xc0] sm:$0xff]
    %v70 = vld [vmem:[#allocation5 + $0xe0] sm:$0xff]
    %v71 = vld [vmem:[#allocation5 + $0x100] sm:$0xff]
    %v72 = vld [vmem:[#allocation5 + $0x108] sm:$0xff]
    %v73 = vld [vmem:[#allocation5 + $0x110] sm:$0xff]
    %v74 = vld [vmem:[#allocation5 + $0x118] sm:$0xff]
    %v75 = vld [vmem:[#allocation5 + $0x120] sm:$0xff]
    %v76 = vld [vmem:[#allocation5 + $0x128] sm:$0xff]
    %v77 = vld [vmem:[#allocation5 + $0x130] sm:$0xff]
    %v78 = vld [vmem:[#allocation5 + $0x138] sm:$0xff]
    %v79 = vld [vmem:[#allocation5 + $0x140] sm:$0xff]
    %v80 = vld [vmem:[#allocation5 + $0x148] sm:$0xff]
    %v81 = vld [vmem:[#allocation5 + $0x150] sm:$0xff]
    %v82 = vld [vmem:[#allocation5 + $0x158] sm:$0xff]
    %v83 = vld [vmem:[#allocation5 + $0x160] sm:$0xff]
    %v84 = vld [vmem:[#allocation5 + $0x168] sm:$0xff]
    %v85 = vld [vmem:[#allocation5 + $0x170] sm:$0xff]
    %v86 = vld [vmem:[#allocation5 + $0x178] sm:$0xff]
    %v87 = vld [vmem:[#allocation5 + $0x180] sm:$0xff]
    %v88 = vld [vmem:[#allocation5 + $0x188] sm:$0xff]
    %v89 = vld [vmem:[#allocation5 + $0x190] sm:$0xff]
    %v90 = vld [vmem:[#allocation5 + $0x198] sm:$0xff]
    %v91 = vld [vmem:[#allocation5 + $0x1a0] sm:$0xff]
    %v92 = vld [vmem:[#allocation5 + $0x1a8] sm:$0xff]
    %v93 = vld [vmem:[#allocation5 + $0x1b0] sm:$0xff]
    %v94 = vld [vmem:[#allocation5 + $0x1b8] sm:$0xff]
    %v95 = vld [vmem:[#allocation5 + $0x1c0] sm:$0xff]
    %v96 = vld [vmem:[#allocation5 + $0x1c8] sm:$0xff]
    %v97 = vld [vmem:[#allocation5 + $0x1d0] sm:$0xff]
    %v98 = vld [vmem:[#allocation5 + $0x1d8] sm:$0xff]
    %v99 = vld [vmem:[#allocation5 + $0x1e0] sm:$0xff]
    %v100 = vld [vmem:[#allocation5 + $0x1e8] sm:$0xff]
    %v101 = vld [vmem:[#allocation5 + $0x1f0] sm:$0xff]
    %v102 = vld [vmem:[#allocation5 + $0x1f8] sm:$0xff]
    %v103 = vld [vmem:[#allocation7 + $0x20] ss:$0 sm:$0xff]
    %s104 = scalar_lea.vmem [#allocation7], 33
    %v105 = vld [vmem:[%s104] ss:$8 sm:$0xf]
    %v106 = vld [vmem:[#allocation7 + $0x22] ss:$0 sm:$0xff]
    %v107 = vld [vmem:[#allocation7 + $0x23] ss:$0 sm:$0xff]
    %v108 = vld [vmem:[#allocation7 + $0x24] ss:$0 sm:$0xff]
    %v109 = vld [vmem:[#allocation7 + $0x25] ss:$0 sm:$0xff]
    %v110 = vld [vmem:[#allocation7 + $0x26] ss:$0 sm:$0xff]
    %v111 = vld [vmem:[#allocation7 + $0x27] ss:$0 sm:$0xff]
    %vm112 = vcmask 261120
    %v113 = vsel %vm112, %v61, 0.0
    %114 = vadd.xlane.f32.xlu0 %v113
    %v115 = vpop.xlane.xlu0 %114
    %v116 = vsel %vm112, %v62, 0.0
    %117 = vadd.xlane.f32.xlu0 %v116
    %v118 = vpop.xlane.xlu0 %117
    %v119 = vrcp.pop 32.0
    %v120 = vmul.f32 %v115, %v119
    %v121 = vmul.f32 %v118, %v119
    %v122 = vsub.f32 %v61, %v120
    %v123 = vsub.f32 %v62, %v121
    %v124 = vmul.f32 %v122, %v122
    %v125 = vmul.f32 %v123, %v123
    %v126 = vsel %vm112, %v124, 0.0
    %127 = vadd.xlane.f32.xlu0 %v126
    %v128 = vpop.xlane.xlu0 %127
    %v129 = vsel %vm112, %v125, 0.0
    %130 = vadd.xlane.f32.xlu0 %v129
    %v131 = vpop.xlane.xlu0 %130
    %v132 = vmul.f32 %v128, 0.032258064
    %v133 = vmul.f32 %v131, 0.032258064
    %v134 = vrsqrt.pop %v132
    %v135 = vmul.f32 %v132, %v134
    %vm136 = vcmp.eq.f32.partialorder %v132, inf
    %v137 = vsel %vm136, %v132, %v135
    %vm138 = vcmp.eq.f32.partialorder %v132, 0.0
    %v139 = vand.u32 %v132, 2147483648
    %v140 = vsel %vm138, %v139, %v137
    %v141 = vrsqrt.pop %v133
    %v142 = vmul.f32 %v133, %v141
    %vm143 = vcmp.eq.f32.partialorder %v133, inf
    %v144 = vsel %vm143, %v133, %v142
    %vm145 = vcmp.eq.f32.partialorder %v133, 0.0
    %v146 = vand.u32 %v133, 2147483648
    %v147 = vsel %vm145, %v146, %v144
    %v148 = vmul.f32 %v106, %v122
    %v149 = vmul.f32 %v106, %v123
    %v150 = vadd.f32 %v140, 1e-06
    %v151 = vadd.f32 %v147, 1e-06
    %v152 = vrcp.pop %v150
    %v153 = vrcp.pop %v151
    %v154 = vmul.f32 %v148, %v152
    %v155 = vmul.f32 %v149, %v153
    %v156 = vadd.f32 %v154, %v107
    %v157 = vadd.f32 %v155, %v107
    %v159 = vsel %vm112, %v156, 0
    %v162 = vsel %vm112, %v157, 0
    %164 = vmatprep.subr.mxu0 0.0
    %165 = vmatpush1.msra.mxu0 %v63
    %166 = vmatprep.subr.mxu0 0.0
    %167 = vmatpush1.msra.mxu0 %v64
    %168 = vmatprep.subr.mxu0 0.0
    %169 = vmatpush1.msra.mxu0 %v65
    %170 = vmatprep.subr.mxu0 0.0
    %171 = vmatpush1.msra.mxu0 %v66
    %172 = vmatprep.subr.mxu0 0.0
    %173 = vmatpush1.msra.mxu0 0.0
    %174 = vmatprep.subr.mxu0 0.0
    %175 = vmatpush1.msra.mxu0 0.0
    %176 = vmatprep.subr.mxu0 0.0
    %177 = vmatpush1.msra.mxu0 0.0
    %178 = vmatprep.subr.mxu0 0.0
    %179 = vmatpush1.msra.mxu0 0.0
    %180 = vmatprep.subr.mxu0 0.0
    %181 = vmatpush1.msra.mxu0 0.0
    %182 = vmatprep.subr.mxu0 0.0
    %183 = vmatpush1.msra.mxu0 0.0
    %184 = vmatprep.subr.mxu0 0.0
    %185 = vmatpush1.msra.mxu0 0.0
    %186 = vmatprep.subr.mxu0 0.0
    %187 = vmatpush1.msra.mxu0 0.0
    %188 = vmatprep.subr.mxu0 0.0
    %189 = vmatpush1.msra.mxu0 0.0
    %190 = vmatprep.subr.mxu0 0.0
    %191 = vmatpush1.msra.mxu0 0.0
    %192 = vmatprep.subr.mxu0 0.0
    %193 = vmatpush1.msra.mxu0 0.0
    %194 = vmatprep.subr.mxu0 0.0
    %195 = vmatpush1.msra.mxu0 0.0
    %196 = vmatprep.subr.mxu0 0.0
    %197 = vmatpush1.msra.mxu0 0.0
    %198 = vmatprep.subr.mxu0 0.0
    %199 = vmatpush1.msra.mxu0 0.0
    %200 = vmatprep.subr.mxu0 0.0
    %201 = vmatpush1.msra.mxu0 0.0
    %202 = vmatprep.subr.mxu0 0.0
    %203 = vmatpush1.msra.mxu0 0.0
    %204 = vmatprep.subr.mxu0 0.0
    %205 = vmatpush1.msra.mxu0 0.0
    %206 = vmatprep.subr.mxu0 0.0
    %207 = vmatpush1.msra.mxu0 0.0
    %208 = vmatprep.subr.mxu0 0.0
    %209 = vmatpush1.msra.mxu0 0.0
    %210 = vmatprep.subr.mxu0 0.0
    %211 = vmatpush1.msra.mxu0 0.0
    %212 = vmatprep.subr.mxu0 0.0
    %213 = vmatpush1.msra.mxu0 0.0
    %214 = vmatprep.subr.mxu0 0.0
    %215 = vmatpush1.msra.mxu0 0.0
    %216 = vmatprep.subr.mxu0 0.0
    %217 = vmatpush1.msra.mxu0 0.0
    %218 = vmatprep.subr.mxu0 0.0
    %219 = vmatpush1.msra.mxu0 0.0
    %220 = vmatprep.subr.mxu0 0.0
    %221 = vmatpush1.msra.mxu0 0.0
    %222 = vmatprep.subr.mxu0 0.0
    %223 = vmatpush1.msra.mxu0 0.0
    %224 = vmatprep.subr.mxu0 0.0
    %225 = vmatpush1.msra.mxu0 0.0
    %226 = vmatprep.subr.mxu0 0.0
    %227 = vmatpush1.msra.mxu0 0.0
    %228 = vmatprep.mubr.f32.mxu0 0.0
    %229 = vmatmul.mubr.f32.gmra.mrb[0].mxu0 %v159
    %v230 = vpop.f32.mrb[0].mxu0
    %v231 = vadd.f32 %v103, %v230
    %v232 = vpop.f32.mrb[0].mxu0
    %233 = vmatprep.mubr.f32.mxu0 0.0
    %234 = vmatmul.mubr.f32.gmra.mrb[0].mxu0 %v162
    %v235 = vpop.f32.mrb[0].mxu0
    %v236 = vadd.f32 %v103, %v235
    %v237 = vpop.f32.mrb[0].mxu0
    %238 = vdwg.mxu0
    %240 = vrot.lane.b32.xlu0 %v231, 96
    %v241 = vpop.permute.xlu0 %240
    %vm242 = vcmask 64512
    %v243 = vsel %vm242, %v231, 0
    %v245 = vsel %vm242, %v241, 0
    %247 = vmatprep.subr.mxu0 0.0
    %248 = vmatpush1.xpose.msra.mxu0 %v245
    %249 = vmatprep.subr.mxu0 0.0
    %250 = vmatpush1.xpose.msra.mxu0 0.0
    %251 = vmatprep.subr.mxu0 0.0
    %252 = vmatpush1.xpose.msra.mxu0 0.0
    %253 = vmatprep.subr.mxu0 0.0
    %254 = vmatpush1.xpose.msra.mxu0 0.0
    %255 = vmatprep.subr.mxu0 0.0
    %256 = vmatpush1.xpose.msra.mxu0 0.0
    %257 = vmatprep.subr.mxu0 0.0
    %258 = vmatpush1.xpose.msra.mxu0 0.0
    %259 = vmatprep.subr.mxu0 0.0
    %260 = vmatpush1.xpose.msra.mxu0 0.0
    %261 = vmatprep.subr.mxu0 0.0
    %262 = vmatpush1.xpose.msra.mxu0 0.0
    %263 = vmatprep.subr.mxu0 0.0
    %264 = vmatpush1.xpose.msra.mxu0 0.0
    %265 = vmatprep.subr.mxu0 0.0
    %266 = vmatpush1.xpose.msra.mxu0 0.0
    %267 = vmatprep.subr.mxu0 0.0
    %268 = vmatpush1.xpose.msra.mxu0 0.0
    %269 = vmatprep.subr.mxu0 0.0
    %270 = vmatpush1.xpose.msra.mxu0 0.0
    %271 = vmatprep.subr.mxu0 0.0
    %272 = vmatpush1.xpose.msra.mxu0 0.0
    %273 = vmatprep.subr.mxu0 0.0
    %274 = vmatpush1.xpose.msra.mxu0 0.0
    %275 = vmatprep.subr.mxu0 0.0
    %276 = vmatpush1.xpose.msra.mxu0 0.0
    %277 = vmatprep.subr.mxu0 0.0
    %278 = vmatpush1.xpose.msra.mxu0 0.0
    %279 = vmatprep.subr.mxu0 0.0
    %280 = vmatpush1.xpose.msra.mxu0 0.0
    %281 = vmatprep.subr.mxu0 0.0
    %282 = vmatpush1.xpose.msra.mxu0 0.0
    %283 = vmatprep.subr.mxu0 0.0
    %284 = vmatpush1.xpose.msra.mxu0 0.0
    %285 = vmatprep.subr.mxu0 0.0
    %286 = vmatpush1.xpose.msra.mxu0 0.0
    %287 = vmatprep.subr.mxu0 0.0
    %288 = vmatpush1.xpose.msra.mxu0 0.0
    %289 = vmatprep.subr.mxu0 0.0
    %290 = vmatpush1.xpose.msra.mxu0 0.0
    %291 = vmatprep.subr.mxu0 0.0
    %292 = vmatpush1.xpose.msra.mxu0 0.0
    %293 = vmatprep.subr.mxu0 0.0
    %294 = vmatpush1.xpose.msra.mxu0 0.0
    %295 = vmatprep.subr.mxu0 0.0
    %296 = vmatpush1.xpose.msra.mxu0 0.0
    %297 = vmatprep.subr.mxu0 0.0
    %298 = vmatpush1.xpose.msra.mxu0 0.0
    %299 = vmatprep.subr.mxu0 0.0
    %300 = vmatpush1.xpose.msra.mxu0 0.0
    %301 = vmatprep.subr.mxu0 0.0
    %302 = vmatpush1.xpose.msra.mxu0 0.0
    %303 = vmatprep.subr.mxu0 0.0
    %304 = vmatpush1.xpose.msra.mxu0 0.0
    %305 = vmatprep.subr.mxu0 0.0
    %306 = vmatpush1.xpose.msra.mxu0 0.0
    %307 = vmatprep.subr.mxu0 0.0
    %308 = vmatpush1.xpose.msra.mxu0 0.0
    %309 = vmatprep.subr.mxu0 0.0
    %310 = vmatpush1.xpose.msra.mxu0 0.0
    %311 = vmatprep.mubr.f32.mxu0 0.0
    %312 = vmatmul.mubr.f32.gmra.mrb[0].mxu0 %v243
    %v313 = vpop.f32.mrb[0].mxu0
    %v314 = vadd.f32 0.0, %v313
    %v315 = vpop.f32.mrb[0].mxu0
    %316 = vdwg.mxu0
    %v317 = vmul.f32 %v314, 0.35355338
    %v318 = vsel %vm242, %v317, -inf
    %319 = vmax.xlane.f32.xlu0 %v318
    %v320 = vpop.xlane.xlu0 %319
    %v321 = vsub.f32 %v317, %v320
    %v322 = vmul.f32 %v321, 1.442695
    %v323 = vpow.pop %v322
    %v324 = vsel %vm242, %v323, 0.0
    %325 = vadd.xlane.f32.xlu0 %v324
    %v326 = vpop.xlane.xlu0 %325
    %v327 = vrcp.pop %v326
    %v328 = vmul.f32 %v323, %v327
    %329 = vrot.lane.b32.xlu0 %v231, 64
    %v330 = vpop.permute.xlu0 %329
    %v333 = vsel %vm242, %v328, 0
    %335 = vmatprep.subr.mxu0 0.0
    %336 = vmatpush1.msra.mxu0 %v330
    %337 = vmatprep.subr.mxu0 0.0
    %338 = vmatpush1.msra.mxu0 0.0
    %339 = vmatprep.subr.mxu0 0.0
    %340 = vmatpush1.msra.mxu0 0.0
    %341 = vmatprep.subr.mxu0 0.0
    %342 = vmatpush1.msra.mxu0 0.0
    %343 = vmatprep.subr.mxu0 0.0
    %344 = vmatpush1.msra.mxu0 0.0
    %345 = vmatprep.subr.mxu0 0.0
    %346 = vmatpush1.msra.mxu0 0.0
    %347 = vmatprep.subr.mxu0 0.0
    %348 = vmatpush1.msra.mxu0 0.0
    %349 = vmatprep.subr.mxu0 0.0
    %350 = vmatpush1.msra.mxu0 0.0
    %351 = vmatprep.subr.mxu0 0.0
    %352 = vmatpush1.msra.mxu0 0.0
    %353 = vmatprep.subr.mxu0 0.0
    %354 = vmatpush1.msra.mxu0 0.0
    %355 = vmatprep.subr.mxu0 0.0
    %356 = vmatpush1.msra.mxu0 0.0
    %357 = vmatprep.subr.mxu0 0.0
    %358 = vmatpush1.msra.mxu0 0.0
    %359 = vmatprep.subr.mxu0 0.0
    %360 = vmatpush1.msra.mxu0 0.0
    %361 = vmatprep.subr.mxu0 0.0
    %362 = vmatpush1.msra.mxu0 0.0
    %363 = vmatprep.subr.mxu0 0.0
    %364 = vmatpush1.msra.mxu0 0.0
    %365 = vmatprep.subr.mxu0 0.0
    %366 = vmatpush1.msra.mxu0 0.0
    %367 = vmatprep.subr.mxu0 0.0
    %368 = vmatpush1.msra.mxu0 0.0
    %369 = vmatprep.subr.mxu0 0.0
    %370 = vmatpush1.msra.mxu0 0.0
    %371 = vmatprep.subr.mxu0 0.0
    %372 = vmatpush1.msra.mxu0 0.0
    %373 = vmatprep.subr.mxu0 0.0
    %374 = vmatpush1.msra.mxu0 0.0
    %375 = vmatprep.subr.mxu0 0.0
    %376 = vmatpush1.msra.mxu0 0.0
    %377 = vmatprep.subr.mxu0 0.0
    %378 = vmatpush1.msra.mxu0 0.0
    %379 = vmatprep.subr.mxu0 0.0
    %380 = vmatpush1.msra.mxu0 0.0
    %381 = vmatprep.subr.mxu0 0.0
    %382 = vmatpush1.msra.mxu0 0.0
    %383 = vmatprep.subr.mxu0 0.0
    %384 = vmatpush1.msra.mxu0 0.0
    %385 = vmatprep.subr.mxu0 0.0
    %386 = vmatpush1.msra.mxu0 0.0
    %387 = vmatprep.subr.mxu0 0.0
    %388 = vmatpush1.msra.mxu0 0.0
    %389 = vmatprep.subr.mxu0 0.0
    %390 = vmatpush1.msra.mxu0 0.0
    %391 = vmatprep.subr.mxu0 0.0
    %392 = vmatpush1.msra.mxu0 0.0
    %393 = vmatprep.subr.mxu0 0.0
    %394 = vmatpush1.msra.mxu0 0.0
    %395 = vmatprep.subr.mxu0 0.0
    %396 = vmatpush1.msra.mxu0 0.0
    %397 = vmatprep.subr.mxu0 0.0
    %398 = vmatpush1.msra.mxu0 0.0
    %399 = vmatprep.mubr.f32.mxu0 0.0
    %400 = vmatmul.mubr.f32.gmra.mrb[0].mxu0 %v333
    %v401 = vpop.f32.mrb[0].mxu0
    %v402 = vadd.f32 0.0, %v401
    %v403 = vpop.f32.mrb[0].mxu0
    %404 = vdwg.mxu0
    %405 = vrot.lane.b32.xlu0 %v231, 120
    %v406 = vpop.permute.xlu0 %405
    %407 = vrot.lane.b32.xlu0 %v231, 88
    %v408 = vpop.permute.xlu0 %407
    %v409 = vsel %vm242, %v406, 0
    %v411 = vsel %vm242, %v408, 0
    %413 = vmatprep.subr.mxu0 0.0
    %414 = vmatpush1.xpose.msra.mxu0 %v411
    %415 = vmatprep.subr.mxu0 0.0
    %416 = vmatpush1.xpose.msra.mxu0 0.0
    %417 = vmatprep.subr.mxu0 0.0
    %418 = vmatpush1.xpose.msra.mxu0 0.0
    %419 = vmatprep.subr.mxu0 0.0
    %420 = vmatpush1.xpose.msra.mxu0 0.0
    %421 = vmatprep.subr.mxu0 0.0
    %422 = vmatpush1.xpose.msra.mxu0 0.0
    %423 = vmatprep.subr.mxu0 0.0
    %424 = vmatpush1.xpose.msra.mxu0 0.0
    %425 = vmatprep.subr.mxu0 0.0
    %426 = vmatpush1.xpose.msra.mxu0 0.0
    %427 = vmatprep.subr.mxu0 0.0
    %428 = vmatpush1.xpose.msra.mxu0 0.0
    %429 = vmatprep.subr.mxu0 0.0
    %430 = vmatpush1.xpose.msra.mxu0 0.0
    %431 = vmatprep.subr.mxu0 0.0
    %432 = vmatpush1.xpose.msra.mxu0 0.0
    %433 = vmatprep.subr.mxu0 0.0
    %434 = vmatpush1.xpose.msra.mxu0 0.0
    %435 = vmatprep.subr.mxu0 0.0
    %436 = vmatpush1.xpose.msra.mxu0 0.0
    %437 = vmatprep.subr.mxu0 0.0
    %438 = vmatpush1.xpose.msra.mxu0 0.0
    %439 = vmatprep.subr.mxu0 0.0
    %440 = vmatpush1.xpose.msra.mxu0 0.0
    %441 = vmatprep.subr.mxu0 0.0
    %442 = vmatpush1.xpose.msra.mxu0 0.0
    %443 = vmatprep.subr.mxu0 0.0
    %444 = vmatpush1.xpose.msra.mxu0 0.0
    %445 = vmatprep.subr.mxu0 0.0
    %446 = vmatpush1.xpose.msra.mxu0 0.0
    %447 = vmatprep.subr.mxu0 0.0
    %448 = vmatpush1.xpose.msra.mxu0 0.0
    %449 = vmatprep.subr.mxu0 0.0
    %450 = vmatpush1.xpose.msra.mxu0 0.0
    %451 = vmatprep.subr.mxu0 0.0
    %452 = vmatpush1.xpose.msra.mxu0 0.0
    %453 = vmatprep.subr.mxu0 0.0
    %454 = vmatpush1.xpose.msra.mxu0 0.0
    %455 = vmatprep.subr.mxu0 0.0
    %456 = vmatpush1.xpose.msra.mxu0 0.0
    %457 = vmatprep.subr.mxu0 0.0
    %458 = vmatpush1.xpose.msra.mxu0 0.0
    %459 = vmatprep.subr.mxu0 0.0
    %460 = vmatpush1.xpose.msra.mxu0 0.0
    %461 = vmatprep.subr.mxu0 0.0
    %462 = vmatpush1.xpose.msra.mxu0 0.0
    %463 = vmatprep.subr.mxu0 0.0
    %464 = vmatpush1.xpose.msra.mxu0 0.0
    %465 = vmatprep.subr.mxu0 0.0
    %466 = vmatpush1.xpose.msra.mxu0 0.0
    %467 = vmatprep.subr.mxu0 0.0
    %468 = vmatpush1.xpose.msra.mxu0 0.0
    %469 = vmatprep.subr.mxu0 0.0
    %470 = vmatpush1.xpose.msra.mxu0 0.0
    %471 = vmatprep.subr.mxu0 0.0
    %472 = vmatpush1.xpose.msra.mxu0 0.0
    %473 = vmatprep.subr.mxu0 0.0
    %474 = vmatpush1.xpose.msra.mxu0 0.0
    %475 = vmatprep.subr.mxu0 0.0
    %476 = vmatpush1.xpose.msra.mxu0 0.0
    %477 = vmatprep.mubr.f32.mxu0 0.0
    %478 = vmatmul.mubr.f32.gmra.mrb[0].mxu0 %v409
    %v479 = vpop.f32.mrb[0].mxu0
    %v480 = vadd.f32 0.0, %v479
    %v481 = vpop.f32.mrb[0].mxu0
    %482 = vdwg.mxu0
    %v483 = vmul.f32 %v480, 0.35355338
    %v484 = vsel %vm242, %v483, -inf
    %485 = vmax.xlane.f32.xlu0 %v484
    %v486 = vpop.xlane.xlu0 %485
    %v487 = vsub.f32 %v483, %v486
    %v488 = vmul.f32 %v487, 1.442695
    %v489 = vpow.pop %v488
    %v490 = vsel %vm242, %v489, 0.0
    %491 = vadd.xlane.f32.xlu0 %v490
    %v492 = vpop.xlane.xlu0 %491
    %v493 = vrcp.pop %v492
    %v494 = vmul.f32 %v489, %v493
    %495 = vrot.lane.b32.xlu0 %v231, 56
    %v496 = vpop.permute.xlu0 %495
    %v499 = vsel %vm242, %v494, 0
    %501 = vmatprep.subr.mxu0 0.0
    %502 = vmatpush1.msra.mxu0 %v496
    %503 = vmatprep.subr.mxu0 0.0
    %504 = vmatpush1.msra.mxu0 0.0
    %505 = vmatprep.subr.mxu0 0.0
    %506 = vmatpush1.msra.mxu0 0.0
    %507 = vmatprep.subr.mxu0 0.0
    %508 = vmatpush1.msra.mxu0 0.0
    %509 = vmatprep.subr.mxu0 0.0
    %510 = vmatpush1.msra.mxu0 0.0
    %511 = vmatprep.subr.mxu0 0.0
    %512 = vmatpush1.msra.mxu0 0.0
    %513 = vmatprep.subr.mxu0 0.0
    %514 = vmatpush1.msra.mxu0 0.0
    %515 = vmatprep.subr.mxu0 0.0
    %516 = vmatpush1.msra.mxu0 0.0
    %517 = vmatprep.subr.mxu0 0.0
    %518 = vmatpush1.msra.mxu0 0.0
    %519 = vmatprep.subr.mxu0 0.0
    %520 = vmatpush1.msra.mxu0 0.0
    %521 = vmatprep.subr.mxu0 0.0
    %522 = vmatpush1.msra.mxu0 0.0
    %523 = vmatprep.subr.mxu0 0.0
    %524 = vmatpush1.msra.mxu0 0.0
    %525 = vmatprep.subr.mxu0 0.0
    %526 = vmatpush1.msra.mxu0 0.0
    %527 = vmatprep.subr.mxu0 0.0
    %528 = vmatpush1.msra.mxu0 0.0
    %529 = vmatprep.subr.mxu0 0.0
    %530 = vmatpush1.msra.mxu0 0.0
    %531 = vmatprep.subr.mxu0 0.0
    %532 = vmatpush1.msra.mxu0 0.0
    %533 = vmatprep.subr.mxu0 0.0
    %534 = vmatpush1.msra.mxu0 0.0
    %535 = vmatprep.subr.mxu0 0.0
    %536 = vmatpush1.msra.mxu0 0.0
    %537 = vmatprep.subr.mxu0 0.0
    %538 = vmatpush1.msra.mxu0 0.0
    %539 = vmatprep.subr.mxu0 0.0
    %540 = vmatpush1.msra.mxu0 0.0
    %541 = vmatprep.subr.mxu0 0.0
    %542 = vmatpush1.msra.mxu0 0.0
    %543 = vmatprep.subr.mxu0 0.0
    %544 = vmatpush1.msra.mxu0 0.0
    %545 = vmatprep.subr.mxu0 0.0
    %546 = vmatpush1.msra.mxu0 0.0
    %547 = vmatprep.subr.mxu0 0.0
    %548 = vmatpush1.msra.mxu0 0.0
    %549 = vmatprep.subr.mxu0 0.0
    %550 = vmatpush1.msra.mxu0 0.0
    %551 = vmatprep.subr.mxu0 0.0
    %552 = vmatpush1.msra.mxu0 0.0
    %553 = vmatprep.subr.mxu0 0.0
    %554 = vmatpush1.msra.mxu0 0.0
    %555 = vmatprep.subr.mxu0 0.0
    %556 = vmatpush1.msra.mxu0 0.0
    %557 = vmatprep.subr.mxu0 0.0
    %558 = vmatpush1.msra.mxu0 0.0
    %559 = vmatprep.subr.mxu0 0.0
    %560 = vmatpush1.msra.mxu0 0.0
    %561 = vmatprep.subr.mxu0 0.0
    %562 = vmatpush1.msra.mxu0 0.0
    %563 = vmatprep.subr.mxu0 0.0
    %564 = vmatpush1.msra.mxu0 0.0
    %565 = vmatprep.mubr.f32.mxu0 0.0
    %566 = vmatmul.mubr.f32.gmra.mrb[0].mxu0 %v499
    %v567 = vpop.f32.mrb[0].mxu0
    %v568 = vadd.f32 0.0, %v567
    %v569 = vpop.f32.mrb[0].mxu0
    %570 = vdwg.mxu0
    %571 = vrot.lane.b32.xlu0 %v231, 112
    %v572 = vpop.permute.xlu0 %571
    %573 = vrot.lane.b32.xlu0 %v231, 80
    %v574 = vpop.permute.xlu0 %573
    %v575 = vsel %vm242, %v572, 0
    %v577 = vsel %vm242, %v574, 0
    %579 = vmatprep.subr.mxu0 0.0
    %580 = vmatpush1.xpose.msra.mxu0 %v577
    %581 = vmatprep.subr.mxu0 0.0
    %582 = vmatpush1.xpose.msra.mxu0 0.0
    %583 = vmatprep.subr.mxu0 0.0
    %584 = vmatpush1.xpose.msra.mxu0 0.0
    %585 = vmatprep.subr.mxu0 0.0
    %586 = vmatpush1.xpose.msra.mxu0 0.0
    %587 = vmatprep.subr.mxu0 0.0
    %588 = vmatpush1.xpose.msra.mxu0 0.0
    %589 = vmatprep.subr.mxu0 0.0
    %590 = vmatpush1.xpose.msra.mxu0 0.0
    %591 = vmatprep.subr.mxu0 0.0
    %592 = vmatpush1.xpose.msra.mxu0 0.0
    %593 = vmatprep.subr.mxu0 0.0
    %594 = vmatpush1.xpose.msra.mxu0 0.0
    %595 = vmatprep.subr.mxu0 0.0
    %596 = vmatpush1.xpose.msra.mxu0 0.0
    %597 = vmatprep.subr.mxu0 0.0
    %598 = vmatpush1.xpose.msra.mxu0 0.0
    %599 = vmatprep.subr.mxu0 0.0
    %600 = vmatpush1.xpose.msra.mxu0 0.0
    %601 = vmatprep.subr.mxu0 0.0
    %602 = vmatpush1.xpose.msra.mxu0 0.0
    %603 = vmatprep.subr.mxu0 0.0
    %604 = vmatpush1.xpose.msra.mxu0 0.0
    %605 = vmatprep.subr.mxu0 0.0
    %606 = vmatpush1.xpose.msra.mxu0 0.0
    %607 = vmatprep.subr.mxu0 0.0
    %608 = vmatpush1.xpose.msra.mxu0 0.0
    %609 = vmatprep.subr.mxu0 0.0
    %610 = vmatpush1.xpose.msra.mxu0 0.0
    %611 = vmatprep.subr.mxu0 0.0
    %612 = vmatpush1.xpose.msra.mxu0 0.0
    %613 = vmatprep.subr.mxu0 0.0
    %614 = vmatpush1.xpose.msra.mxu0 0.0
    %615 = vmatprep.subr.mxu0 0.0
    %616 = vmatpush1.xpose.msra.mxu0 0.0
    %617 = vmatprep.subr.mxu0 0.0
    %618 = vmatpush1.xpose.msra.mxu0 0.0
    %619 = vmatprep.subr.mxu0 0.0
    %620 = vmatpush1.xpose.msra.mxu0 0.0
    %621 = vmatprep.subr.mxu0 0.0
    %622 = vmatpush1.xpose.msra.mxu0 0.0
    %623 = vmatprep.subr.mxu0 0.0
    %624 = vmatpush1.xpose.msra.mxu0 0.0
    %625 = vmatprep.subr.mxu0 0.0
    %626 = vmatpush1.xpose.msra.mxu0 0.0
    %627 = vmatprep.subr.mxu0 0.0
    %628 = vmatpush1.xpose.msra.mxu0 0.0
    %629 = vmatprep.subr.mxu0 0.0
    %630 = vmatpush1.xpose.msra.mxu0 0.0
    %631 = vmatprep.subr.mxu0 0.0
    %632 = vmatpush1.xpose.msra.mxu0 0.0
    %633 = vmatprep.subr.mxu0 0.0
    %634 = vmatpush1.xpose.msra.mxu0 0.0
    %635 = vmatprep.subr.mxu0 0.0
    %636 = vmatpush1.xpose.msra.mxu0 0.0
    %637 = vmatprep.subr.mxu0 0.0
    %638 = vmatpush1.xpose.msra.mxu0 0.0
    %639 = vmatprep.subr.mxu0 0.0
    %640 = vmatpush1.xpose.msra.mxu0 0.0
    %641 = vmatprep.subr.mxu0 0.0
    %642 = vmatpush1.xpose.msra.mxu0 0.0
    %643 = vmatprep.mubr.f32.mxu0 0.0
    %644 = vmatmul.mubr.f32.gmra.mrb[0].mxu0 %v575
    %v645 = vpop.f32.mrb[0].mxu0
    %v646 = vadd.f32 0.0, %v645
    %v647 = vpop.f32.mrb[0].mxu0
    %648 = vdwg.mxu0
    %v649 = vmul.f32 %v646, 0.35355338
    %v650 = vsel %vm242, %v649, -inf
    %651 = vmax.xlane.f32.xlu0 %v650
    %v652 = vpop.xlane.xlu0 %651
    %v653 = vsub.f32 %v649, %v652
    %v654 = vmul.f32 %v653, 1.442695
    %v655 = vpow.pop %v654
    %v656 = vsel %vm242, %v655, 0.0
    %657 = vadd.xlane.f32.xlu0 %v656
    %v658 = vpop.xlane.xlu0 %657
    %v659 = vrcp.pop %v658
    %v660 = vmul.f32 %v655, %v659
    %661 = vrot.lane.b32.xlu0 %v231, 48
    %v662 = vpop.permute.xlu0 %661
    %v665 = vsel %vm242, %v660, 0
    %667 = vmatprep.subr.mxu0 0.0
    %668 = vmatpush1.msra.mxu0 %v662
    %669 = vmatprep.subr.mxu0 0.0
    %670 = vmatpush1.msra.mxu0 0.0
    %671 = vmatprep.subr.mxu0 0.0
    %672 = vmatpush1.msra.mxu0 0.0
    %673 = vmatprep.subr.mxu0 0.0
    %674 = vmatpush1.msra.mxu0 0.0
    %675 = vmatprep.subr.mxu0 0.0
    %676 = vmatpush1.msra.mxu0 0.0
    %677 = vmatprep.subr.mxu0 0.0
    %678 = vmatpush1.msra.mxu0 0.0
    %679 = vmatprep.subr.mxu0 0.0
    %680 = vmatpush1.msra.mxu0 0.0
    %681 = vmatprep.subr.mxu0 0.0
    %682 = vmatpush1.msra.mxu0 0.0
    %683 = vmatprep.subr.mxu0 0.0
    %684 = vmatpush1.msra.mxu0 0.0
    %685 = vmatprep.subr.mxu0 0.0
    %686 = vmatpush1.msra.mxu0 0.0
    %687 = vmatprep.subr.mxu0 0.0
    %688 = vmatpush1.msra.mxu0 0.0
    %689 = vmatprep.subr.mxu0 0.0
    %690 = vmatpush1.msra.mxu0 0.0
    %691 = vmatprep.subr.mxu0 0.0
    %692 = vmatpush1.msra.mxu0 0.0
    %693 = vmatprep.subr.mxu0 0.0
    %694 = vmatpush1.msra.mxu0 0.0
    %695 = vmatprep.subr.mxu0 0.0
    %696 = vmatpush1.msra.mxu0 0.0
    %697 = vmatprep.subr.mxu0 0.0
    %698 = vmatpush1.msra.mxu0 0.0
    %699 = vmatprep.subr.mxu0 0.0
    %700 = vmatpush1.msra.mxu0 0.0
    %701 = vmatprep.subr.mxu0 0.0
    %702 = vmatpush1.msra.mxu0 0.0
    %703 = vmatprep.subr.mxu0 0.0
    %704 = vmatpush1.msra.mxu0 0.0
    %705 = vmatprep.subr.mxu0 0.0
    %706 = vmatpush1.msra.mxu0 0.0
    %707 = vmatprep.subr.mxu0 0.0
    %708 = vmatpush1.msra.mxu0 0.0
    %709 = vmatprep.subr.mxu0 0.0
    %710 = vmatpush1.msra.mxu0 0.0
    %711 = vmatprep.subr.mxu0 0.0
    %712 = vmatpush1.msra.mxu0 0.0
    %713 = vmatprep.subr.mxu0 0.0
    %714 = vmatpush1.msra.mxu0 0.0
    %715 = vmatprep.subr.mxu0 0.0
    %716 = vmatpush1.msra.mxu0 0.0
    %717 = vmatprep.subr.mxu0 0.0
    %718 = vmatpush1.msra.mxu0 0.0
    %719 = vmatprep.subr.mxu0 0.0
    %720 = vmatpush1.msra.mxu0 0.0
    %721 = vmatprep.subr.mxu0 0.0
    %722 = vmatpush1.msra.mxu0 0.0
    %723 = vmatprep.subr.mxu0 0.0
    %724 = vmatpush1.msra.mxu0 0.0
    %725 = vmatprep.subr.mxu0 0.0
    %726 = vmatpush1.msra.mxu0 0.0
    %727 = vmatprep.subr.mxu0 0.0
    %728 = vmatpush1.msra.mxu0 0.0
    %729 = vmatprep.subr.mxu0 0.0
    %730 = vmatpush1.msra.mxu0 0.0
    %731 = vmatprep.mubr.f32.mxu0 0.0
    %732 = vmatmul.mubr.f32.gmra.mrb[0].mxu0 %v665
    %v733 = vpop.f32.mrb[0].mxu0
    %v734 = vadd.f32 0.0, %v733
    %v735 = vpop.f32.mrb[0].mxu0
    %736 = vdwg.mxu0
    %737 = vrot.lane.b32.xlu0 %v231, 104
    %v738 = vpop.permute.xlu0 %737
    %739 = vrot.lane.b32.xlu0 %v231, 72
    %v740 = vpop.permute.xlu0 %739
    %v741 = vsel %vm242, %v738, 0
    %v743 = vsel %vm242, %v740, 0
    %745 = vmatprep.subr.mxu0 0.0
    %746 = vmatpush1.xpose.msra.mxu0 %v743
    %747 = vmatprep.subr.mxu0 0.0
    %748 = vmatpush1.xpose.msra.mxu0 0.0
    %749 = vmatprep.subr.mxu0 0.0
    %750 = vmatpush1.xpose.msra.mxu0 0.0
    %751 = vmatprep.subr.mxu0 0.0
    %752 = vmatpush1.xpose.msra.mxu0 0.0
    %753 = vmatprep.subr.mxu0 0.0
    %754 = vmatpush1.xpose.msra.mxu0 0.0
    %755 = vmatprep.subr.mxu0 0.0
    %756 = vmatpush1.xpose.msra.mxu0 0.0
    %757 = vmatprep.subr.mxu0 0.0
    %758 = vmatpush1.xpose.msra.mxu0 0.0
    %759 = vmatprep.subr.mxu0 0.0
    %760 = vmatpush1.xpose.msra.mxu0 0.0
    %761 = vmatprep.subr.mxu0 0.0
    %762 = vmatpush1.xpose.msra.mxu0 0.0
    %763 = vmatprep.subr.mxu0 0.0
    %764 = vmatpush1.xpose.msra.mxu0 0.0
    %765 = vmatprep.subr.mxu0 0.0
    %766 = vmatpush1.xpose.msra.mxu0 0.0
    %767 = vmatprep.subr.mxu0 0.0
    %768 = vmatpush1.xpose.msra.mxu0 0.0
    %769 = vmatprep.subr.mxu0 0.0
    %770 = vmatpush1.xpose.msra.mxu0 0.0
    %771 = vmatprep.subr.mxu0 0.0
    %772 = vmatpush1.xpose.msra.mxu0 0.0
    %773 = vmatprep.subr.mxu0 0.0
    %774 = vmatpush1.xpose.msra.mxu0 0.0
    %775 = vmatprep.subr.mxu0 0.0
    %776 = vmatpush1.xpose.msra.mxu0 0.0
    %777 = vmatprep.subr.mxu0 0.0
    %778 = vmatpush1.xpose.msra.mxu0 0.0
    %779 = vmatprep.subr.mxu0 0.0
    %780 = vmatpush1.xpose.msra.mxu0 0.0
    %781 = vmatprep.subr.mxu0 0.0
    %782 = vmatpush1.xpose.msra.mxu0 0.0
    %783 = vmatprep.subr.mxu0 0.0
    %784 = vmatpush1.xpose.msra.mxu0 0.0
    %785 = vmatprep.subr.mxu0 0.0
    %786 = vmatpush1.xpose.msra.mxu0 0.0
    %787 = vmatprep.subr.mxu0 0.0
    %788 = vmatpush1.xpose.msra.mxu0 0.0
    %789 = vmatprep.subr.mxu0 0.0
    %790 = vmatpush1.xpose.msra.mxu0 0.0
    %791 = vmatprep.subr.mxu0 0.0
    %792 = vmatpush1.xpose.msra.mxu0 0.0
    %793 = vmatprep.subr.mxu0 0.0
    %794 = vmatpush1.xpose.msra.mxu0 0.0
    %795 = vmatprep.subr.mxu0 0.0
    %796 = vmatpush1.xpose.msra.mxu0 0.0
    %797 = vmatprep.subr.mxu0 0.0
    %798 = vmatpush1.xpose.msra.mxu0 0.0
    %799 = vmatprep.subr.mxu0 0.0
    %800 = vmatpush1.xpose.msra.mxu0 0.0
    %801 = vmatprep.subr.mxu0 0.0
    %802 = vmatpush1.xpose.msra.mxu0 0.0
    %803 = vmatprep.subr.mxu0 0.0
    %804 = vmatpush1.xpose.msra.mxu0 0.0
    %805 = vmatprep.subr.mxu0 0.0
    %806 = vmatpush1.xpose.msra.mxu0 0.0
    %807 = vmatprep.subr.mxu0 0.0
    %808 = vmatpush1.xpose.msra.mxu0 0.0
    %809 = vmatprep.mubr.f32.mxu0 0.0
    %810 = vmatmul.mubr.f32.gmra.mrb[0].mxu0 %v741
    %v811 = vpop.f32.mrb[0].mxu0
    %v812 = vadd.f32 0.0, %v811
    %v813 = vpop.f32.mrb[0].mxu0
    %814 = vdwg.mxu0
    %v815 = vmul.f32 %v812, 0.35355338
    %v816 = vsel %vm242, %v815, -inf
    %817 = vmax.xlane.f32.xlu0 %v816
    %v818 = vpop.xlane.xlu0 %817
    %v819 = vsub.f32 %v815, %v818
    %v820 = vmul.f32 %v819, 1.442695
    %v821 = vpow.pop %v820
    %v822 = vsel %vm242, %v821, 0.0
    %823 = vadd.xlane.f32.xlu0 %v822
    %v824 = vpop.xlane.xlu0 %823
    %v825 = vrcp.pop %v824
    %v826 = vmul.f32 %v821, %v825
    %827 = vrot.lane.b32.xlu0 %v231, 40
    %v828 = vpop.permute.xlu0 %827
    %v831 = vsel %vm242, %v826, 0
    %833 = vmatprep.subr.mxu0 0.0
    %834 = vmatpush1.msra.mxu0 %v828
    %835 = vmatprep.subr.mxu0 0.0
    %836 = vmatpush1.msra.mxu0 0.0
    %837 = vmatprep.subr.mxu0 0.0
    %838 = vmatpush1.msra.mxu0 0.0
    %839 = vmatprep.subr.mxu0 0.0
    %840 = vmatpush1.msra.mxu0 0.0
    %841 = vmatprep.subr.mxu0 0.0
    %842 = vmatpush1.msra.mxu0 0.0
    %843 = vmatprep.subr.mxu0 0.0
    %844 = vmatpush1.msra.mxu0 0.0
    %845 = vmatprep.subr.mxu0 0.0
    %846 = vmatpush1.msra.mxu0 0.0
    %847 = vmatprep.subr.mxu0 0.0
    %848 = vmatpush1.msra.mxu0 0.0
    %849 = vmatprep.subr.mxu0 0.0
    %850 = vmatpush1.msra.mxu0 0.0
    %851 = vmatprep.subr.mxu0 0.0
    %852 = vmatpush1.msra.mxu0 0.0
    %853 = vmatprep.subr.mxu0 0.0
    %854 = vmatpush1.msra.mxu0 0.0
    %855 = vmatprep.subr.mxu0 0.0
    %856 = vmatpush1.msra.mxu0 0.0
    %857 = vmatprep.subr.mxu0 0.0
    %858 = vmatpush1.msra.mxu0 0.0
    %859 = vmatprep.subr.mxu0 0.0
    %860 = vmatpush1.msra.mxu0 0.0
    %861 = vmatprep.subr.mxu0 0.0
    %862 = vmatpush1.msra.mxu0 0.0
    %863 = vmatprep.subr.mxu0 0.0
    %864 = vmatpush1.msra.mxu0 0.0
    %865 = vmatprep.subr.mxu0 0.0
    %866 = vmatpush1.msra.mxu0 0.0
    %867 = vmatprep.subr.mxu0 0.0
    %868 = vmatpush1.msra.mxu0 0.0
    %869 = vmatprep.subr.mxu0 0.0
    %870 = vmatpush1.msra.mxu0 0.0
    %871 = vmatprep.subr.mxu0 0.0
    %872 = vmatpush1.msra.mxu0 0.0
    %873 = vmatprep.subr.mxu0 0.0
    %874 = vmatpush1.msra.mxu0 0.0
    %875 = vmatprep.subr.mxu0 0.0
    %876 = vmatpush1.msra.mxu0 0.0
    %877 = vmatprep.subr.mxu0 0.0
    %878 = vmatpush1.msra.mxu0 0.0
    %879 = vmatprep.subr.mxu0 0.0
    %880 = vmatpush1.msra.mxu0 0.0
    %881 = vmatprep.subr.mxu0 0.0
    %882 = vmatpush1.msra.mxu0 0.0
    %883 = vmatprep.subr.mxu0 0.0
    %884 = vmatpush1.msra.mxu0 0.0
    %885 = vmatprep.subr.mxu0 0.0
    %886 = vmatpush1.msra.mxu0 0.0
    %887 = vmatprep.subr.mxu0 0.0
    %888 = vmatpush1.msra.mxu0 0.0
    %889 = vmatprep.subr.mxu0 0.0
    %890 = vmatpush1.msra.mxu0 0.0
    %891 = vmatprep.subr.mxu0 0.0
    %892 = vmatpush1.msra.mxu0 0.0
    %893 = vmatprep.subr.mxu0 0.0
    %894 = vmatpush1.msra.mxu0 0.0
    %895 = vmatprep.subr.mxu0 0.0
    %896 = vmatpush1.msra.mxu0 0.0
    %897 = vmatprep.mubr.f32.mxu0 0.0
    %898 = vmatmul.mubr.f32.gmra.mrb[0].mxu0 %v831
    %v899 = vpop.f32.mrb[0].mxu0
    %v900 = vadd.f32 0.0, %v899
    %v901 = vpop.f32.mrb[0].mxu0
    %902 = vdwg.mxu0
    %904 = vrot.lane.b32.xlu0 %v568, 8
    %v905 = vpop.permute.xlu0 %904
    %908 = vrot.lane.b32.xlu0 %v734, 16
    %v909 = vpop.permute.xlu0 %908
    %912 = vrot.lane.b32.xlu0 %v900, 24
    %v913 = vpop.permute.xlu0 %912
    %v915 = vsel %vm242, %v402, %v905
    %vm916 = vcmask 130048
    %v917 = vsel %vm916, %v915, %v909
    %vm918 = vcmask 195584
    %v919 = vsel %vm918, %v917, %v913
    %921 = vrot.lane.b32.xlu0 %v236, 96
    %v922 = vpop.permute.xlu0 %921
    %v923 = vsel %vm242, %v236, 0
    %v925 = vsel %vm242, %v922, 0
    %927 = vmatprep.subr.mxu0 0.0
    %928 = vmatpush1.xpose.msra.mxu0 %v925
    %929 = vmatprep.subr.mxu0 0.0
    %930 = vmatpush1.xpose.msra.mxu0 0.0
    %931 = vmatprep.subr.mxu0 0.0
    %932 = vmatpush1.xpose.msra.mxu0 0.0
    %933 = vmatprep.subr.mxu0 0.0
    %934 = vmatpush1.xpose.msra.mxu0 0.0
    %935 = vmatprep.subr.mxu0 0.0
    %936 = vmatpush1.xpose.msra.mxu0 0.0
    %937 = vmatprep.subr.mxu0 0.0
    %938 = vmatpush1.xpose.msra.mxu0 0.0
    %939 = vmatprep.subr.mxu0 0.0
    %940 = vmatpush1.xpose.msra.mxu0 0.0
    %941 = vmatprep.subr.mxu0 0.0
    %942 = vmatpush1.xpose.msra.mxu0 0.0
    %943 = vmatprep.subr.mxu0 0.0
    %944 = vmatpush1.xpose.msra.mxu0 0.0
    %945 = vmatprep.subr.mxu0 0.0
    %946 = vmatpush1.xpose.msra.mxu0 0.0
    %947 = vmatprep.subr.mxu0 0.0
    %948 = vmatpush1.xpose.msra.mxu0 0.0
    %949 = vmatprep.subr.mxu0 0.0
    %950 = vmatpush1.xpose.msra.mxu0 0.0
    %951 = vmatprep.subr.mxu0 0.0
    %952 = vmatpush1.xpose.msra.mxu0 0.0
    %953 = vmatprep.subr.mxu0 0.0
    %954 = vmatpush1.xpose.msra.mxu0 0.0
    %955 = vmatprep.subr.mxu0 0.0
    %956 = vmatpush1.xpose.msra.mxu0 0.0
    %957 = vmatprep.subr.mxu0 0.0
    %958 = vmatpush1.xpose.msra.mxu0 0.0
    %959 = vmatprep.subr.mxu0 0.0
    %960 = vmatpush1.xpose.msra.mxu0 0.0
    %961 = vmatprep.subr.mxu0 0.0
    %962 = vmatpush1.xpose.msra.mxu0 0.0
    %963 = vmatprep.subr.mxu0 0.0
    %964 = vmatpush1.xpose.msra.mxu0 0.0
    %965 = vmatprep.subr.mxu0 0.0
    %966 = vmatpush1.xpose.msra.mxu0 0.0
    %967 = vmatprep.subr.mxu0 0.0
    %968 = vmatpush1.xpose.msra.mxu0 0.0
    %969 = vmatprep.subr.mxu0 0.0
    %970 = vmatpush1.xpose.msra.mxu0 0.0
    %971 = vmatprep.subr.mxu0 0.0
    %972 = vmatpush1.xpose.msra.mxu0 0.0
    %973 = vmatprep.subr.mxu0 0.0
    %974 = vmatpush1.xpose.msra.mxu0 0.0
    %975 = vmatprep.subr.mxu0 0.0
    %976 = vmatpush1.xpose.msra.mxu0 0.0
    %977 = vmatprep.subr.mxu0 0.0
    %978 = vmatpush1.xpose.msra.mxu0 0.0
    %979 = vmatprep.subr.mxu0 0.0
    %980 = vmatpush1.xpose.msra.mxu0 0.0
    %981 = vmatprep.subr.mxu0 0.0
    %982 = vmatpush1.xpose.msra.mxu0 0.0
    %983 = vmatprep.subr.mxu0 0.0
    %984 = vmatpush1.xpose.msra.mxu0 0.0
    %985 = vmatprep.subr.mxu0 0.0
    %986 = vmatpush1.xpose.msra.mxu0 0.0
    %987 = vmatprep.subr.mxu0 0.0
    %988 = vmatpush1.xpose.msra.mxu0 0.0
    %989 = vmatprep.subr.mxu0 0.0
    %990 = vmatpush1.xpose.msra.mxu0 0.0
    %991 = vmatprep.mubr.f32.mxu0 0.0
    %992 = vmatmul.mubr.f32.gmra.mrb[0].mxu0 %v923
    %v993 = vpop.f32.mrb[0].mxu0
    %v994 = vadd.f32 0.0, %v993
    %v995 = vpop.f32.mrb[0].mxu0
    %996 = vdwg.mxu0
    %v997 = vmul.f32 %v994, 0.35355338
    %v998 = vsel %vm242, %v997, -inf
    %999 = vmax.xlane.f32.xlu0 %v998
    %v1000 = vpop.xlane.xlu0 %999
    %v1001 = vsub.f32 %v997, %v1000
    %v1002 = vmul.f32 %v1001, 1.442695
    %v1003 = vpow.pop %v1002
    %v1004 = vsel %vm242, %v1003, 0.0
    %1005 = vadd.xlane.f32.xlu0 %v1004
    %v1006 = vpop.xlane.xlu0 %1005
    %v1007 = vrcp.pop %v1006
    %v1008 = vmul.f32 %v1003, %v1007
    %1009 = vrot.lane.b32.xlu0 %v236, 64
    %v1010 = vpop.permute.xlu0 %1009
    %v1013 = vsel %vm242, %v1008, 0
    %1015 = vmatprep.subr.mxu0 0.0
    %1016 = vmatpush1.msra.mxu0 %v1010
    %1017 = vmatprep.subr.mxu0 0.0
    %1018 = vmatpush1.msra.mxu0 0.0
    %1019 = vmatprep.subr.mxu0 0.0
    %1020 = vmatpush1.msra.mxu0 0.0
    %1021 = vmatprep.subr.mxu0 0.0
    %1022 = vmatpush1.msra.mxu0 0.0
    %1023 = vmatprep.subr.mxu0 0.0
    %1024 = vmatpush1.msra.mxu0 0.0
    %1025 = vmatprep.subr.mxu0 0.0
    %1026 = vmatpush1.msra.mxu0 0.0
    %1027 = vmatprep.subr.mxu0 0.0
    %1028 = vmatpush1.msra.mxu0 0.0
    %1029 = vmatprep.subr.mxu0 0.0
    %1030 = vmatpush1.msra.mxu0 0.0
    %1031 = vmatprep.subr.mxu0 0.0
    %1032 = vmatpush1.msra.mxu0 0.0
    %1033 = vmatprep.subr.mxu0 0.0
    %1034 = vmatpush1.msra.mxu0 0.0
    %1035 = vmatprep.subr.mxu0 0.0
    %1036 = vmatpush1.msra.mxu0 0.0
    %1037 = vmatprep.subr.mxu0 0.0
    %1038 = vmatpush1.msra.mxu0 0.0
    %1039 = vmatprep.subr.mxu0 0.0
    %1040 = vmatpush1.msra.mxu0 0.0
    %1041 = vmatprep.subr.mxu0 0.0
    %1042 = vmatpush1.msra.mxu0 0.0
    %1043 = vmatprep.subr.mxu0 0.0
    %1044 = vmatpush1.msra.mxu0 0.0
    %1045 = vmatprep.subr.mxu0 0.0
    %1046 = vmatpush1.msra.mxu0 0.0
    %1047 = vmatprep.subr.mxu0 0.0
    %1048 = vmatpush1.msra.mxu0 0.0
    %1049 = vmatprep.subr.mxu0 0.0
    %1050 = vmatpush1.msra.mxu0 0.0
    %1051 = vmatprep.subr.mxu0 0.0
    %1052 = vmatpush1.msra.mxu0 0.0
    %1053 = vmatprep.subr.mxu0 0.0
    %1054 = vmatpush1.msra.mxu0 0.0
    %1055 = vmatprep.subr.mxu0 0.0
    %1056 = vmatpush1.msra.mxu0 0.0
    %1057 = vmatprep.subr.mxu0 0.0
    %1058 = vmatpush1.msra.mxu0 0.0
    %1059 = vmatprep.subr.mxu0 0.0
    %1060 = vmatpush1.msra.mxu0 0.0
    %1061 = vmatprep.subr.mxu0 0.0
    %1062 = vmatpush1.msra.mxu0 0.0
    %1063 = vmatprep.subr.mxu0 0.0
    %1064 = vmatpush1.msra.mxu0 0.0
    %1065 = vmatprep.subr.mxu0 0.0
    %1066 = vmatpush1.msra.mxu0 0.0
    %1067 = vmatprep.subr.mxu0 0.0
    %1068 = vmatpush1.msra.mxu0 0.0
    %1069 = vmatprep.subr.mxu0 0.0
    %1070 = vmatpush1.msra.mxu0 0.0
    %1071 = vmatprep.subr.mxu0 0.0
    %1072 = vmatpush1.msra.mxu0 0.0
    %1073 = vmatprep.subr.mxu0 0.0
    %1074 = vmatpush1.msra.mxu0 0.0
    %1075 = vmatprep.subr.mxu0 0.0
    %1076 = vmatpush1.msra.mxu0 0.0
    %1077 = vmatprep.subr.mxu0 0.0
    %1078 = vmatpush1.msra.mxu0 0.0
    %1079 = vmatprep.mubr.f32.mxu0 0.0
    %1080 = vmatmul.mubr.f32.gmra.mrb[0].mxu0 %v1013
    %v1081 = vpop.f32.mrb[0].mxu0
    %v1082 = vadd.f32 0.0, %v1081
    %v1083 = vpop.f32.mrb[0].mxu0
    %1084 = vdwg.mxu0
    %1085 = vrot.lane.b32.xlu0 %v236, 120
    %v1086 = vpop.permute.xlu0 %1085
    %1087 = vrot.lane.b32.xlu0 %v236, 88
    %v1088 = vpop.permute.xlu0 %1087
    %v1089 = vsel %vm242, %v1086, 0
    %v1091 = vsel %vm242, %v1088, 0
    %1093 = vmatprep.subr.mxu0 0.0
    %1094 = vmatpush1.xpose.msra.mxu0 %v1091
    %1095 = vmatprep.subr.mxu0 0.0
    %1096 = vmatpush1.xpose.msra.mxu0 0.0
    %1097 = vmatprep.subr.mxu0 0.0
    %1098 = vmatpush1.xpose.msra.mxu0 0.0
    %1099 = vmatprep.subr.mxu0 0.0
    %1100 = vmatpush1.xpose.msra.mxu0 0.0
    %1101 = vmatprep.subr.mxu0 0.0
    %1102 = vmatpush1.xpose.msra.mxu0 0.0
    %1103 = vmatprep.subr.mxu0 0.0
    %1104 = vmatpush1.xpose.msra.mxu0 0.0
    %1105 = vmatprep.subr.mxu0 0.0
    %1106 = vmatpush1.xpose.msra.mxu0 0.0
    %1107 = vmatprep.subr.mxu0 0.0
    %1108 = vmatpush1.xpose.msra.mxu0 0.0
    %1109 = vmatprep.subr.mxu0 0.0
    %1110 = vmatpush1.xpose.msra.mxu0 0.0
    %1111 = vmatprep.subr.mxu0 0.0
    %1112 = vmatpush1.xpose.msra.mxu0 0.0
    %1113 = vmatprep.subr.mxu0 0.0
    %1114 = vmatpush1.xpose.msra.mxu0 0.0
    %1115 = vmatprep.subr.mxu0 0.0
    %1116 = vmatpush1.xpose.msra.mxu0 0.0
    %1117 = vmatprep.subr.mxu0 0.0
    %1118 = vmatpush1.xpose.msra.mxu0 0.0
    %1119 = vmatprep.subr.mxu0 0.0
    %1120 = vmatpush1.xpose.msra.mxu0 0.0
    %1121 = vmatprep.subr.mxu0 0.0
    %1122 = vmatpush1.xpose.msra.mxu0 0.0
    %1123 = vmatprep.subr.mxu0 0.0
    %1124 = vmatpush1.xpose.msra.mxu0 0.0
    %1125 = vmatprep.subr.mxu0 0.0
    %1126 = vmatpush1.xpose.msra.mxu0 0.0
    %1127 = vmatprep.subr.mxu0 0.0
    %1128 = vmatpush1.xpose.msra.mxu0 0.0
    %1129 = vmatprep.subr.mxu0 0.0
    %1130 = vmatpush1.xpose.msra.mxu0 0.0
    %1131 = vmatprep.subr.mxu0 0.0
    %1132 = vmatpush1.xpose.msra.mxu0 0.0
    %1133 = vmatprep.subr.mxu0 0.0
    %1134 = vmatpush1.xpose.msra.mxu0 0.0
    %1135 = vmatprep.subr.mxu0 0.0
    %1136 = vmatpush1.xpose.msra.mxu0 0.0
    %1137 = vmatprep.subr.mxu0 0.0
    %1138 = vmatpush1.xpose.msra.mxu0 0.0
    %1139 = vmatprep.subr.mxu0 0.0
    %1140 = vmatpush1.xpose.msra.mxu0 0.0
    %1141 = vmatprep.subr.mxu0 0.0
    %1142 = vmatpush1.xpose.msra.mxu0 0.0
    %1143 = vmatprep.subr.mxu0 0.0
    %1144 = vmatpush1.xpose.msra.mxu0 0.0
    %1145 = vmatprep.subr.mxu0 0.0
    %1146 = vmatpush1.xpose.msra.mxu0 0.0
    %1147 = vmatprep.subr.mxu0 0.0
    %1148 = vmatpush1.xpose.msra.mxu0 0.0
    %1149 = vmatprep.subr.mxu0 0.0
    %1150 = vmatpush1.xpose.msra.mxu0 0.0
    %1151 = vmatprep.subr.mxu0 0.0
    %1152 = vmatpush1.xpose.msra.mxu0 0.0
    %1153 = vmatprep.subr.mxu0 0.0
    %1154 = vmatpush1.xpose.msra.mxu0 0.0
    %1155 = vmatprep.subr.mxu0 0.0
    %1156 = vmatpush1.xpose.msra.mxu0 0.0
    %1157 = vmatprep.mubr.f32.mxu0 0.0
    %1158 = vmatmul.mubr.f32.gmra.mrb[0].mxu0 %v1089
    %v1159 = vpop.f32.mrb[0].mxu0
    %v1160 = vadd.f32 0.0, %v1159
    %v1161 = vpop.f32.mrb[0].mxu0
    %1162 = vdwg.mxu0
    %v1163 = vmul.f32 %v1160, 0.35355338
    %v1164 = vsel %vm242, %v1163, -inf
    %1165 = vmax.xlane.f32.xlu0 %v1164
    %v1166 = vpop.xlane.xlu0 %1165
    %v1167 = vsub.f32 %v1163, %v1166
    %v1168 = vmul.f32 %v1167, 1.442695
    %v1169 = vpow.pop %v1168
    %v1170 = vsel %vm242, %v1169, 0.0
    %1171 = vadd.xlane.f32.xlu0 %v1170
    %v1172 = vpop.xlane.xlu0 %1171
    %v1173 = vrcp.pop %v1172
    %v1174 = vmul.f32 %v1169, %v1173
    %1175 = vrot.lane.b32.xlu0 %v236, 56
    %v1176 = vpop.permute.xlu0 %1175
    %v1179 = vsel %vm242, %v1174, 0
    %1181 = vmatprep.subr.mxu0 0.0
    %1182 = vmatpush1.msra.mxu0 %v1176
    %1183 = vmatprep.subr.mxu0 0.0
    %1184 = vmatpush1.msra.mxu0 0.0
    %1185 = vmatprep.subr.mxu0 0.0
    %1186 = vmatpush1.msra.mxu0 0.0
    %1187 = vmatprep.subr.mxu0 0.0
    %1188 = vmatpush1.msra.mxu0 0.0
    %1189 = vmatprep.subr.mxu0 0.0
    %1190 = vmatpush1.msra.mxu0 0.0
    %1191 = vmatprep.subr.mxu0 0.0
    %1192 = vmatpush1.msra.mxu0 0.0
    %1193 = vmatprep.subr.mxu0 0.0
    %1194 = vmatpush1.msra.mxu0 0.0
    %1195 = vmatprep.subr.mxu0 0.0
    %1196 = vmatpush1.msra.mxu0 0.0
    %1197 = vmatprep.subr.mxu0 0.0
    %1198 = vmatpush1.msra.mxu0 0.0
    %1199 = vmatprep.subr.mxu0 0.0
    %1200 = vmatpush1.msra.mxu0 0.0
    %1201 = vmatprep.subr.mxu0 0.0
    %1202 = vmatpush1.msra.mxu0 0.0
    %1203 = vmatprep.subr.mxu0 0.0
    %1204 = vmatpush1.msra.mxu0 0.0
    %1205 = vmatprep.subr.mxu0 0.0
    %1206 = vmatpush1.msra.mxu0 0.0
    %1207 = vmatprep.subr.mxu0 0.0
    %1208 = vmatpush1.msra.mxu0 0.0
    %1209 = vmatprep.subr.mxu0 0.0
    %1210 = vmatpush1.msra.mxu0 0.0
    %1211 = vmatprep.subr.mxu0 0.0
    %1212 = vmatpush1.msra.mxu0 0.0
    %1213 = vmatprep.subr.mxu0 0.0
    %1214 = vmatpush1.msra.mxu0 0.0
    %1215 = vmatprep.subr.mxu0 0.0
    %1216 = vmatpush1.msra.mxu0 0.0
    %1217 = vmatprep.subr.mxu0 0.0
    %1218 = vmatpush1.msra.mxu0 0.0
    %1219 = vmatprep.subr.mxu0 0.0
    %1220 = vmatpush1.msra.mxu0 0.0
    %1221 = vmatprep.subr.mxu0 0.0
    %1222 = vmatpush1.msra.mxu0 0.0
    %1223 = vmatprep.subr.mxu0 0.0
    %1224 = vmatpush1.msra.mxu0 0.0
    %1225 = vmatprep.subr.mxu0 0.0
    %1226 = vmatpush1.msra.mxu0 0.0
    %1227 = vmatprep.subr.mxu0 0.0
    %1228 = vmatpush1.msra.mxu0 0.0
    %1229 = vmatprep.subr.mxu0 0.0
    %1230 = vmatpush1.msra.mxu0 0.0
    %1231 = vmatprep.subr.mxu0 0.0
    %1232 = vmatpush1.msra.mxu0 0.0
    %1233 = vmatprep.subr.mxu0 0.0
    %1234 = vmatpush1.msra.mxu0 0.0
    %1235 = vmatprep.subr.mxu0 0.0
    %1236 = vmatpush1.msra.mxu0 0.0
    %1237 = vmatprep.subr.mxu0 0.0
    %1238 = vmatpush1.msra.mxu0 0.0
    %1239 = vmatprep.subr.mxu0 0.0
    %1240 = vmatpush1.msra.mxu0 0.0
    %1241 = vmatprep.subr.mxu0 0.0
    %1242 = vmatpush1.msra.mxu0 0.0
    %1243 = vmatprep.subr.mxu0 0.0
    %1244 = vmatpush1.msra.mxu0 0.0
    %1245 = vmatprep.mubr.f32.mxu0 0.0
    %1246 = vmatmul.mubr.f32.gmra.mrb[0].mxu0 %v1179
    %v1247 = vpop.f32.mrb[0].mxu0
    %v1248 = vadd.f32 0.0, %v1247
    %v1249 = vpop.f32.mrb[0].mxu0
    %1250 = vdwg.mxu0
    %1251 = vrot.lane.b32.xlu0 %v236, 112
    %v1252 = vpop.permute.xlu0 %1251
    %1253 = vrot.lane.b32.xlu0 %v236, 80
    %v1254 = vpop.permute.xlu0 %1253
    %v1255 = vsel %vm242, %v1252, 0
    %v1257 = vsel %vm242, %v1254, 0
    %1259 = vmatprep.subr.mxu0 0.0
    %1260 = vmatpush1.xpose.msra.mxu0 %v1257
    %1261 = vmatprep.subr.mxu0 0.0
    %1262 = vmatpush1.xpose.msra.mxu0 0.0
    %1263 = vmatprep.subr.mxu0 0.0
    %1264 = vmatpush1.xpose.msra.mxu0 0.0
    %1265 = vmatprep.subr.mxu0 0.0
    %1266 = vmatpush1.xpose.msra.mxu0 0.0
    %1267 = vmatprep.subr.mxu0 0.0
    %1268 = vmatpush1.xpose.msra.mxu0 0.0
    %1269 = vmatprep.subr.mxu0 0.0
    %1270 = vmatpush1.xpose.msra.mxu0 0.0
    %1271 = vmatprep.subr.mxu0 0.0
    %1272 = vmatpush1.xpose.msra.mxu0 0.0
    %1273 = vmatprep.subr.mxu0 0.0
    %1274 = vmatpush1.xpose.msra.mxu0 0.0
    %1275 = vmatprep.subr.mxu0 0.0
    %1276 = vmatpush1.xpose.msra.mxu0 0.0
    %1277 = vmatprep.subr.mxu0 0.0
    %1278 = vmatpush1.xpose.msra.mxu0 0.0
    %1279 = vmatprep.subr.mxu0 0.0
    %1280 = vmatpush1.xpose.msra.mxu0 0.0
    %1281 = vmatprep.subr.mxu0 0.0
    %1282 = vmatpush1.xpose.msra.mxu0 0.0
    %1283 = vmatprep.subr.mxu0 0.0
    %1284 = vmatpush1.xpose.msra.mxu0 0.0
    %1285 = vmatprep.subr.mxu0 0.0
    %1286 = vmatpush1.xpose.msra.mxu0 0.0
    %1287 = vmatprep.subr.mxu0 0.0
    %1288 = vmatpush1.xpose.msra.mxu0 0.0
    %1289 = vmatprep.subr.mxu0 0.0
    %1290 = vmatpush1.xpose.msra.mxu0 0.0
    %1291 = vmatprep.subr.mxu0 0.0
    %1292 = vmatpush1.xpose.msra.mxu0 0.0
    %1293 = vmatprep.subr.mxu0 0.0
    %1294 = vmatpush1.xpose.msra.mxu0 0.0
    %1295 = vmatprep.subr.mxu0 0.0
    %1296 = vmatpush1.xpose.msra.mxu0 0.0
    %1297 = vmatprep.subr.mxu0 0.0
    %1298 = vmatpush1.xpose.msra.mxu0 0.0
    %1299 = vmatprep.subr.mxu0 0.0
    %1300 = vmatpush1.xpose.msra.mxu0 0.0
    %1301 = vmatprep.subr.mxu0 0.0
    %1302 = vmatpush1.xpose.msra.mxu0 0.0
    %1303 = vmatprep.subr.mxu0 0.0
    %1304 = vmatpush1.xpose.msra.mxu0 0.0
    %1305 = vmatprep.subr.mxu0 0.0
    %1306 = vmatpush1.xpose.msra.mxu0 0.0
    %1307 = vmatprep.subr.mxu0 0.0
    %1308 = vmatpush1.xpose.msra.mxu0 0.0
    %1309 = vmatprep.subr.mxu0 0.0
    %1310 = vmatpush1.xpose.msra.mxu0 0.0
    %1311 = vmatprep.subr.mxu0 0.0
    %1312 = vmatpush1.xpose.msra.mxu0 0.0
    %1313 = vmatprep.subr.mxu0 0.0
    %1314 = vmatpush1.xpose.msra.mxu0 0.0
    %1315 = vmatprep.subr.mxu0 0.0
    %1316 = vmatpush1.xpose.msra.mxu0 0.0
    %1317 = vmatprep.subr.mxu0 0.0
    %1318 = vmatpush1.xpose.msra.mxu0 0.0
    %1319 = vmatprep.subr.mxu0 0.0
    %1320 = vmatpush1.xpose.msra.mxu0 0.0
    %1321 = vmatprep.subr.mxu0 0.0
    %1322 = vmatpush1.xpose.msra.mxu0 0.0
    %1323 = vmatprep.mubr.f32.mxu0 0.0
    %1324 = vmatmul.mubr.f32.gmra.mrb[0].mxu0 %v1255
    %v1325 = vpop.f32.mrb[0].mxu0
    %v1326 = vadd.f32 0.0, %v1325
    %v1327 = vpop.f32.mrb[0].mxu0
    %1328 = vdwg.mxu0
    %v1329 = vmul.f32 %v1326, 0.35355338
    %v1330 = vsel %vm242, %v1329, -inf
    %1331 = vmax.xlane.f32.xlu0 %v1330
    %v1332 = vpop.xlane.xlu0 %1331
    %v1333 = vsub.f32 %v1329, %v1332
    %v1334 = vmul.f32 %v1333, 1.442695
    %v1335 = vpow.pop %v1334
    %v1336 = vsel %vm242, %v1335, 0.0
    %1337 = vadd.xlane.f32.xlu0 %v1336
    %v1338 = vpop.xlane.xlu0 %1337
    %v1339 = vrcp.pop %v1338
    %v1340 = vmul.f32 %v1335, %v1339
    %1341 = vrot.lane.b32.xlu0 %v236, 48
    %v1342 = vpop.permute.xlu0 %1341
    %v1345 = vsel %vm242, %v1340, 0
    %1347 = vmatprep.subr.mxu0 0.0
    %1348 = vmatpush1.msra.mxu0 %v1342
    %1349 = vmatprep.subr.mxu0 0.0
    %1350 = vmatpush1.msra.mxu0 0.0
    %1351 = vmatprep.subr.mxu0 0.0
    %1352 = vmatpush1.msra.mxu0 0.0
    %1353 = vmatprep.subr.mxu0 0.0
    %1354 = vmatpush1.msra.mxu0 0.0
    %1355 = vmatprep.subr.mxu0 0.0
    %1356 = vmatpush1.msra.mxu0 0.0
    %1357 = vmatprep.subr.mxu0 0.0
    %1358 = vmatpush1.msra.mxu0 0.0
    %1359 = vmatprep.subr.mxu0 0.0
    %1360 = vmatpush1.msra.mxu0 0.0
    %1361 = vmatprep.subr.mxu0 0.0
    %1362 = vmatpush1.msra.mxu0 0.0
    %1363 = vmatprep.subr.mxu0 0.0
    %1364 = vmatpush1.msra.mxu0 0.0
    %1365 = vmatprep.subr.mxu0 0.0
    %1366 = vmatpush1.msra.mxu0 0.0
    %1367 = vmatprep.subr.mxu0 0.0
    %1368 = vmatpush1.msra.mxu0 0.0
    %1369 = vmatprep.subr.mxu0 0.0
    %1370 = vmatpush1.msra.mxu0 0.0
    %1371 = vmatprep.subr.mxu0 0.0
    %1372 = vmatpush1.msra.mxu0 0.0
    %1373 = vmatprep.subr.mxu0 0.0
    %1374 = vmatpush1.msra.mxu0 0.0
    %1375 = vmatprep.subr.mxu0 0.0
    %1376 = vmatpush1.msra.mxu0 0.0
    %1377 = vmatprep.subr.mxu0 0.0
    %1378 = vmatpush1.msra.mxu0 0.0
    %1379 = vmatprep.subr.mxu0 0.0
    %1380 = vmatpush1.msra.mxu0 0.0
    %1381 = vmatprep.subr.mxu0 0.0
    %1382 = vmatpush1.msra.mxu0 0.0
    %1383 = vmatprep.subr.mxu0 0.0
    %1384 = vmatpush1.msra.mxu0 0.0
    %1385 = vmatprep.subr.mxu0 0.0
    %1386 = vmatpush1.msra.mxu0 0.0
    %1387 = vmatprep.subr.mxu0 0.0
    %1388 = vmatpush1.msra.mxu0 0.0
    %1389 = vmatprep.subr.mxu0 0.0
    %1390 = vmatpush1.msra.mxu0 0.0
    %1391 = vmatprep.subr.mxu0 0.0
    %1392 = vmatpush1.msra.mxu0 0.0
    %1393 = vmatprep.subr.mxu0 0.0
    %1394 = vmatpush1.msra.mxu0 0.0
    %1395 = vmatprep.subr.mxu0 0.0
    %1396 = vmatpush1.msra.mxu0 0.0
    %1397 = vmatprep.subr.mxu0 0.0
    %1398 = vmatpush1.msra.mxu0 0.0
    %1399 = vmatprep.subr.mxu0 0.0
    %1400 = vmatpush1.msra.mxu0 0.0
    %1401 = vmatprep.subr.mxu0 0.0
    %1402 = vmatpush1.msra.mxu0 0.0
    %1403 = vmatprep.subr.mxu0 0.0
    %1404 = vmatpush1.msra.mxu0 0.0
    %1405 = vmatprep.subr.mxu0 0.0
    %1406 = vmatpush1.msra.mxu0 0.0
    %1407 = vmatprep.subr.mxu0 0.0
    %1408 = vmatpush1.msra.mxu0 0.0
    %1409 = vmatprep.subr.mxu0 0.0
    %1410 = vmatpush1.msra.mxu0 0.0
    %1411 = vmatprep.mubr.f32.mxu0 0.0
    %1412 = vmatmul.mubr.f32.gmra.mrb[0].mxu0 %v1345
    %v1413 = vpop.f32.mrb[0].mxu0
    %v1414 = vadd.f32 0.0, %v1413
    %v1415 = vpop.f32.mrb[0].mxu0
    %1416 = vdwg.mxu0
    %1417 = vrot.lane.b32.xlu0 %v236, 104
    %v1418 = vpop.permute.xlu0 %1417
    %1419 = vrot.lane.b32.xlu0 %v236, 72
    %v1420 = vpop.permute.xlu0 %1419
    %v1421 = vsel %vm242, %v1418, 0
    %v1423 = vsel %vm242, %v1420, 0
    %1425 = vmatprep.subr.mxu0 0.0
    %1426 = vmatpush1.xpose.msra.mxu0 %v1423
    %1427 = vmatprep.subr.mxu0 0.0
    %1428 = vmatpush1.xpose.msra.mxu0 0.0
    %1429 = vmatprep.subr.mxu0 0.0
    %1430 = vmatpush1.xpose.msra.mxu0 0.0
    %1431 = vmatprep.subr.mxu0 0.0
    %1432 = vmatpush1.xpose.msra.mxu0 0.0
    %1433 = vmatprep.subr.mxu0 0.0
    %1434 = vmatpush1.xpose.msra.mxu0 0.0
    %1435 = vmatprep.subr.mxu0 0.0
    %1436 = vmatpush1.xpose.msra.mxu0 0.0
    %1437 = vmatprep.subr.mxu0 0.0
    %1438 = vmatpush1.xpose.msra.mxu0 0.0
    %1439 = vmatprep.subr.mxu0 0.0
    %1440 = vmatpush1.xpose.msra.mxu0 0.0
    %1441 = vmatprep.subr.mxu0 0.0
    %1442 = vmatpush1.xpose.msra.mxu0 0.0
    %1443 = vmatprep.subr.mxu0 0.0
    %1444 = vmatpush1.xpose.msra.mxu0 0.0
    %1445 = vmatprep.subr.mxu0 0.0
    %1446 = vmatpush1.xpose.msra.mxu0 0.0
    %1447 = vmatprep.subr.mxu0 0.0
    %1448 = vmatpush1.xpose.msra.mxu0 0.0
    %1449 = vmatprep.subr.mxu0 0.0
    %1450 = vmatpush1.xpose.msra.mxu0 0.0
    %1451 = vmatprep.subr.mxu0 0.0
    %1452 = vmatpush1.xpose.msra.mxu0 0.0
    %1453 = vmatprep.subr.mxu0 0.0
    %1454 = vmatpush1.xpose.msra.mxu0 0.0
    %1455 = vmatprep.subr.mxu0 0.0
    %1456 = vmatpush1.xpose.msra.mxu0 0.0
    %1457 = vmatprep.subr.mxu0 0.0
    %1458 = vmatpush1.xpose.msra.mxu0 0.0
    %1459 = vmatprep.subr.mxu0 0.0
    %1460 = vmatpush1.xpose.msra.mxu0 0.0
    %1461 = vmatprep.subr.mxu0 0.0
    %1462 = vmatpush1.xpose.msra.mxu0 0.0
    %1463 = vmatprep.subr.mxu0 0.0
    %1464 = vmatpush1.xpose.msra.mxu0 0.0
    %1465 = vmatprep.subr.mxu0 0.0
    %1466 = vmatpush1.xpose.msra.mxu0 0.0
    %1467 = vmatprep.subr.mxu0 0.0
    %1468 = vmatpush1.xpose.msra.mxu0 0.0
    %1469 = vmatprep.subr.mxu0 0.0
    %1470 = vmatpush1.xpose.msra.mxu0 0.0
    %1471 = vmatprep.subr.mxu0 0.0
    %1472 = vmatpush1.xpose.msra.mxu0 0.0
    %1473 = vmatprep.subr.mxu0 0.0
    %1474 = vmatpush1.xpose.msra.mxu0 0.0
    %1475 = vmatprep.subr.mxu0 0.0
    %1476 = vmatpush1.xpose.msra.mxu0 0.0
    %1477 = vmatprep.subr.mxu0 0.0
    %1478 = vmatpush1.xpose.msra.mxu0 0.0
    %1479 = vmatprep.subr.mxu0 0.0
    %1480 = vmatpush1.xpose.msra.mxu0 0.0
    %1481 = vmatprep.subr.mxu0 0.0
    %1482 = vmatpush1.xpose.msra.mxu0 0.0
    %1483 = vmatprep.subr.mxu0 0.0
    %1484 = vmatpush1.xpose.msra.mxu0 0.0
    %1485 = vmatprep.subr.mxu0 0.0
    %1486 = vmatpush1.xpose.msra.mxu0 0.0
    %1487 = vmatprep.subr.mxu0 0.0
    %1488 = vmatpush1.xpose.msra.mxu0 0.0
    %1489 = vmatprep.mubr.f32.mxu0 0.0
    %1490 = vmatmul.mubr.f32.gmra.mrb[0].mxu0 %v1421
    %v1491 = vpop.f32.mrb[0].mxu0
    %v1492 = vadd.f32 0.0, %v1491
    %v1493 = vpop.f32.mrb[0].mxu0
    %1494 = vdwg.mxu0
    %v1495 = vmul.f32 %v1492, 0.35355338
    %v1496 = vsel %vm242, %v1495, -inf
    %1497 = vmax.xlane.f32.xlu0 %v1496
    %v1498 = vpop.xlane.xlu0 %1497
    %v1499 = vsub.f32 %v1495, %v1498
    %v1500 = vmul.f32 %v1499, 1.442695
    %v1501 = vpow.pop %v1500
    %v1502 = vsel %vm242, %v1501, 0.0
    %1503 = vadd.xlane.f32.xlu0 %v1502
    %v1504 = vpop.xlane.xlu0 %1503
    %v1505 = vrcp.pop %v1504
    %v1506 = vmul.f32 %v1501, %v1505
    %1507 = vrot.lane.b32.xlu0 %v236, 40
    %v1508 = vpop.permute.xlu0 %1507
    %v1511 = vsel %vm242, %v1506, 0
    %1513 = vmatprep.subr.mxu0 0.0
    %1514 = vmatpush1.msra.mxu0 %v1508
    %1515 = vmatprep.subr.mxu0 0.0
    %1516 = vmatpush1.msra.mxu0 0.0
    %1517 = vmatprep.subr.mxu0 0.0
    %1518 = vmatpush1.msra.mxu0 0.0
    %1519 = vmatprep.subr.mxu0 0.0
    %1520 = vmatpush1.msra.mxu0 0.0
    %1521 = vmatprep.subr.mxu0 0.0
    %1522 = vmatpush1.msra.mxu0 0.0
    %1523 = vmatprep.subr.mxu0 0.0
    %1524 = vmatpush1.msra.mxu0 0.0
    %1525 = vmatprep.subr.mxu0 0.0
    %1526 = vmatpush1.msra.mxu0 0.0
    %1527 = vmatprep.subr.mxu0 0.0
    %1528 = vmatpush1.msra.mxu0 0.0
    %1529 = vmatprep.subr.mxu0 0.0
    %1530 = vmatpush1.msra.mxu0 0.0
    %1531 = vmatprep.subr.mxu0 0.0
    %1532 = vmatpush1.msra.mxu0 0.0
    %1533 = vmatprep.subr.mxu0 0.0
    %1534 = vmatpush1.msra.mxu0 0.0
    %1535 = vmatprep.subr.mxu0 0.0
    %1536 = vmatpush1.msra.mxu0 0.0
    %1537 = vmatprep.subr.mxu0 0.0
    %1538 = vmatpush1.msra.mxu0 0.0
    %1539 = vmatprep.subr.mxu0 0.0
    %1540 = vmatpush1.msra.mxu0 0.0
    %1541 = vmatprep.subr.mxu0 0.0
    %1542 = vmatpush1.msra.mxu0 0.0
    %1543 = vmatprep.subr.mxu0 0.0
    %1544 = vmatpush1.msra.mxu0 0.0
    %1545 = vmatprep.subr.mxu0 0.0
    %1546 = vmatpush1.msra.mxu0 0.0
    %1547 = vmatprep.subr.mxu0 0.0
    %1548 = vmatpush1.msra.mxu0 0.0
    %1549 = vmatprep.subr.mxu0 0.0
    %1550 = vmatpush1.msra.mxu0 0.0
    %1551 = vmatprep.subr.mxu0 0.0
    %1552 = vmatpush1.msra.mxu0 0.0
    %1553 = vmatprep.subr.mxu0 0.0
    %1554 = vmatpush1.msra.mxu0 0.0
    %1555 = vmatprep.subr.mxu0 0.0
    %1556 = vmatpush1.msra.mxu0 0.0
    %1557 = vmatprep.subr.mxu0 0.0
    %1558 = vmatpush1.msra.mxu0 0.0
    %1559 = vmatprep.subr.mxu0 0.0
    %1560 = vmatpush1.msra.mxu0 0.0
    %1561 = vmatprep.subr.mxu0 0.0
    %1562 = vmatpush1.msra.mxu0 0.0
    %1563 = vmatprep.subr.mxu0 0.0
    %1564 = vmatpush1.msra.mxu0 0.0
    %1565 = vmatprep.subr.mxu0 0.0
    %1566 = vmatpush1.msra.mxu0 0.0
    %1567 = vmatprep.subr.mxu0 0.0
    %1568 = vmatpush1.msra.mxu0 0.0
    %1569 = vmatprep.subr.mxu0 0.0
    %1570 = vmatpush1.msra.mxu0 0.0
    %1571 = vmatprep.subr.mxu0 0.0
    %1572 = vmatpush1.msra.mxu0 0.0
    %1573 = vmatprep.subr.mxu0 0.0
    %1574 = vmatpush1.msra.mxu0 0.0
    %1575 = vmatprep.subr.mxu0 0.0
    %1576 = vmatpush1.msra.mxu0 0.0
    %1577 = vmatprep.mubr.f32.mxu0 0.0
    %1578 = vmatmul.mubr.f32.gmra.mrb[0].mxu0 %v1511
    %v1579 = vpop.f32.mrb[0].mxu0
    %v1580 = vadd.f32 0.0, %v1579
    %v1581 = vpop.f32.mrb[0].mxu0
    %1582 = vdwg.mxu0
    %1584 = vrot.lane.b32.xlu0 %v1248, 8
    %v1585 = vpop.permute.xlu0 %1584
    %1588 = vrot.lane.b32.xlu0 %v1414, 16
    %v1589 = vpop.permute.xlu0 %1588
    %1592 = vrot.lane.b32.xlu0 %v1580, 24
    %v1593 = vpop.permute.xlu0 %1592
    %v1595 = vsel %vm242, %v1082, %v1585
    %v1596 = vsel %vm916, %v1595, %v1589
    %v1597 = vsel %vm918, %v1596, %v1593
    %v1599 = vsel %vm112, %v919, 0
    %v1602 = vsel %vm112, %v1597, 0
    %1604 = vmatprep.subr.mxu0 0.0
    %1605 = vmatpush1.msra.mxu0 %v67
    %1606 = vmatprep.subr.mxu0 0.0
    %1607 = vmatpush1.msra.mxu0 %v68
    %1608 = vmatprep.subr.mxu0 0.0
    %1609 = vmatpush1.msra.mxu0 %v69
    %1610 = vmatprep.subr.mxu0 0.0
    %1611 = vmatpush1.msra.mxu0 %v70
    %1612 = vmatprep.subr.mxu0 0.0
    %1613 = vmatpush1.msra.mxu0 0.0
    %1614 = vmatprep.subr.mxu0 0.0
    %1615 = vmatpush1.msra.mxu0 0.0
    %1616 = vmatprep.subr.mxu0 0.0
    %1617 = vmatpush1.msra.mxu0 0.0
    %1618 = vmatprep.subr.mxu0 0.0
    %1619 = vmatpush1.msra.mxu0 0.0
    %1620 = vmatprep.subr.mxu0 0.0
    %1621 = vmatpush1.msra.mxu0 0.0
    %1622 = vmatprep.subr.mxu0 0.0
    %1623 = vmatpush1.msra.mxu0 0.0
    %1624 = vmatprep.subr.mxu0 0.0
    %1625 = vmatpush1.msra.mxu0 0.0
    %1626 = vmatprep.subr.mxu0 0.0
    %1627 = vmatpush1.msra.mxu0 0.0
    %1628 = vmatprep.subr.mxu0 0.0
    %1629 = vmatpush1.msra.mxu0 0.0
    %1630 = vmatprep.subr.mxu0 0.0
    %1631 = vmatpush1.msra.mxu0 0.0
    %1632 = vmatprep.subr.mxu0 0.0
    %1633 = vmatpush1.msra.mxu0 0.0
    %1634 = vmatprep.subr.mxu0 0.0
    %1635 = vmatpush1.msra.mxu0 0.0
    %1636 = vmatprep.subr.mxu0 0.0
    %1637 = vmatpush1.msra.mxu0 0.0
    %1638 = vmatprep.subr.mxu0 0.0
    %1639 = vmatpush1.msra.mxu0 0.0
    %1640 = vmatprep.subr.mxu0 0.0
    %1641 = vmatpush1.msra.mxu0 0.0
    %1642 = vmatprep.subr.mxu0 0.0
    %1643 = vmatpush1.msra.mxu0 0.0
    %1644 = vmatprep.subr.mxu0 0.0
    %1645 = vmatpush1.msra.mxu0 0.0
    %1646 = vmatprep.subr.mxu0 0.0
    %1647 = vmatpush1.msra.mxu0 0.0
    %1648 = vmatprep.subr.mxu0 0.0
    %1649 = vmatpush1.msra.mxu0 0.0
    %1650 = vmatprep.subr.mxu0 0.0
    %1651 = vmatpush1.msra.mxu0 0.0
    %1652 = vmatprep.subr.mxu0 0.0
    %1653 = vmatpush1.msra.mxu0 0.0
    %1654 = vmatprep.subr.mxu0 0.0
    %1655 = vmatpush1.msra.mxu0 0.0
    %1656 = vmatprep.subr.mxu0 0.0
    %1657 = vmatpush1.msra.mxu0 0.0
    %1658 = vmatprep.subr.mxu0 0.0
    %1659 = vmatpush1.msra.mxu0 0.0
    %1660 = vmatprep.subr.mxu0 0.0
    %1661 = vmatpush1.msra.mxu0 0.0
    %1662 = vmatprep.subr.mxu0 0.0
    %1663 = vmatpush1.msra.mxu0 0.0
    %1664 = vmatprep.subr.mxu0 0.0
    %1665 = vmatpush1.msra.mxu0 0.0
    %1666 = vmatprep.subr.mxu0 0.0
    %1667 = vmatpush1.msra.mxu0 0.0
    %1668 = vmatprep.mubr.f32.mxu0 0.0
    %1669 = vmatmul.mubr.f32.gmra.mrb[0].mxu0 %v1599
    %v1670 = vpop.f32.mrb[0].mxu0
    %v1671 = vadd.f32 0.0, %v1670
    %v1672 = vpop.f32.mrb[0].mxu0
    %1673 = vmatprep.mubr.f32.mxu0 0.0
    %1674 = vmatmul.mubr.f32.gmra.mrb[0].mxu0 %v1602
    %v1675 = vpop.f32.mrb[0].mxu0
    %v1676 = vadd.f32 0.0, %v1675
    %v1677 = vpop.f32.mrb[0].mxu0
    %1678 = vdwg.mxu0
    %v1679 = vadd.f32 %v61, %v1671
    %v1680 = vadd.f32 %v62, %v1676
    %v1681 = vadd.f32 %v1679, %v108
    %v1682 = vadd.f32 %v1680, %v108
    %v1683 = vsel %vm112, %v1681, 0.0
    %1684 = vadd.xlane.f32.xlu0 %v1683
    %v1685 = vpop.xlane.xlu0 %1684
    %v1686 = vsel %vm112, %v1682, 0.0
    %1687 = vadd.xlane.f32.xlu0 %v1686
    %v1688 = vpop.xlane.xlu0 %1687
    %v1689 = vmul.f32 %v1685, %v119
    %v1690 = vmul.f32 %v1688, %v119
    %v1691 = vsub.f32 %v1681, %v1689
    %v1692 = vsub.f32 %v1682, %v1690
    %v1693 = vmul.f32 %v1691, %v1691
    %v1694 = vmul.f32 %v1692, %v1692
    %v1695 = vsel %vm112, %v1693, 0.0
    %1696 = vadd.xlane.f32.xlu0 %v1695
    %v1697 = vpop.xlane.xlu0 %1696
    %v1698 = vsel %vm112, %v1694, 0.0
    %1699 = vadd.xlane.f32.xlu0 %v1698
    %v1700 = vpop.xlane.xlu0 %1699
    %v1701 = vmul.f32 %v1697, 0.032258064
    %v1702 = vmul.f32 %v1700, 0.032258064
    %v1703 = vrsqrt.pop %v1701
    %v1704 = vmul.f32 %v1701, %v1703
    %vm1705 = vcmp.eq.f32.partialorder %v1701, inf
    %v1706 = vsel %vm1705, %v1701, %v1704
    %vm1707 = vcmp.eq.f32.partialorder %v1701, 0.0
    %v1708 = vand.u32 %v1701, 2147483648
    %v1709 = vsel %vm1707, %v1708, %v1706
    %v1710 = vrsqrt.pop %v1702
    %v1711 = vmul.f32 %v1702, %v1710
    %vm1712 = vcmp.eq.f32.partialorder %v1702, inf
    %v1713 = vsel %vm1712, %v1702, %v1711
    %vm1714 = vcmp.eq.f32.partialorder %v1702, 0.0
    %v1715 = vand.u32 %v1702, 2147483648
    %v1716 = vsel %vm1714, %v1715, %v1713
    %v1717 = vmul.f32 %v109, %v1691
    %v1718 = vmul.f32 %v109, %v1692
    %v1719 = vadd.f32 %v1709, 1e-06
    %v1720 = vadd.f32 %v1716, 1e-06
    %v1721 = vrcp.pop %v1719
    %v1722 = vrcp.pop %v1720
    %v1723 = vmul.f32 %v1717, %v1721
    %v1724 = vmul.f32 %v1718, %v1722
    %v1725 = vadd.f32 %v1723, %v110
    %v1726 = vadd.f32 %v1724, %v110
    %v1728 = vlaneseq
    %v1729 = vshrl.u32 %v1728, 7
    %v1730 = vsub.s32 0, %v1729
    %v1731 = vrot.slane %v105, %v1730
    %v1732 = vlaneseq
    %v1733 = vshrl.u32 %v1732, 7
    %v1734 = vsub.s32 1, %v1733
    %v1735 = vrot.slane %v105, %v1734
    %v1736 = vlaneseq
    %v1737 = vshrl.u32 %v1736, 7
    %v1738 = vsub.s32 2, %v1737
    %v1739 = vrot.slane %v105, %v1738
    %v1740 = vlaneseq
    %v1741 = vshrl.u32 %v1740, 7
    %v1742 = vsub.s32 3, %v1741
    %v1743 = vrot.slane %v105, %v1742
    %v1749 = vsel %vm112, %v1725, 0
    %v1752 = vsel %vm112, %v1726, 0
    %1754 = vmatprep.subr.mxu0 %v72
    %1755 = vmatpush1.msra.mxu0 %v71
    %1756 = vmatprep.subr.mxu0 %v76
    %1757 = vmatpush1.msra.mxu0 %v75
    %1758 = vmatprep.subr.mxu0 %v80
    %1759 = vmatpush1.msra.mxu0 %v79
    %1760 = vmatprep.subr.mxu0 %v84
    %1761 = vmatpush1.msra.mxu0 %v83
    %1762 = vmatprep.subr.mxu0 0.0
    %1763 = vmatpush1.msra.mxu0 0.0
    %1764 = vmatprep.subr.mxu0 0.0
    %1765 = vmatpush1.msra.mxu0 0.0
    %1766 = vmatprep.subr.mxu0 0.0
    %1767 = vmatpush1.msra.mxu0 0.0
    %1768 = vmatprep.subr.mxu0 0.0
    %1769 = vmatpush1.msra.mxu0 0.0
    %1770 = vmatprep.subr.mxu0 0.0
    %1771 = vmatpush1.msra.mxu0 0.0
    %1772 = vmatprep.subr.mxu0 0.0
    %1773 = vmatpush1.msra.mxu0 0.0
    %1774 = vmatprep.subr.mxu0 0.0
    %1775 = vmatpush1.msra.mxu0 0.0
    %1776 = vmatprep.subr.mxu0 0.0
    %1777 = vmatpush1.msra.mxu0 0.0
    %1778 = vmatprep.subr.mxu0 0.0
    %1779 = vmatpush1.msra.mxu0 0.0
    %1780 = vmatprep.subr.mxu0 0.0
    %1781 = vmatpush1.msra.mxu0 0.0
    %1782 = vmatprep.subr.mxu0 0.0
    %1783 = vmatpush1.msra.mxu0 0.0
    %1784 = vmatprep.subr.mxu0 0.0
    %1785 = vmatpush1.msra.mxu0 0.0
    %1786 = vmatprep.subr.mxu0 0.0
    %1787 = vmatpush1.msra.mxu0 0.0
    %1788 = vmatprep.subr.mxu0 0.0
    %1789 = vmatpush1.msra.mxu0 0.0
    %1790 = vmatprep.subr.mxu0 0.0
    %1791 = vmatpush1.msra.mxu0 0.0
    %1792 = vmatprep.subr.mxu0 0.0
    %1793 = vmatpush1.msra.mxu0 0.0
    %1794 = vmatprep.subr.mxu0 0.0
    %1795 = vmatpush1.msra.mxu0 0.0
    %1796 = vmatprep.subr.mxu0 0.0
    %1797 = vmatpush1.msra.mxu0 0.0
    %1798 = vmatprep.subr.mxu0 0.0
    %1799 = vmatpush1.msra.mxu0 0.0
    %1800 = vmatprep.subr.mxu0 0.0
    %1801 = vmatpush1.msra.mxu0 0.0
    %1802 = vmatprep.subr.mxu0 0.0
    %1803 = vmatpush1.msra.mxu0 0.0
    %1804 = vmatprep.subr.mxu0 0.0
    %1805 = vmatpush1.msra.mxu0 0.0
    %1806 = vmatprep.subr.mxu0 0.0
    %1807 = vmatpush1.msra.mxu0 0.0
    %1808 = vmatprep.subr.mxu0 0.0
    %1809 = vmatpush1.msra.mxu0 0.0
    %1810 = vmatprep.subr.mxu0 0.0
    %1811 = vmatpush1.msra.mxu0 0.0
    %1812 = vmatprep.subr.mxu0 0.0
    %1813 = vmatpush1.msra.mxu0 0.0
    %1814 = vmatprep.subr.mxu0 0.0
    %1815 = vmatpush1.msra.mxu0 0.0
    %1816 = vmatprep.subr.mxu0 0.0
    %1817 = vmatpush1.msra.mxu0 0.0
    %1818 = vmatprep.mubr.f32.mxu0 0.0
    %1819 = vmatmul.mubr.f32.gmra.mrb[0].mxu0 %v1749
    %v1820 = vpop.f32.mrb[0].mxu0
    %v1821 = vadd.f32 %v1731, %v1820
    %v1822 = vpop.f32.mrb[0].mxu0
    %v1823 = vadd.f32 %v1735, %v1822
    %1824 = vmatprep.mubr.f32.mxu0 0.0
    %1825 = vmatmul.mubr.f32.gmra.mrb[0].mxu0 %v1752
    %v1826 = vpop.f32.mrb[0].mxu0
    %v1827 = vadd.f32 %v1731, %v1826
    %v1828 = vpop.f32.mrb[0].mxu0
    %v1829 = vadd.f32 %v1735, %v1828
    %1830 = vdwg.mxu0
    %1831 = vmatprep.subr.mxu0 %v74
    %1832 = vmatpush1.msra.mxu0 %v73
    %1833 = vmatprep.subr.mxu0 %v78
    %1834 = vmatpush1.msra.mxu0 %v77
    %1835 = vmatprep.subr.mxu0 %v82
    %1836 = vmatpush1.msra.mxu0 %v81
    %1837 = vmatprep.subr.mxu0 %v86
    %1838 = vmatpush1.msra.mxu0 %v85
    %1839 = vmatprep.subr.mxu0 0.0
    %1840 = vmatpush1.msra.mxu0 0.0
    %1841 = vmatprep.subr.mxu0 0.0
    %1842 = vmatpush1.msra.mxu0 0.0
    %1843 = vmatprep.subr.mxu0 0.0
    %1844 = vmatpush1.msra.mxu0 0.0
    %1845 = vmatprep.subr.mxu0 0.0
    %1846 = vmatpush1.msra.mxu0 0.0
    %1847 = vmatprep.subr.mxu0 0.0
    %1848 = vmatpush1.msra.mxu0 0.0
    %1849 = vmatprep.subr.mxu0 0.0
    %1850 = vmatpush1.msra.mxu0 0.0
    %1851 = vmatprep.subr.mxu0 0.0
    %1852 = vmatpush1.msra.mxu0 0.0
    %1853 = vmatprep.subr.mxu0 0.0
    %1854 = vmatpush1.msra.mxu0 0.0
    %1855 = vmatprep.subr.mxu0 0.0
    %1856 = vmatpush1.msra.mxu0 0.0
    %1857 = vmatprep.subr.mxu0 0.0
    %1858 = vmatpush1.msra.mxu0 0.0
    %1859 = vmatprep.subr.mxu0 0.0
    %1860 = vmatpush1.msra.mxu0 0.0
    %1861 = vmatprep.subr.mxu0 0.0
    %1862 = vmatpush1.msra.mxu0 0.0
    %1863 = vmatprep.subr.mxu0 0.0
    %1864 = vmatpush1.msra.mxu0 0.0
    %1865 = vmatprep.subr.mxu0 0.0
    %1866 = vmatpush1.msra.mxu0 0.0
    %1867 = vmatprep.subr.mxu0 0.0
    %1868 = vmatpush1.msra.mxu0 0.0
    %1869 = vmatprep.subr.mxu0 0.0
    %1870 = vmatpush1.msra.mxu0 0.0
    %1871 = vmatprep.subr.mxu0 0.0
    %1872 = vmatpush1.msra.mxu0 0.0
    %1873 = vmatprep.subr.mxu0 0.0
    %1874 = vmatpush1.msra.mxu0 0.0
    %1875 = vmatprep.subr.mxu0 0.0
    %1876 = vmatpush1.msra.mxu0 0.0
    %1877 = vmatprep.subr.mxu0 0.0
    %1878 = vmatpush1.msra.mxu0 0.0
    %1879 = vmatprep.subr.mxu0 0.0
    %1880 = vmatpush1.msra.mxu0 0.0
    %1881 = vmatprep.subr.mxu0 0.0
    %1882 = vmatpush1.msra.mxu0 0.0
    %1883 = vmatprep.subr.mxu0 0.0
    %1884 = vmatpush1.msra.mxu0 0.0
    %1885 = vmatprep.subr.mxu0 0.0
    %1886 = vmatpush1.msra.mxu0 0.0
    %1887 = vmatprep.subr.mxu0 0.0
    %1888 = vmatpush1.msra.mxu0 0.0
    %1889 = vmatprep.subr.mxu0 0.0
    %1890 = vmatpush1.msra.mxu0 0.0
    %1891 = vmatprep.subr.mxu0 0.0
    %1892 = vmatpush1.msra.mxu0 0.0
    %1893 = vmatprep.subr.mxu0 0.0
    %1894 = vmatpush1.msra.mxu0 0.0
    %1895 = vmatprep.mubr.f32.mxu0 0.0
    %1896 = vmatmul.mubr.f32.gmra.mrb[0].mxu0 %v1749
    %v1897 = vpop.f32.mrb[0].mxu0
    %v1898 = vadd.f32 %v1739, %v1897
    %v1899 = vpop.f32.mrb[0].mxu0
    %v1900 = vadd.f32 %v1743, %v1899
    %1901 = vmatprep.mubr.f32.mxu0 0.0
    %1902 = vmatmul.mubr.f32.gmra.mrb[0].mxu0 %v1752
    %v1903 = vpop.f32.mrb[0].mxu0
    %v1904 = vadd.f32 %v1739, %v1903
    %v1905 = vpop.f32.mrb[0].mxu0
    %v1906 = vadd.f32 %v1743, %v1905
    %1907 = vdwg.mxu0
    %v1908 = vmax.f32 %v1821, 0.0
    %v1909 = vmax.f32 %v1823, 0.0
    %v1910 = vmax.f32 %v1898, 0.0
    %v1911 = vmax.f32 %v1900, 0.0
    %v1912 = vmax.f32 %v1827, 0.0
    %v1913 = vmax.f32 %v1829, 0.0
    %v1914 = vmax.f32 %v1904, 0.0
    %v1915 = vmax.f32 %v1906, 0.0
    %1916 = vmatprep.subr.mxu0 %v88
    %1917 = vmatpush1.xpose.msra.mxu0 %v87
    %1918 = vmatprep.subr.mxu0 %v92
    %1919 = vmatpush1.xpose.msra.mxu0 %v91
    %1920 = vmatprep.subr.mxu0 %v96
    %1921 = vmatpush1.xpose.msra.mxu0 %v95
    %1922 = vmatprep.subr.mxu0 %v100
    %1923 = vmatpush1.xpose.msra.mxu0 %v99
    %1924 = vmatprep.subr.mxu0 0.0
    %1925 = vmatpush1.xpose.msra.mxu0 0.0
    %1926 = vmatprep.subr.mxu0 0.0
    %1927 = vmatpush1.xpose.msra.mxu0 0.0
    %1928 = vmatprep.subr.mxu0 0.0
    %1929 = vmatpush1.xpose.msra.mxu0 0.0
    %1930 = vmatprep.subr.mxu0 0.0
    %1931 = vmatpush1.xpose.msra.mxu0 0.0
    %1932 = vmatprep.subr.mxu0 0.0
    %1933 = vmatpush1.xpose.msra.mxu0 0.0
    %1934 = vmatprep.subr.mxu0 0.0
    %1935 = vmatpush1.xpose.msra.mxu0 0.0
    %1936 = vmatprep.subr.mxu0 0.0
    %1937 = vmatpush1.xpose.msra.mxu0 0.0
    %1938 = vmatprep.subr.mxu0 0.0
    %1939 = vmatpush1.xpose.msra.mxu0 0.0
    %1940 = vmatprep.subr.mxu0 0.0
    %1941 = vmatpush1.xpose.msra.mxu0 0.0
    %1942 = vmatprep.subr.mxu0 0.0
    %1943 = vmatpush1.xpose.msra.mxu0 0.0
    %1944 = vmatprep.subr.mxu0 0.0
    %1945 = vmatpush1.xpose.msra.mxu0 0.0
    %1946 = vmatprep.subr.mxu0 0.0
    %1947 = vmatpush1.xpose.msra.mxu0 0.0
    %1948 = vmatprep.subr.mxu0 0.0
    %1949 = vmatpush1.xpose.msra.mxu0 0.0
    %1950 = vmatprep.subr.mxu0 0.0
    %1951 = vmatpush1.xpose.msra.mxu0 0.0
    %1952 = vmatprep.subr.mxu0 0.0
    %1953 = vmatpush1.xpose.msra.mxu0 0.0
    %1954 = vmatprep.subr.mxu0 0.0
    %1955 = vmatpush1.xpose.msra.mxu0 0.0
    %1956 = vmatprep.subr.mxu0 0.0
    %1957 = vmatpush1.xpose.msra.mxu0 0.0
    %1958 = vmatprep.subr.mxu0 0.0
    %1959 = vmatpush1.xpose.msra.mxu0 0.0
    %1960 = vmatprep.subr.mxu0 0.0
    %1961 = vmatpush1.xpose.msra.mxu0 0.0
    %1962 = vmatprep.subr.mxu0 0.0
    %1963 = vmatpush1.xpose.msra.mxu0 0.0
    %1964 = vmatprep.subr.mxu0 0.0
    %1965 = vmatpush1.xpose.msra.mxu0 0.0
    %1966 = vmatprep.subr.mxu0 0.0
    %1967 = vmatpush1.xpose.msra.mxu0 0.0
    %1968 = vmatprep.subr.mxu0 0.0
    %1969 = vmatpush1.xpose.msra.mxu0 0.0
    %1970 = vmatprep.subr.mxu0 0.0
    %1971 = vmatpush1.xpose.msra.mxu0 0.0
    %1972 = vmatprep.subr.mxu0 0.0
    %1973 = vmatpush1.xpose.msra.mxu0 0.0
    %1974 = vmatprep.subr.mxu0 0.0
    %1975 = vmatpush1.xpose.msra.mxu0 0.0
    %1976 = vmatprep.subr.mxu0 0.0
    %1977 = vmatpush1.xpose.msra.mxu0 0.0
    %1978 = vmatprep.subr.mxu0 0.0
    %1979 = vmatpush1.xpose.msra.mxu0 0.0
    %1980 = vmatprep.mubr.f32.mxu0 %v1909
    %1981 = vmatmul.mubr.f32.gmra.mrb[0].mxu0 %v1908
    %v1982 = vpop.f32.mrb[0].mxu0
    %v1983 = vadd.f32 %v111, %v1982
    %v1984 = vpop.f32.mrb[0].mxu0
    %1985 = vmatprep.mubr.f32.mxu0 %v1913
    %1986 = vmatmul.mubr.f32.gmra.mrb[0].mxu0 %v1912
    %v1987 = vpop.f32.mrb[0].mxu0
    %v1988 = vadd.f32 %v111, %v1987
    %v1989 = vpop.f32.mrb[0].mxu0
    %1990 = vdwg.mxu0
    %1991 = vmatprep.subr.mxu0 %v90
    %1992 = vmatpush1.xpose.msra.mxu0 %v89
    %1993 = vmatprep.subr.mxu0 %v94
    %1994 = vmatpush1.xpose.msra.mxu0 %v93
    %1995 = vmatprep.subr.mxu0 %v98
    %1996 = vmatpush1.xpose.msra.mxu0 %v97
    %1997 = vmatprep.subr.mxu0 %v102
    %1998 = vmatpush1.xpose.msra.mxu0 %v101
    %1999 = vmatprep.subr.mxu0 0.0
    %2000 = vmatpush1.xpose.msra.mxu0 0.0
    %2001 = vmatprep.subr.mxu0 0.0
    %2002 = vmatpush1.xpose.msra.mxu0 0.0
    %2003 = vmatprep.subr.mxu0 0.0
    %2004 = vmatpush1.xpose.msra.mxu0 0.0
    %2005 = vmatprep.subr.mxu0 0.0
    %2006 = vmatpush1.xpose.msra.mxu0 0.0
    %2007 = vmatprep.subr.mxu0 0.0
    %2008 = vmatpush1.xpose.msra.mxu0 0.0
    %2009 = vmatprep.subr.mxu0 0.0
    %2010 = vmatpush1.xpose.msra.mxu0 0.0
    %2011 = vmatprep.subr.mxu0 0.0
    %2012 = vmatpush1.xpose.msra.mxu0 0.0
    %2013 = vmatprep.subr.mxu0 0.0
    %2014 = vmatpush1.xpose.msra.mxu0 0.0
    %2015 = vmatprep.subr.mxu0 0.0
    %2016 = vmatpush1.xpose.msra.mxu0 0.0
    %2017 = vmatprep.subr.mxu0 0.0
    %2018 = vmatpush1.xpose.msra.mxu0 0.0
    %2019 = vmatprep.subr.mxu0 0.0
    %2020 = vmatpush1.xpose.msra.mxu0 0.0
    %2021 = vmatprep.subr.mxu0 0.0
    %2022 = vmatpush1.xpose.msra.mxu0 0.0
    %2023 = vmatprep.subr.mxu0 0.0
    %2024 = vmatpush1.xpose.msra.mxu0 0.0
    %2025 = vmatprep.subr.mxu0 0.0
    %2026 = vmatpush1.xpose.msra.mxu0 0.0
    %2027 = vmatprep.subr.mxu0 0.0
    %2028 = vmatpush1.xpose.msra.mxu0 0.0
    %2029 = vmatprep.subr.mxu0 0.0
    %2030 = vmatpush1.xpose.msra.mxu0 0.0
    %2031 = vmatprep.subr.mxu0 0.0
    %2032 = vmatpush1.xpose.msra.mxu0 0.0
    %2033 = vmatprep.subr.mxu0 0.0
    %2034 = vmatpush1.xpose.msra.mxu0 0.0
    %2035 = vmatprep.subr.mxu0 0.0
    %2036 = vmatpush1.xpose.msra.mxu0 0.0
    %2037 = vmatprep.subr.mxu0 0.0
    %2038 = vmatpush1.xpose.msra.mxu0 0.0
    %2039 = vmatprep.subr.mxu0 0.0
    %2040 = vmatpush1.xpose.msra.mxu0 0.0
    %2041 = vmatprep.subr.mxu0 0.0
    %2042 = vmatpush1.xpose.msra.mxu0 0.0
    %2043 = vmatprep.subr.mxu0 0.0
    %2044 = vmatpush1.xpose.msra.mxu0 0.0
    %2045 = vmatprep.subr.mxu0 0.0
    %2046 = vmatpush1.xpose.msra.mxu0 0.0
    %2047 = vmatprep.subr.mxu0 0.0
    %2048 = vmatpush1.xpose.msra.mxu0 0.0
    %2049 = vmatprep.subr.mxu0 0.0
    %2050 = vmatpush1.xpose.msra.mxu0 0.0
    %2051 = vmatprep.subr.mxu0 0.0
    %2052 = vmatpush1.xpose.msra.mxu0 0.0
    %2053 = vmatprep.subr.mxu0 0.0
    %2054 = vmatpush1.xpose.msra.mxu0 0.0
    %2055 = vmatprep.mubr.f32.mxu0 %v1911
    %2056 = vmatmul.mubr.f32.gmra.mrb[0].mxu0 %v1910
    %v2057 = vpop.f32.mrb[0].mxu0
    %v2058 = vadd.f32 %v1983, %v2057
    %v2059 = vpop.f32.mrb[0].mxu0
    %2060 = vmatprep.mubr.f32.mxu0 %v1915
    %2061 = vmatmul.mubr.f32.gmra.mrb[0].mxu0 %v1914
    %v2062 = vpop.f32.mrb[0].mxu0
    %v2063 = vadd.f32 %v1988, %v2062
    %v2064 = vpop.f32.mrb[0].mxu0
    %2065 = vdwg.mxu0
    %v2066 = vadd.f32 %v1681, %v2058
    %v2067 = vadd.f32 %v1682, %v2063
    %v2068 = vld [vmem:[#allocation5 + $0x200] sm:$0xff]
    %v2069 = vld [vmem:[#allocation5 + $0x220] sm:$0xff]
    %v2070 = vld [vmem:[#allocation5 + $0x240] sm:$0xff]
    %v2071 = vld [vmem:[#allocation5 + $0x260] sm:$0xff]
    %v2072 = vld [vmem:[#allocation5 + $0x280] sm:$0xff]
    %v2073 = vld [vmem:[#allocation5 + $0x2a0] sm:$0xff]
    %v2074 = vld [vmem:[#allocation5 + $0x2c0] sm:$0xff]
    %v2075 = vld [vmem:[#allocation5 + $0x2e0] sm:$0xff]
    %v2076 = vld [vmem:[#allocation5 + $0x300] sm:$0xff]
    %v2077 = vld [vmem:[#allocation5 + $0x308] sm:$0xff]
    %v2078 = vld [vmem:[#allocation5 + $0x310] sm:$0xff]
    %v2079 = vld [vmem:[#allocation5 + $0x318] sm:$0xff]
    %v2080 = vld [vmem:[#allocation5 + $0x320] sm:$0xff]
    %v2081 = vld [vmem:[#allocation5 + $0x328] sm:$0xff]
    %v2082 = vld [vmem:[#allocation5 + $0x330] sm:$0xff]
    %v2083 = vld [vmem:[#allocation5 + $0x338] sm:$0xff]
    %v2084 = vld [vmem:[#allocation5 + $0x340] sm:$0xff]
    %v2085 = vld [vmem:[#allocation5 + $0x348] sm:$0xff]
    %v2086 = vld [vmem:[#allocation5 + $0x350] sm:$0xff]
    %v2087 = vld [vmem:[#allocation5 + $0x358] sm:$0xff]
    %v2088 = vld [vmem:[#allocation5 + $0x360] sm:$0xff]
    %v2089 = vld [vmem:[#allocation5 + $0x368] sm:$0xff]
    %v2090 = vld [vmem:[#allocation5 + $0x370] sm:$0xff]
    %v2091 = vld [vmem:[#allocation5 + $0x378] sm:$0xff]
    %v2092 = vld [vmem:[#allocation5 + $0x380] sm:$0xff]
    %v2093 = vld [vmem:[#allocation5 + $0x388] sm:$0xff]
    %v2094 = vld [vmem:[#allocation5 + $0x390] sm:$0xff]
    %v2095 = vld [vmem:[#allocation5 + $0x398] sm:$0xff]
    %v2096 = vld [vmem:[#allocation5 + $0x3a0] sm:$0xff]
    %v2097 = vld [vmem:[#allocation5 + $0x3a8] sm:$0xff]
    %v2098 = vld [vmem:[#allocation5 + $0x3b0] sm:$0xff]
    %v2099 = vld [vmem:[#allocation5 + $0x3b8] sm:$0xff]
    %v2100 = vld [vmem:[#allocation5 + $0x3c0] sm:$0xff]
    %v2101 = vld [vmem:[#allocation5 + $0x3c8] sm:$0xff]
    %v2102 = vld [vmem:[#allocation5 + $0x3d0] sm:$0xff]
    %v2103 = vld [vmem:[#allocation5 + $0x3d8] sm:$0xff]
    %v2104 = vld [vmem:[#allocation5 + $0x3e0] sm:$0xff]
    %v2105 = vld [vmem:[#allocation5 + $0x3e8] sm:$0xff]
    %v2106 = vld [vmem:[#allocation5 + $0x3f0] sm:$0xff]
    %v2107 = vld [vmem:[#allocation5 + $0x3f8] sm:$0xff]
    %v2108 = vld [vmem:[#allocation7 + $0x40] ss:$0 sm:$0xff]
    %s2109 = scalar_lea.vmem [#allocation7], 65
    %v2110 = vld [vmem:[%s2109] ss:$8 sm:$0xf]
    %v2111 = vld [vmem:[#allocation7 + $0x42] ss:$0 sm:$0xff]
    %v2112 = vld [vmem:[#allocation7 + $0x43] ss:$0 sm:$0xff]
    %v2113 = vld [vmem:[#allocation7 + $0x44] ss:$0 sm:$0xff]
    %v2114 = vld [vmem:[#allocation7 + $0x45] ss:$0 sm:$0xff]
    %v2115 = vld [vmem:[#allocation7 + $0x46] ss:$0 sm:$0xff]
    %v2116 = vld [vmem:[#allocation7 + $0x47] ss:$0 sm:$0xff]
    %v2117 = vsel %vm112, %v2066, 0.0
    %2118 = vadd.xlane.f32.xlu0 %v2117
    %v2119 = vpop.xlane.xlu0 %2118
    %v2120 = vsel %vm112, %v2067, 0.0
    %2121 = vadd.xlane.f32.xlu0 %v2120
    %v2122 = vpop.xlane.xlu0 %2121
    %v2123 = vmul.f32 %v2119, %v119
    %v2124 = vmul.f32 %v2122, %v119
    %v2125 = vsub.f32 %v2066, %v2123
    %v2126 = vsub.f32 %v2067, %v2124
    %v2127 = vmul.f32 %v2125, %v2125
    %v2128 = vmul.f32 %v2126, %v2126
    %v2129 = vsel %vm112, %v2127, 0.0
    %2130 = vadd.xlane.f32.xlu0 %v2129
    %v2131 = vpop.xlane.xlu0 %2130
    %v2132 = vsel %vm112, %v2128, 0.0
    %2133 = vadd.xlane.f32.xlu0 %v2132
    %v2134 = vpop.xlane.xlu0 %2133
    %v2135 = vmul.f32 %v2131, 0.032258064
    %v2136 = vmul.f32 %v2134, 0.032258064
    %v2137 = vrsqrt.pop %v2135
    %v2138 = vmul.f32 %v2135, %v2137
    %vm2139 = vcmp.eq.f32.partialorder %v2135, inf
    %v2140 = vsel %vm2139, %v2135, %v2138
    %vm2141 = vcmp.eq.f32.partialorder %v2135, 0.0
    %v2142 = vand.u32 %v2135, 2147483648
    %v2143 = vsel %vm2141, %v2142, %v2140
    %v2144 = vrsqrt.pop %v2136
    %v2145 = vmul.f32 %v2136, %v2144
    %vm2146 = vcmp.eq.f32.partialorder %v2136, inf
    %v2147 = vsel %vm2146, %v2136, %v2145
    %vm2148 = vcmp.eq.f32.partialorder %v2136, 0.0
    %v2149 = vand.u32 %v2136, 2147483648
    %v2150 = vsel %vm2148, %v2149, %v2147
    %v2151 = vmul.f32 %v2111, %v2125
    %v2152 = vmul.f32 %v2111, %v2126
    %v2153 = vadd.f32 %v2143, 1e-06
    %v2154 = vadd.f32 %v2150, 1e-06
    %v2155 = vrcp.pop %v2153
    %v2156 = vrcp.pop %v2154
    %v2157 = vmul.f32 %v2151, %v2155
    %v2158 = vmul.f32 %v2152, %v2156
    %v2159 = vadd.f32 %v2157, %v2112
    %v2160 = vadd.f32 %v2158, %v2112
    %v2162 = vsel %vm112, %v2159, 0
    %v2165 = vsel %vm112, %v2160, 0
    %2167 = vmatprep.subr.mxu0 0.0
    %2168 = vmatpush1.msra.mxu0 %v2068
    %2169 = vmatprep.subr.mxu0 0.0
    %2170 = vmatpush1.msra.mxu0 %v2069
    %2171 = vmatprep.subr.mxu0 0.0
    %2172 = vmatpush1.msra.mxu0 %v2070
    %2173 = vmatprep.subr.mxu0 0.0
    %2174 = vmatpush1.msra.mxu0 %v2071
    %2175 = vmatprep.subr.mxu0 0.0
    %2176 = vmatpush1.msra.mxu0 0.0
    %2177 = vmatprep.subr.mxu0 0.0
    %2178 = vmatpush1.msra.mxu0 0.0
    %2179 = vmatprep.subr.mxu0 0.0
    %2180 = vmatpush1.msra.mxu0 0.0
    %2181 = vmatprep.subr.mxu0 0.0
    %2182 = vmatpush1.msra.mxu0 0.0
    %2183 = vmatprep.subr.mxu0 0.0
    %2184 = vmatpush1.msra.mxu0 0.0
    %2185 = vmatprep.subr.mxu0 0.0
    %2186 = vmatpush1.msra.mxu0 0.0
    %2187 = vmatprep.subr.mxu0 0.0
    %2188 = vmatpush1.msra.mxu0 0.0
    %2189 = vmatprep.subr.mxu0 0.0
    %2190 = vmatpush1.msra.mxu0 0.0
    %2191 = vmatprep.subr.mxu0 0.0
    %2192 = vmatpush1.msra.mxu0 0.0
    %2193 = vmatprep.subr.mxu0 0.0
    %2194 = vmatpush1.msra.mxu0 0.0
    %2195 = vmatprep.subr.mxu0 0.0
    %2196 = vmatpush1.msra.mxu0 0.0
    %2197 = vmatprep.subr.mxu0 0.0
    %2198 = vmatpush1.msra.mxu0 0.0
    %2199 = vmatprep.subr.mxu0 0.0
    %2200 = vmatpush1.msra.mxu0 0.0
    %2201 = vmatprep.subr.mxu0 0.0
    %2202 = vmatpush1.msra.mxu0 0.0
    %2203 = vmatprep.subr.mxu0 0.0
    %2204 = vmatpush1.msra.mxu0 0.0
    %2205 = vmatprep.subr.mxu0 0.0
    %2206 = vmatpush1.msra.mxu0 0.0
    %2207 = vmatprep.subr.mxu0 0.0
    %2208 = vmatpush1.msra.mxu0 0.0
    %2209 = vmatprep.subr.mxu0 0.0
    %2210 = vmatpush1.msra.mxu0 0.0
    %2211 = vmatprep.subr.mxu0 0.0
    %2212 = vmatpush1.msra.mxu0 0.0
    %2213 = vmatprep.subr.mxu0 0.0
    %2214 = vmatpush1.msra.mxu0 0.0
    %2215 = vmatprep.subr.mxu0 0.0
    %2216 = vmatpush1.msra.mxu0 0.0
    %2217 = vmatprep.subr.mxu0 0.0
    %2218 = vmatpush1.msra.mxu0 0.0
    %2219 = vmatprep.subr.mxu0 0.0
    %2220 = vmatpush1.msra.mxu0 0.0
    %2221 = vmatprep.subr.mxu0 0.0
    %2222 = vmatpush1.msra.mxu0 0.0
    %2223 = vmatprep.subr.mxu0 0.0
    %2224 = vmatpush1.msra.mxu0 0.0
    %2225 = vmatprep.subr.mxu0 0.0
    %2226 = vmatpush1.msra.mxu0 0.0
    %2227 = vmatprep.subr.mxu0 0.0
    %2228 = vmatpush1.msra.mxu0 0.0
    %2229 = vmatprep.subr.mxu0 0.0
    %2230 = vmatpush1.msra.mxu0 0.0
    %2231 = vmatprep.mubr.f32.mxu0 0.0
    %2232 = vmatmul.mubr.f32.gmra.mrb[0].mxu0 %v2162
    %v2233 = vpop.f32.mrb[0].mxu0
    %v2234 = vadd.f32 %v2108, %v2233
    %v2235 = vpop.f32.mrb[0].mxu0
    %2236 = vmatprep.mubr.f32.mxu0 0.0
    %2237 = vmatmul.mubr.f32.gmra.mrb[0].mxu0 %v2165
    %v2238 = vpop.f32.mrb[0].mxu0
    %v2239 = vadd.f32 %v2108, %v2238
    %v2240 = vpop.f32.mrb[0].mxu0
    %2241 = vdwg.mxu0
    %2243 = vrot.lane.b32.xlu0 %v2234, 96
    %v2244 = vpop.permute.xlu0 %2243
    %v2245 = vsel %vm242, %v2234, 0
    %v2247 = vsel %vm242, %v2244, 0
    %2249 = vmatprep.subr.mxu0 0.0
    %2250 = vmatpush1.xpose.msra.mxu0 %v2247
    %2251 = vmatprep.subr.mxu0 0.0
    %2252 = vmatpush1.xpose.msra.mxu0 0.0
    %2253 = vmatprep.subr.mxu0 0.0
    %2254 = vmatpush1.xpose.msra.mxu0 0.0
    %2255 = vmatprep.subr.mxu0 0.0
    %2256 = vmatpush1.xpose.msra.mxu0 0.0
    %2257 = vmatprep.subr.mxu0 0.0
    %2258 = vmatpush1.xpose.msra.mxu0 0.0
    %2259 = vmatprep.subr.mxu0 0.0
    %2260 = vmatpush1.xpose.msra.mxu0 0.0
    %2261 = vmatprep.subr.mxu0 0.0
    %2262 = vmatpush1.xpose.msra.mxu0 0.0
    %2263 = vmatprep.subr.mxu0 0.0
    %2264 = vmatpush1.xpose.msra.mxu0 0.0
    %2265 = vmatprep.subr.mxu0 0.0
    %2266 = vmatpush1.xpose.msra.mxu0 0.0
    %2267 = vmatprep.subr.mxu0 0.0
    %2268 = vmatpush1.xpose.msra.mxu0 0.0
    %2269 = vmatprep.subr.mxu0 0.0
    %2270 = vmatpush1.xpose.msra.mxu0 0.0
    %2271 = vmatprep.subr.mxu0 0.0
    %2272 = vmatpush1.xpose.msra.mxu0 0.0
    %2273 = vmatprep.subr.mxu0 0.0
    %2274 = vmatpush1.xpose.msra.mxu0 0.0
    %2275 = vmatprep.subr.mxu0 0.0
    %2276 = vmatpush1.xpose.msra.mxu0 0.0
    %2277 = vmatprep.subr.mxu0 0.0
    %2278 = vmatpush1.xpose.msra.mxu0 0.0
    %2279 = vmatprep.subr.mxu0 0.0
    %2280 = vmatpush1.xpose.msra.mxu0 0.0
    %2281 = vmatprep.subr.mxu0 0.0
    %2282 = vmatpush1.xpose.msra.mxu0 0.0
    %2283 = vmatprep.subr.mxu0 0.0
    %2284 = vmatpush1.xpose.msra.mxu0 0.0
    %2285 = vmatprep.subr.mxu0 0.0
    %2286 = vmatpush1.xpose.msra.mxu0 0.0
    %2287 = vmatprep.subr.mxu0 0.0
    %2288 = vmatpush1.xpose.msra.mxu0 0.0
    %2289 = vmatprep.subr.mxu0 0.0
    %2290 = vmatpush1.xpose.msra.mxu0 0.0
    %2291 = vmatprep.subr.mxu0 0.0
    %2292 = vmatpush1.xpose.msra.mxu0 0.0
    %2293 = vmatprep.subr.mxu0 0.0
    %2294 = vmatpush1.xpose.msra.mxu0 0.0
    %2295 = vmatprep.subr.mxu0 0.0
    %2296 = vmatpush1.xpose.msra.mxu0 0.0
    %2297 = vmatprep.subr.mxu0 0.0
    %2298 = vmatpush1.xpose.msra.mxu0 0.0
    %2299 = vmatprep.subr.mxu0 0.0
    %2300 = vmatpush1.xpose.msra.mxu0 0.0
    %2301 = vmatprep.subr.mxu0 0.0
    %2302 = vmatpush1.xpose.msra.mxu0 0.0
    %2303 = vmatprep.subr.mxu0 0.0
    %2304 = vmatpush1.xpose.msra.mxu0 0.0
    %2305 = vmatprep.subr.mxu0 0.0
    %2306 = vmatpush1.xpose.msra.mxu0 0.0
    %2307 = vmatprep.subr.mxu0 0.0
    %2308 = vmatpush1.xpose.msra.mxu0 0.0
    %2309 = vmatprep.subr.mxu0 0.0
    %2310 = vmatpush1.xpose.msra.mxu0 0.0
    %2311 = vmatprep.subr.mxu0 0.0
    %2312 = vmatpush1.xpose.msra.mxu0 0.0
    %2313 = vmatprep.mubr.f32.mxu0 0.0
    %2314 = vmatmul.mubr.f32.gmra.mrb[0].mxu0 %v2245
    %v2315 = vpop.f32.mrb[0].mxu0
    %v2316 = vadd.f32 0.0, %v2315
    %v2317 = vpop.f32.mrb[0].mxu0
    %2318 = vdwg.mxu0
    %v2319 = vmul.f32 %v2316, 0.35355338
    %v2320 = vsel %vm242, %v2319, -inf
    %2321 = vmax.xlane.f32.xlu0 %v2320
    %v2322 = vpop.xlane.xlu0 %2321
    %v2323 = vsub.f32 %v2319, %v2322
    %v2324 = vmul.f32 %v2323, 1.442695
    %v2325 = vpow.pop %v2324
    %v2326 = vsel %vm242, %v2325, 0.0
    %2327 = vadd.xlane.f32.xlu0 %v2326
    %v2328 = vpop.xlane.xlu0 %2327
    %v2329 = vrcp.pop %v2328
    %v2330 = vmul.f32 %v2325, %v2329
    %2331 = vrot.lane.b32.xlu0 %v2234, 64
    %v2332 = vpop.permute.xlu0 %2331
    %v2335 = vsel %vm242, %v2330, 0
    %2337 = vmatprep.subr.mxu0 0.0
    %2338 = vmatpush1.msra.mxu0 %v2332
    %2339 = vmatprep.subr.mxu0 0.0
    %2340 = vmatpush1.msra.mxu0 0.0
    %2341 = vmatprep.subr.mxu0 0.0
    %2342 = vmatpush1.msra.mxu0 0.0
    %2343 = vmatprep.subr.mxu0 0.0
    %2344 = vmatpush1.msra.mxu0 0.0
    %2345 = vmatprep.subr.mxu0 0.0
    %2346 = vmatpush1.msra.mxu0 0.0
    %2347 = vmatprep.subr.mxu0 0.0
    %2348 = vmatpush1.msra.mxu0 0.0
    %2349 = vmatprep.subr.mxu0 0.0
    %2350 = vmatpush1.msra.mxu0 0.0
    %2351 = vmatprep.subr.mxu0 0.0
    %2352 = vmatpush1.msra.mxu0 0.0
    %2353 = vmatprep.subr.mxu0 0.0
    %2354 = vmatpush1.msra.mxu0 0.0
    %2355 = vmatprep.subr.mxu0 0.0
    %2356 = vmatpush1.msra.mxu0 0.0
    %2357 = vmatprep.subr.mxu0 0.0
    %2358 = vmatpush1.msra.mxu0 0.0
    %2359 = vmatprep.subr.mxu0 0.0
    %2360 = vmatpush1.msra.mxu0 0.0
    %2361 = vmatprep.subr.mxu0 0.0
    %2362 = vmatpush1.msra.mxu0 0.0
    %2363 = vmatprep.subr.mxu0 0.0
    %2364 = vmatpush1.msra.mxu0 0.0
    %2365 = vmatprep.subr.mxu0 0.0
    %2366 = vmatpush1.msra.mxu0 0.0
    %2367 = vmatprep.subr.mxu0 0.0
    %2368 = vmatpush1.msra.mxu0 0.0
    %2369 = vmatprep.subr.mxu0 0.0
    %2370 = vmatpush1.msra.mxu0 0.0
    %2371 = vmatprep.subr.mxu0 0.0
    %2372 = vmatpush1.msra.mxu0 0.0
    %2373 = vmatprep.subr.mxu0 0.0
    %2374 = vmatpush1.msra.mxu0 0.0
    %2375 = vmatprep.subr.mxu0 0.0
    %2376 = vmatpush1.msra.mxu0 0.0
    %2377 = vmatprep.subr.mxu0 0.0
    %2378 = vmatpush1.msra.mxu0 0.0
    %2379 = vmatprep.subr.mxu0 0.0
    %2380 = vmatpush1.msra.mxu0 0.0
    %2381 = vmatprep.subr.mxu0 0.0
    %2382 = vmatpush1.msra.mxu0 0.0
    %2383 = vmatprep.subr.mxu0 0.0
    %2384 = vmatpush1.msra.mxu0 0.0
    %2385 = vmatprep.subr.mxu0 0.0
    %2386 = vmatpush1.msra.mxu0 0.0
    %2387 = vmatprep.subr.mxu0 0.0
    %2388 = vmatpush1.msra.mxu0 0.0
    %2389 = vmatprep.subr.mxu0 0.0
    %2390 = vmatpush1.msra.mxu0 0.0
    %2391 = vmatprep.subr.mxu0 0.0
    %2392 = vmatpush1.msra.mxu0 0.0
    %2393 = vmatprep.subr.mxu0 0.0
    %2394 = vmatpush1.msra.mxu0 0.0
    %2395 = vmatprep.subr.mxu0 0.0
    %2396 = vmatpush1.msra.mxu0 0.0
    %2397 = vmatprep.subr.mxu0 0.0
    %2398 = vmatpush1.msra.mxu0 0.0
    %2399 = vmatprep.subr.mxu0 0.0
    %2400 = vmatpush1.msra.mxu0 0.0
    %2401 = vmatprep.mubr.f32.mxu0 0.0
    %2402 = vmatmul.mubr.f32.gmra.mrb[0].mxu0 %v2335
    %v2403 = vpop.f32.mrb[0].mxu0
    %v2404 = vadd.f32 0.0, %v2403
    %v2405 = vpop.f32.mrb[0].mxu0
    %2406 = vdwg.mxu0
    %2407 = vrot.lane.b32.xlu0 %v2234, 120
    %v2408 = vpop.permute.xlu0 %2407
    %2409 = vrot.lane.b32.xlu0 %v2234, 88
    %v2410 = vpop.permute.xlu0 %2409
    %v2411 = vsel %vm242, %v2408, 0
    %v2413 = vsel %vm242, %v2410, 0
    %2415 = vmatprep.subr.mxu0 0.0
    %2416 = vmatpush1.xpose.msra.mxu0 %v2413
    %2417 = vmatprep.subr.mxu0 0.0
    %2418 = vmatpush1.xpose.msra.mxu0 0.0
    %2419 = vmatprep.subr.mxu0 0.0
    %2420 = vmatpush1.xpose.msra.mxu0 0.0
    %2421 = vmatprep.subr.mxu0 0.0
    %2422 = vmatpush1.xpose.msra.mxu0 0.0
    %2423 = vmatprep.subr.mxu0 0.0
    %2424 = vmatpush1.xpose.msra.mxu0 0.0
    %2425 = vmatprep.subr.mxu0 0.0
    %2426 = vmatpush1.xpose.msra.mxu0 0.0
    %2427 = vmatprep.subr.mxu0 0.0
    %2428 = vmatpush1.xpose.msra.mxu0 0.0
    %2429 = vmatprep.subr.mxu0 0.0
    %2430 = vmatpush1.xpose.msra.mxu0 0.0
    %2431 = vmatprep.subr.mxu0 0.0
    %2432 = vmatpush1.xpose.msra.mxu0 0.0
    %2433 = vmatprep.subr.mxu0 0.0
    %2434 = vmatpush1.xpose.msra.mxu0 0.0
    %2435 = vmatprep.subr.mxu0 0.0
    %2436 = vmatpush1.xpose.msra.mxu0 0.0
    %2437 = vmatprep.subr.mxu0 0.0
    %2438 = vmatpush1.xpose.msra.mxu0 0.0
    %2439 = vmatprep.subr.mxu0 0.0
    %2440 = vmatpush1.xpose.msra.mxu0 0.0
    %2441 = vmatprep.subr.mxu0 0.0
    %2442 = vmatpush1.xpose.msra.mxu0 0.0
    %2443 = vmatprep.subr.mxu0 0.0
    %2444 = vmatpush1.xpose.msra.mxu0 0.0
    %2445 = vmatprep.subr.mxu0 0.0
    %2446 = vmatpush1.xpose.msra.mxu0 0.0
    %2447 = vmatprep.subr.mxu0 0.0
    %2448 = vmatpush1.xpose.msra.mxu0 0.0
    %2449 = vmatprep.subr.mxu0 0.0
    %2450 = vmatpush1.xpose.msra.mxu0 0.0
    %2451 = vmatprep.subr.mxu0 0.0
    %2452 = vmatpush1.xpose.msra.mxu0 0.0
    %2453 = vmatprep.subr.mxu0 0.0
    %2454 = vmatpush1.xpose.msra.mxu0 0.0
    %2455 = vmatprep.subr.mxu0 0.0
    %2456 = vmatpush1.xpose.msra.mxu0 0.0
    %2457 = vmatprep.subr.mxu0 0.0
    %2458 = vmatpush1.xpose.msra.mxu0 0.0
    %2459 = vmatprep.subr.mxu0 0.0
    %2460 = vmatpush1.xpose.msra.mxu0 0.0
    %2461 = vmatprep.subr.mxu0 0.0
    %2462 = vmatpush1.xpose.msra.mxu0 0.0
    %2463 = vmatprep.subr.mxu0 0.0
    %2464 = vmatpush1.xpose.msra.mxu0 0.0
    %2465 = vmatprep.subr.mxu0 0.0
    %2466 = vmatpush1.xpose.msra.mxu0 0.0
    %2467 = vmatprep.subr.mxu0 0.0
    %2468 = vmatpush1.xpose.msra.mxu0 0.0
    %2469 = vmatprep.subr.mxu0 0.0
    %2470 = vmatpush1.xpose.msra.mxu0 0.0
    %2471 = vmatprep.subr.mxu0 0.0
    %2472 = vmatpush1.xpose.msra.mxu0 0.0
    %2473 = vmatprep.subr.mxu0 0.0
    %2474 = vmatpush1.xpose.msra.mxu0 0.0
    %2475 = vmatprep.subr.mxu0 0.0
    %2476 = vmatpush1.xpose.msra.mxu0 0.0
    %2477 = vmatprep.subr.mxu0 0.0
    %2478 = vmatpush1.xpose.msra.mxu0 0.0
    %2479 = vmatprep.mubr.f32.mxu0 0.0
    %2480 = vmatmul.mubr.f32.gmra.mrb[0].mxu0 %v2411
    %v2481 = vpop.f32.mrb[0].mxu0
    %v2482 = vadd.f32 0.0, %v2481
    %v2483 = vpop.f32.mrb[0].mxu0
    %2484 = vdwg.mxu0
    %v2485 = vmul.f32 %v2482, 0.35355338
    %v2486 = vsel %vm242, %v2485, -inf
    %2487 = vmax.xlane.f32.xlu0 %v2486
    %v2488 = vpop.xlane.xlu0 %2487
    %v2489 = vsub.f32 %v2485, %v2488
    %v2490 = vmul.f32 %v2489, 1.442695
    %v2491 = vpow.pop %v2490
    %v2492 = vsel %vm242, %v2491, 0.0
    %2493 = vadd.xlane.f32.xlu0 %v2492
    %v2494 = vpop.xlane.xlu0 %2493
    %v2495 = vrcp.pop %v2494
    %v2496 = vmul.f32 %v2491, %v2495
    %2497 = vrot.lane.b32.xlu0 %v2234, 56
    %v2498 = vpop.permute.xlu0 %2497
    %v2501 = vsel %vm242, %v2496, 0
    %2503 = vmatprep.subr.mxu0 0.0
    %2504 = vmatpush1.msra.mxu0 %v2498
    %2505 = vmatprep.subr.mxu0 0.0
    %2506 = vmatpush1.msra.mxu0 0.0
    %2507 = vmatprep.subr.mxu0 0.0
    %2508 = vmatpush1.msra.mxu0 0.0
    %2509 = vmatprep.subr.mxu0 0.0
    %2510 = vmatpush1.msra.mxu0 0.0
    %2511 = vmatprep.subr.mxu0 0.0
    %2512 = vmatpush1.msra.mxu0 0.0
    %2513 = vmatprep.subr.mxu0 0.0
    %2514 = vmatpush1.msra.mxu0 0.0
    %2515 = vmatprep.subr.mxu0 0.0
    %2516 = vmatpush1.msra.mxu0 0.0
    %2517 = vmatprep.subr.mxu0 0.0
    %2518 = vmatpush1.msra.mxu0 0.0
    %2519 = vmatprep.subr.mxu0 0.0
    %2520 = vmatpush1.msra.mxu0 0.0
    %2521 = vmatprep.subr.mxu0 0.0
    %2522 = vmatpush1.msra.mxu0 0.0
    %2523 = vmatprep.subr.mxu0 0.0
    %2524 = vmatpush1.msra.mxu0 0.0
    %2525 = vmatprep.subr.mxu0 0.0
    %2526 = vmatpush1.msra.mxu0 0.0
    %2527 = vmatprep.subr.mxu0 0.0
    %2528 = vmatpush1.msra.mxu0 0.0
    %2529 = vmatprep.subr.mxu0 0.0
    %2530 = vmatpush1.msra.mxu0 0.0
    %2531 = vmatprep.subr.mxu0 0.0
    %2532 = vmatpush1.msra.mxu0 0.0
    %2533 = vmatprep.subr.mxu0 0.0
    %2534 = vmatpush1.msra.mxu0 0.0
    %2535 = vmatprep.subr.mxu0 0.0
    %2536 = vmatpush1.msra.mxu0 0.0
    %2537 = vmatprep.subr.mxu0 0.0
    %2538 = vmatpush1.msra.mxu0 0.0
    %2539 = vmatprep.subr.mxu0 0.0
    %2540 = vmatpush1.msra.mxu0 0.0
    %2541 = vmatprep.subr.mxu0 0.0
    %2542 = vmatpush1.msra.mxu0 0.0
    %2543 = vmatprep.subr.mxu0 0.0
    %2544 = vmatpush1.msra.mxu0 0.0
    %2545 = vmatprep.subr.mxu0 0.0
    %2546 = vmatpush1.msra.mxu0 0.0
    %2547 = vmatprep.subr.mxu0 0.0
    %2548 = vmatpush1.msra.mxu0 0.0
    %2549 = vmatprep.subr.mxu0 0.0
    %2550 = vmatpush1.msra.mxu0 0.0
    %2551 = vmatprep.subr.mxu0 0.0
    %2552 = vmatpush1.msra.mxu0 0.0
    %2553 = vmatprep.subr.mxu0 0.0
    %2554 = vmatpush1.msra.mxu0 0.0
    %2555 = vmatprep.subr.mxu0 0.0
    %2556 = vmatpush1.msra.mxu0 0.0
    %2557 = vmatprep.subr.mxu0 0.0
    %2558 = vmatpush1.msra.mxu0 0.0
    %2559 = vmatprep.subr.mxu0 0.0
    %2560 = vmatpush1.msra.mxu0 0.0
    %2561 = vmatprep.subr.mxu0 0.0
    %2562 = vmatpush1.msra.mxu0 0.0
    %2563 = vmatprep.subr.mxu0 0.0
    %2564 = vmatpush1.msra.mxu0 0.0
    %2565 = vmatprep.subr.mxu0 0.0
    %2566 = vmatpush1.msra.mxu0 0.0
    %2567 = vmatprep.mubr.f32.mxu0 0.0
    %2568 = vmatmul.mubr.f32.gmra.mrb[0].mxu0 %v2501
    %v2569 = vpop.f32.mrb[0].mxu0
    %v2570 = vadd.f32 0.0, %v2569
    %v2571 = vpop.f32.mrb[0].mxu0
    %2572 = vdwg.mxu0
    %2573 = vrot.lane.b32.xlu0 %v2234, 112
    %v2574 = vpop.permute.xlu0 %2573
    %2575 = vrot.lane.b32.xlu0 %v2234, 80
    %v2576 = vpop.permute.xlu0 %2575
    %v2577 = vsel %vm242, %v2574, 0
    %v2579 = vsel %vm242, %v2576, 0
    %2581 = vmatprep.subr.mxu0 0.0
    %2582 = vmatpush1.xpose.msra.mxu0 %v2579
    %2583 = vmatprep.subr.mxu0 0.0
    %2584 = vmatpush1.xpose.msra.mxu0 0.0
    %2585 = vmatprep.subr.mxu0 0.0
    %2586 = vmatpush1.xpose.msra.mxu0 0.0
    %2587 = vmatprep.subr.mxu0 0.0
    %2588 = vmatpush1.xpose.msra.mxu0 0.0
    %2589 = vmatprep.subr.mxu0 0.0
    %2590 = vmatpush1.xpose.msra.mxu0 0.0
    %2591 = vmatprep.subr.mxu0 0.0
    %2592 = vmatpush1.xpose.msra.mxu0 0.0
    %2593 = vmatprep.subr.mxu0 0.0
    %2594 = vmatpush1.xpose.msra.mxu0 0.0
    %2595 = vmatprep.subr.mxu0 0.0
    %2596 = vmatpush1.xpose.msra.mxu0 0.0
    %2597 = vmatprep.subr.mxu0 0.0
    %2598 = vmatpush1.xpose.msra.mxu0 0.0
    %2599 = vmatprep.subr.mxu0 0.0
    %2600 = vmatpush1.xpose.msra.mxu0 0.0
    %2601 = vmatprep.subr.mxu0 0.0
    %2602 = vmatpush1.xpose.msra.mxu0 0.0
    %2603 = vmatprep.subr.mxu0 0.0
    %2604 = vmatpush1.xpose.msra.mxu0 0.0
    %2605 = vmatprep.subr.mxu0 0.0
    %2606 = vmatpush1.xpose.msra.mxu0 0.0
    %2607 = vmatprep.subr.mxu0 0.0
    %2608 = vmatpush1.xpose.msra.mxu0 0.0
    %2609 = vmatprep.subr.mxu0 0.0
    %2610 = vmatpush1.xpose.msra.mxu0 0.0
    %2611 = vmatprep.subr.mxu0 0.0
    %2612 = vmatpush1.xpose.msra.mxu0 0.0
    %2613 = vmatprep.subr.mxu0 0.0
    %2614 = vmatpush1.xpose.msra.mxu0 0.0
    %2615 = vmatprep.subr.mxu0 0.0
    %2616 = vmatpush1.xpose.msra.mxu0 0.0
    %2617 = vmatprep.subr.mxu0 0.0
    %2618 = vmatpush1.xpose.msra.mxu0 0.0
    %2619 = vmatprep.subr.mxu0 0.0
    %2620 = vmatpush1.xpose.msra.mxu0 0.0
    %2621 = vmatprep.subr.mxu0 0.0
    %2622 = vmatpush1.xpose.msra.mxu0 0.0
    %2623 = vmatprep.subr.mxu0 0.0
    %2624 = vmatpush1.xpose.msra.mxu0 0.0
    %2625 = vmatprep.subr.mxu0 0.0
    %2626 = vmatpush1.xpose.msra.mxu0 0.0
    %2627 = vmatprep.subr.mxu0 0.0
    %2628 = vmatpush1.xpose.msra.mxu0 0.0
    %2629 = vmatprep.subr.mxu0 0.0
    %2630 = vmatpush1.xpose.msra.mxu0 0.0
    %2631 = vmatprep.subr.mxu0 0.0
    %2632 = vmatpush1.xpose.msra.mxu0 0.0
    %2633 = vmatprep.subr.mxu0 0.0
    %2634 = vmatpush1.xpose.msra.mxu0 0.0
    %2635 = vmatprep.subr.mxu0 0.0
    %2636 = vmatpush1.xpose.msra.mxu0 0.0
    %2637 = vmatprep.subr.mxu0 0.0
    %2638 = vmatpush1.xpose.msra.mxu0 0.0
    %2639 = vmatprep.subr.mxu0 0.0
    %2640 = vmatpush1.xpose.msra.mxu0 0.0
    %2641 = vmatprep.subr.mxu0 0.0
    %2642 = vmatpush1.xpose.msra.mxu0 0.0
    %2643 = vmatprep.subr.mxu0 0.0
    %2644 = vmatpush1.xpose.msra.mxu0 0.0
    %2645 = vmatprep.mubr.f32.mxu0 0.0
    %2646 = vmatmul.mubr.f32.gmra.mrb[0].mxu0 %v2577
    %v2647 = vpop.f32.mrb[0].mxu0
    %v2648 = vadd.f32 0.0, %v2647
    %v2649 = vpop.f32.mrb[0].mxu0
    %2650 = vdwg.mxu0
    %v2651 = vmul.f32 %v2648, 0.35355338
    %v2652 = vsel %vm242, %v2651, -inf
    %2653 = vmax.xlane.f32.xlu0 %v2652
    %v2654 = vpop.xlane.xlu0 %2653
    %v2655 = vsub.f32 %v2651, %v2654
    %v2656 = vmul.f32 %v2655, 1.442695
    %v2657 = vpow.pop %v2656
    %v2658 = vsel %vm242, %v2657, 0.0
    %2659 = vadd.xlane.f32.xlu0 %v2658
    %v2660 = vpop.xlane.xlu0 %2659
    %v2661 = vrcp.pop %v2660
    %v2662 = vmul.f32 %v2657, %v2661
    %2663 = vrot.lane.b32.xlu0 %v2234, 48
    %v2664 = vpop.permute.xlu0 %2663
    %v2667 = vsel %vm242, %v2662, 0
    %2669 = vmatprep.subr.mxu0 0.0
    %2670 = vmatpush1.msra.mxu0 %v2664
    %2671 = vmatprep.subr.mxu0 0.0
    %2672 = vmatpush1.msra.mxu0 0.0
    %2673 = vmatprep.subr.mxu0 0.0
    %2674 = vmatpush1.msra.mxu0 0.0
    %2675 = vmatprep.subr.mxu0 0.0
    %2676 = vmatpush1.msra.mxu0 0.0
    %2677 = vmatprep.subr.mxu0 0.0
    %2678 = vmatpush1.msra.mxu0 0.0
    %2679 = vmatprep.subr.mxu0 0.0
    %2680 = vmatpush1.msra.mxu0 0.0
    %2681 = vmatprep.subr.mxu0 0.0
    %2682 = vmatpush1.msra.mxu0 0.0
    %2683 = vmatprep.subr.mxu0 0.0
    %2684 = vmatpush1.msra.mxu0 0.0
    %2685 = vmatprep.subr.mxu0 0.0
    %2686 = vmatpush1.msra.mxu0 0.0
    %2687 = vmatprep.subr.mxu0 0.0
    %2688 = vmatpush1.msra.mxu0 0.0
    %2689 = vmatprep.subr.mxu0 0.0
    %2690 = vmatpush1.msra.mxu0 0.0
    %2691 = vmatprep.subr.mxu0 0.0
    %2692 = vmatpush1.msra.mxu0 0.0
    %2693 = vmatprep.subr.mxu0 0.0
    %2694 = vmatpush1.msra.mxu0 0.0
    %2695 = vmatprep.subr.mxu0 0.0
    %2696 = vmatpush1.msra.mxu0 0.0
    %2697 = vmatprep.subr.mxu0 0.0
    %2698 = vmatpush1.msra.mxu0 0.0
    %2699 = vmatprep.subr.mxu0 0.0
    %2700 = vmatpush1.msra.mxu0 0.0
    %2701 = vmatprep.subr.mxu0 0.0
    %2702 = vmatpush1.msra.mxu0 0.0
    %2703 = vmatprep.subr.mxu0 0.0
    %2704 = vmatpush1.msra.mxu0 0.0
    %2705 = vmatprep.subr.mxu0 0.0
    %2706 = vmatpush1.msra.mxu0 0.0
    %2707 = vmatprep.subr.mxu0 0.0
    %2708 = vmatpush1.msra.mxu0 0.0
    %2709 = vmatprep.subr.mxu0 0.0
    %2710 = vmatpush1.msra.mxu0 0.0
    %2711 = vmatprep.subr.mxu0 0.0
    %2712 = vmatpush1.msra.mxu0 0.0
    %2713 = vmatprep.subr.mxu0 0.0
    %2714 = vmatpush1.msra.mxu0 0.0
    %2715 = vmatprep.subr.mxu0 0.0
    %2716 = vmatpush1.msra.mxu0 0.0
    %2717 = vmatprep.subr.mxu0 0.0
    %2718 = vmatpush1.msra.mxu0 0.0
    %2719 = vmatprep.subr.mxu0 0.0
    %2720 = vmatpush1.msra.mxu0 0.0
    %2721 = vmatprep.subr.mxu0 0.0
    %2722 = vmatpush1.msra.mxu0 0.0
    %2723 = vmatprep.subr.mxu0 0.0
    %2724 = vmatpush1.msra.mxu0 0.0
    %2725 = vmatprep.subr.mxu0 0.0
    %2726 = vmatpush1.msra.mxu0 0.0
    %2727 = vmatprep.subr.mxu0 0.0
    %2728 = vmatpush1.msra.mxu0 0.0
    %2729 = vmatprep.subr.mxu0 0.0
    %2730 = vmatpush1.msra.mxu0 0.0
    %2731 = vmatprep.subr.mxu0 0.0
    %2732 = vmatpush1.msra.mxu0 0.0
    %2733 = vmatprep.mubr.f32.mxu0 0.0
    %2734 = vmatmul.mubr.f32.gmra.mrb[0].mxu0 %v2667
    %v2735 = vpop.f32.mrb[0].mxu0
    %v2736 = vadd.f32 0.0, %v2735
    %v2737 = vpop.f32.mrb[0].mxu0
    %2738 = vdwg.mxu0
    %2739 = vrot.lane.b32.xlu0 %v2234, 104
    %v2740 = vpop.permute.xlu0 %2739
    %2741 = vrot.lane.b32.xlu0 %v2234, 72
    %v2742 = vpop.permute.xlu0 %2741
    %v2743 = vsel %vm242, %v2740, 0
    %v2745 = vsel %vm242, %v2742, 0
    %2747 = vmatprep.subr.mxu0 0.0
    %2748 = vmatpush1.xpose.msra.mxu0 %v2745
    %2749 = vmatprep.subr.mxu0 0.0
    %2750 = vmatpush1.xpose.msra.mxu0 0.0
    %2751 = vmatprep.subr.mxu0 0.0
    %2752 = vmatpush1.xpose.msra.mxu0 0.0
    %2753 = vmatprep.subr.mxu0 0.0
    %2754 = vmatpush1.xpose.msra.mxu0 0.0
    %2755 = vmatprep.subr.mxu0 0.0
    %2756 = vmatpush1.xpose.msra.mxu0 0.0
    %2757 = vmatprep.subr.mxu0 0.0
    %2758 = vmatpush1.xpose.msra.mxu0 0.0
    %2759 = vmatprep.subr.mxu0 0.0
    %2760 = vmatpush1.xpose.msra.mxu0 0.0
    %2761 = vmatprep.subr.mxu0 0.0
    %2762 = vmatpush1.xpose.msra.mxu0 0.0
    %2763 = vmatprep.subr.mxu0 0.0
    %2764 = vmatpush1.xpose.msra.mxu0 0.0
    %2765 = vmatprep.subr.mxu0 0.0
    %2766 = vmatpush1.xpose.msra.mxu0 0.0
    %2767 = vmatprep.subr.mxu0 0.0
    %2768 = vmatpush1.xpose.msra.mxu0 0.0
    %2769 = vmatprep.subr.mxu0 0.0
    %2770 = vmatpush1.xpose.msra.mxu0 0.0
    %2771 = vmatprep.subr.mxu0 0.0
    %2772 = vmatpush1.xpose.msra.mxu0 0.0
    %2773 = vmatprep.subr.mxu0 0.0
    %2774 = vmatpush1.xpose.msra.mxu0 0.0
    %2775 = vmatprep.subr.mxu0 0.0
    %2776 = vmatpush1.xpose.msra.mxu0 0.0
    %2777 = vmatprep.subr.mxu0 0.0
    %2778 = vmatpush1.xpose.msra.mxu0 0.0
    %2779 = vmatprep.subr.mxu0 0.0
    %2780 = vmatpush1.xpose.msra.mxu0 0.0
    %2781 = vmatprep.subr.mxu0 0.0
    %2782 = vmatpush1.xpose.msra.mxu0 0.0
    %2783 = vmatprep.subr.mxu0 0.0
    %2784 = vmatpush1.xpose.msra.mxu0 0.0
    %2785 = vmatprep.subr.mxu0 0.0
    %2786 = vmatpush1.xpose.msra.mxu0 0.0
    %2787 = vmatprep.subr.mxu0 0.0
    %2788 = vmatpush1.xpose.msra.mxu0 0.0
    %2789 = vmatprep.subr.mxu0 0.0
    %2790 = vmatpush1.xpose.msra.mxu0 0.0
    %2791 = vmatprep.subr.mxu0 0.0
    %2792 = vmatpush1.xpose.msra.mxu0 0.0
    %2793 = vmatprep.subr.mxu0 0.0
    %2794 = vmatpush1.xpose.msra.mxu0 0.0
    %2795 = vmatprep.subr.mxu0 0.0
    %2796 = vmatpush1.xpose.msra.mxu0 0.0
    %2797 = vmatprep.subr.mxu0 0.0
    %2798 = vmatpush1.xpose.msra.mxu0 0.0
    %2799 = vmatprep.subr.mxu0 0.0
    %2800 = vmatpush1.xpose.msra.mxu0 0.0
    %2801 = vmatprep.subr.mxu0 0.0
    %2802 = vmatpush1.xpose.msra.mxu0 0.0
    %2803 = vmatprep.subr.mxu0 0.0
    %2804 = vmatpush1.xpose.msra.mxu0 0.0
    %2805 = vmatprep.subr.mxu0 0.0
    %2806 = vmatpush1.xpose.msra.mxu0 0.0
    %2807 = vmatprep.subr.mxu0 0.0
    %2808 = vmatpush1.xpose.msra.mxu0 0.0
    %2809 = vmatprep.subr.mxu0 0.0
    %2810 = vmatpush1.xpose.msra.mxu0 0.0
    %2811 = vmatprep.mubr.f32.mxu0 0.0
    %2812 = vmatmul.mubr.f32.gmra.mrb[0].mxu0 %v2743
    %v2813 = vpop.f32.mrb[0].mxu0
    %v2814 = vadd.f32 0.0, %v2813
    %v2815 = vpop.f32.mrb[0].mxu0
    %2816 = vdwg.mxu0
    %v2817 = vmul.f32 %v2814, 0.35355338
    %v2818 = vsel %vm242, %v2817, -inf
    %2819 = vmax.xlane.f32.xlu0 %v2818
    %v2820 = vpop.xlane.xlu0 %2819
    %v2821 = vsub.f32 %v2817, %v2820
    %v2822 = vmul.f32 %v2821, 1.442695
    %v2823 = vpow.pop %v2822
    %v2824 = vsel %vm242, %v2823, 0.0
    %2825 = vadd.xlane.f32.xlu0 %v2824
    %v2826 = vpop.xlane.xlu0 %2825
    %v2827 = vrcp.pop %v2826
    %v2828 = vmul.f32 %v2823, %v2827
    %2829 = vrot.lane.b32.xlu0 %v2234, 40
    %v2830 = vpop.permute.xlu0 %2829
    %v2833 = vsel %vm242, %v2828, 0
    %2835 = vmatprep.subr.mxu0 0.0
    %2836 = vmatpush1.msra.mxu0 %v2830
    %2837 = vmatprep.subr.mxu0 0.0
    %2838 = vmatpush1.msra.mxu0 0.0
    %2839 = vmatprep.subr.mxu0 0.0
    %2840 = vmatpush1.msra.mxu0 0.0
    %2841 = vmatprep.subr.mxu0 0.0
    %2842 = vmatpush1.msra.mxu0 0.0
    %2843 = vmatprep.subr.mxu0 0.0
    %2844 = vmatpush1.msra.mxu0 0.0
    %2845 = vmatprep.subr.mxu0 0.0
    %2846 = vmatpush1.msra.mxu0 0.0
    %2847 = vmatprep.subr.mxu0 0.0
    %2848 = vmatpush1.msra.mxu0 0.0
    %2849 = vmatprep.subr.mxu0 0.0
    %2850 = vmatpush1.msra.mxu0 0.0
    %2851 = vmatprep.subr.mxu0 0.0
    %2852 = vmatpush1.msra.mxu0 0.0
    %2853 = vmatprep.subr.mxu0 0.0
    %2854 = vmatpush1.msra.mxu0 0.0
    %2855 = vmatprep.subr.mxu0 0.0
    %2856 = vmatpush1.msra.mxu0 0.0
    %2857 = vmatprep.subr.mxu0 0.0
    %2858 = vmatpush1.msra.mxu0 0.0
    %2859 = vmatprep.subr.mxu0 0.0
    %2860 = vmatpush1.msra.mxu0 0.0
    %2861 = vmatprep.subr.mxu0 0.0
    %2862 = vmatpush1.msra.mxu0 0.0
    %2863 = vmatprep.subr.mxu0 0.0
    %2864 = vmatpush1.msra.mxu0 0.0
    %2865 = vmatprep.subr.mxu0 0.0
    %2866 = vmatpush1.msra.mxu0 0.0
    %2867 = vmatprep.subr.mxu0 0.0
    %2868 = vmatpush1.msra.mxu0 0.0
    %2869 = vmatprep.subr.mxu0 0.0
    %2870 = vmatpush1.msra.mxu0 0.0
    %2871 = vmatprep.subr.mxu0 0.0
    %2872 = vmatpush1.msra.mxu0 0.0
    %2873 = vmatprep.subr.mxu0 0.0
    %2874 = vmatpush1.msra.mxu0 0.0
    %2875 = vmatprep.subr.mxu0 0.0
    %2876 = vmatpush1.msra.mxu0 0.0
    %2877 = vmatprep.subr.mxu0 0.0
    %2878 = vmatpush1.msra.mxu0 0.0
    %2879 = vmatprep.subr.mxu0 0.0
    %2880 = vmatpush1.msra.mxu0 0.0
    %2881 = vmatprep.subr.mxu0 0.0
    %2882 = vmatpush1.msra.mxu0 0.0
    %2883 = vmatprep.subr.mxu0 0.0
    %2884 = vmatpush1.msra.mxu0 0.0
    %2885 = vmatprep.subr.mxu0 0.0
    %2886 = vmatpush1.msra.mxu0 0.0
    %2887 = vmatprep.subr.mxu0 0.0
    %2888 = vmatpush1.msra.mxu0 0.0
    %2889 = vmatprep.subr.mxu0 0.0
    %2890 = vmatpush1.msra.mxu0 0.0
    %2891 = vmatprep.subr.mxu0 0.0
    %2892 = vmatpush1.msra.mxu0 0.0
    %2893 = vmatprep.subr.mxu0 0.0
    %2894 = vmatpush1.msra.mxu0 0.0
    %2895 = vmatprep.subr.mxu0 0.0
    %2896 = vmatpush1.msra.mxu0 0.0
    %2897 = vmatprep.subr.mxu0 0.0
    %2898 = vmatpush1.msra.mxu0 0.0
    %2899 = vmatprep.mubr.f32.mxu0 0.0
    %2900 = vmatmul.mubr.f32.gmra.mrb[0].mxu0 %v2833
    %v2901 = vpop.f32.mrb[0].mxu0
    %v2902 = vadd.f32 0.0, %v2901
    %v2903 = vpop.f32.mrb[0].mxu0
    %2904 = vdwg.mxu0
    %2906 = vrot.lane.b32.xlu0 %v2570, 8
    %v2907 = vpop.permute.xlu0 %2906
    %2910 = vrot.lane.b32.xlu0 %v2736, 16
    %v2911 = vpop.permute.xlu0 %2910
    %2914 = vrot.lane.b32.xlu0 %v2902, 24
    %v2915 = vpop.permute.xlu0 %2914
    %v2917 = vsel %vm242, %v2404, %v2907
    %v2918 = vsel %vm916, %v2917, %v2911
    %v2919 = vsel %vm918, %v2918, %v2915
    %2921 = vrot.lane.b32.xlu0 %v2239, 96
    %v2922 = vpop.permute.xlu0 %2921
    %v2923 = vsel %vm242, %v2239, 0
    %v2925 = vsel %vm242, %v2922, 0
    %2927 = vmatprep.subr.mxu0 0.0
    %2928 = vmatpush1.xpose.msra.mxu0 %v2925
    %2929 = vmatprep.subr.mxu0 0.0
    %2930 = vmatpush1.xpose.msra.mxu0 0.0
    %2931 = vmatprep.subr.mxu0 0.0
    %2932 = vmatpush1.xpose.msra.mxu0 0.0
    %2933 = vmatprep.subr.mxu0 0.0
    %2934 = vmatpush1.xpose.msra.mxu0 0.0
    %2935 = vmatprep.subr.mxu0 0.0
    %2936 = vmatpush1.xpose.msra.mxu0 0.0
    %2937 = vmatprep.subr.mxu0 0.0
    %2938 = vmatpush1.xpose.msra.mxu0 0.0
    %2939 = vmatprep.subr.mxu0 0.0
    %2940 = vmatpush1.xpose.msra.mxu0 0.0
    %2941 = vmatprep.subr.mxu0 0.0
    %2942 = vmatpush1.xpose.msra.mxu0 0.0
    %2943 = vmatprep.subr.mxu0 0.0
    %2944 = vmatpush1.xpose.msra.mxu0 0.0
    %2945 = vmatprep.subr.mxu0 0.0
    %2946 = vmatpush1.xpose.msra.mxu0 0.0
    %2947 = vmatprep.subr.mxu0 0.0
    %2948 = vmatpush1.xpose.msra.mxu0 0.0
    %2949 = vmatprep.subr.mxu0 0.0
    %2950 = vmatpush1.xpose.msra.mxu0 0.0
    %2951 = vmatprep.subr.mxu0 0.0
    %2952 = vmatpush1.xpose.msra.mxu0 0.0
    %2953 = vmatprep.subr.mxu0 0.0
    %2954 = vmatpush1.xpose.msra.mxu0 0.0
    %2955 = vmatprep.subr.mxu0 0.0
    %2956 = vmatpush1.xpose.msra.mxu0 0.0
    %2957 = vmatprep.subr.mxu0 0.0
    %2958 = vmatpush1.xpose.msra.mxu0 0.0
    %2959 = vmatprep.subr.mxu0 0.0
    %2960 = vmatpush1.xpose.msra.mxu0 0.0
    %2961 = vmatprep.subr.mxu0 0.0
    %2962 = vmatpush1.xpose.msra.mxu0 0.0
    %2963 = vmatprep.subr.mxu0 0.0
    %2964 = vmatpush1.xpose.msra.mxu0 0.0
    %2965 = vmatprep.subr.mxu0 0.0
    %2966 = vmatpush1.xpose.msra.mxu0 0.0
    %2967 = vmatprep.subr.mxu0 0.0
    %2968 = vmatpush1.xpose.msra.mxu0 0.0
    %2969 = vmatprep.subr.mxu0 0.0
    %2970 = vmatpush1.xpose.msra.mxu0 0.0
    %2971 = vmatprep.subr.mxu0 0.0
    %2972 = vmatpush1.xpose.msra.mxu0 0.0
    %2973 = vmatprep.subr.mxu0 0.0
    %2974 = vmatpush1.xpose.msra.mxu0 0.0
    %2975 = vmatprep.subr.mxu0 0.0
    %2976 = vmatpush1.xpose.msra.mxu0 0.0
    %2977 = vmatprep.subr.mxu0 0.0
    %2978 = vmatpush1.xpose.msra.mxu0 0.0
    %2979 = vmatprep.subr.mxu0 0.0
    %2980 = vmatpush1.xpose.msra.mxu0 0.0
    %2981 = vmatprep.subr.mxu0 0.0
    %2982 = vmatpush1.xpose.msra.mxu0 0.0
    %2983 = vmatprep.subr.mxu0 0.0
    %2984 = vmatpush1.xpose.msra.mxu0 0.0
    %2985 = vmatprep.subr.mxu0 0.0
    %2986 = vmatpush1.xpose.msra.mxu0 0.0
    %2987 = vmatprep.subr.mxu0 0.0
    %2988 = vmatpush1.xpose.msra.mxu0 0.0
    %2989 = vmatprep.subr.mxu0 0.0
    %2990 = vmatpush1.xpose.msra.mxu0 0.0
    %2991 = vmatprep.mubr.f32.mxu0 0.0
    %2992 = vmatmul.mubr.f32.gmra.mrb[0].mxu0 %v2923
    %v2993 = vpop.f32.mrb[0].mxu0
    %v2994 = vadd.f32 0.0, %v2993
    %v2995 = vpop.f32.mrb[0].mxu0
    %2996 = vdwg.mxu0
    %v2997 = vmul.f32 %v2994, 0.35355338
    %v2998 = vsel %vm242, %v2997, -inf
    %2999 = vmax.xlane.f32.xlu0 %v2998
    %v3000 = vpop.xlane.xlu0 %2999
    %v3001 = vsub.f32 %v2997, %v3000
    %v3002 = vmul.f32 %v3001, 1.442695
    %v3003 = vpow.pop %v3002
    %v3004 = vsel %vm242, %v3003, 0.0
    %3005 = vadd.xlane.f32.xlu0 %v3004
    %v3006 = vpop.xlane.xlu0 %3005
    %v3007 = vrcp.pop %v3006
    %v3008 = vmul.f32 %v3003, %v3007
    %3009 = vrot.lane.b32.xlu0 %v2239, 64
    %v3010 = vpop.permute.xlu0 %3009
    %v3013 = vsel %vm242, %v3008, 0
    %3015 = vmatprep.subr.mxu0 0.0
    %3016 = vmatpush1.msra.mxu0 %v3010
    %3017 = vmatprep.subr.mxu0 0.0
    %3018 = vmatpush1.msra.mxu0 0.0
    %3019 = vmatprep.subr.mxu0 0.0
    %3020 = vmatpush1.msra.mxu0 0.0
    %3021 = vmatprep.subr.mxu0 0.0
    %3022 = vmatpush1.msra.mxu0 0.0
    %3023 = vmatprep.subr.mxu0 0.0
    %3024 = vmatpush1.msra.mxu0 0.0
    %3025 = vmatprep.subr.mxu0 0.0
    %3026 = vmatpush1.msra.mxu0 0.0
    %3027 = vmatprep.subr.mxu0 0.0
    %3028 = vmatpush1.msra.mxu0 0.0
    %3029 = vmatprep.subr.mxu0 0.0
    %3030 = vmatpush1.msra.mxu0 0.0
    %3031 = vmatprep.subr.mxu0 0.0
    %3032 = vmatpush1.msra.mxu0 0.0
    %3033 = vmatprep.subr.mxu0 0.0
    %3034 = vmatpush1.msra.mxu0 0.0
    %3035 = vmatprep.subr.mxu0 0.0
    %3036 = vmatpush1.msra.mxu0 0.0
    %3037 = vmatprep.subr.mxu0 0.0
    %3038 = vmatpush1.msra.mxu0 0.0
    %3039 = vmatprep.subr.mxu0 0.0
    %3040 = vmatpush1.msra.mxu0 0.0
    %3041 = vmatprep.subr.mxu0 0.0
    %3042 = vmatpush1.msra.mxu0 0.0
    %3043 = vmatprep.subr.mxu0 0.0
    %3044 = vmatpush1.msra.mxu0 0.0
    %3045 = vmatprep.subr.mxu0 0.0
    %3046 = vmatpush1.msra.mxu0 0.0
    %3047 = vmatprep.subr.mxu0 0.0
    %3048 = vmatpush1.msra.mxu0 0.0
    %3049 = vmatprep.subr.mxu0 0.0
    %3050 = vmatpush1.msra.mxu0 0.0
    %3051 = vmatprep.subr.mxu0 0.0
    %3052 = vmatpush1.msra.mxu0 0.0
    %3053 = vmatprep.subr.mxu0 0.0
    %3054 = vmatpush1.msra.mxu0 0.0
    %3055 = vmatprep.subr.mxu0 0.0
    %3056 = vmatpush1.msra.mxu0 0.0
    %3057 = vmatprep.subr.mxu0 0.0
    %3058 = vmatpush1.msra.mxu0 0.0
    %3059 = vmatprep.subr.mxu0 0.0
    %3060 = vmatpush1.msra.mxu0 0.0
    %3061 = vmatprep.subr.mxu0 0.0
    %3062 = vmatpush1.msra.mxu0 0.0
    %3063 = vmatprep.subr.mxu0 0.0
    %3064 = vmatpush1.msra.mxu0 0.0
    %3065 = vmatprep.subr.mxu0 0.0
    %3066 = vmatpush1.msra.mxu0 0.0
    %3067 = vmatprep.subr.mxu0 0.0
    %3068 = vmatpush1.msra.mxu0 0.0
    %3069 = vmatprep.subr.mxu0 0.0
    %3070 = vmatpush1.msra.mxu0 0.0
    %3071 = vmatprep.subr.mxu0 0.0
    %3072 = vmatpush1.msra.mxu0 0.0
    %3073 = vmatprep.subr.mxu0 0.0
    %3074 = vmatpush1.msra.mxu0 0.0
    %3075 = vmatprep.subr.mxu0 0.0
    %3076 = vmatpush1.msra.mxu0 0.0
    %3077 = vmatprep.subr.mxu0 0.0
    %3078 = vmatpush1.msra.mxu0 0.0
    %3079 = vmatprep.mubr.f32.mxu0 0.0
    %3080 = vmatmul.mubr.f32.gmra.mrb[0].mxu0 %v3013
    %v3081 = vpop.f32.mrb[0].mxu0
    %v3082 = vadd.f32 0.0, %v3081
    %v3083 = vpop.f32.mrb[0].mxu0
    %3084 = vdwg.mxu0
    %3085 = vrot.lane.b32.xlu0 %v2239, 120
    %v3086 = vpop.permute.xlu0 %3085
    %3087 = vrot.lane.b32.xlu0 %v2239, 88
    %v3088 = vpop.permute.xlu0 %3087
    %v3089 = vsel %vm242, %v3086, 0
    %v3091 = vsel %vm242, %v3088, 0
    %3093 = vmatprep.subr.mxu0 0.0
    %3094 = vmatpush1.xpose.msra.mxu0 %v3091
    %3095 = vmatprep.subr.mxu0 0.0
    %3096 = vmatpush1.xpose.msra.mxu0 0.0
    %3097 = vmatprep.subr.mxu0 0.0
    %3098 = vmatpush1.xpose.msra.mxu0 0.0
    %3099 = vmatprep.subr.mxu0 0.0
    %3100 = vmatpush1.xpose.msra.mxu0 0.0
    %3101 = vmatprep.subr.mxu0 0.0
    %3102 = vmatpush1.xpose.msra.mxu0 0.0
    %3103 = vmatprep.subr.mxu0 0.0
    %3104 = vmatpush1.xpose.msra.mxu0 0.0
    %3105 = vmatprep.subr.mxu0 0.0
    %3106 = vmatpush1.xpose.msra.mxu0 0.0
    %3107 = vmatprep.subr.mxu0 0.0
    %3108 = vmatpush1.xpose.msra.mxu0 0.0
    %3109 = vmatprep.subr.mxu0 0.0
    %3110 = vmatpush1.xpose.msra.mxu0 0.0
    %3111 = vmatprep.subr.mxu0 0.0
    %3112 = vmatpush1.xpose.msra.mxu0 0.0
    %3113 = vmatprep.subr.mxu0 0.0
    %3114 = vmatpush1.xpose.msra.mxu0 0.0
    %3115 = vmatprep.subr.mxu0 0.0
    %3116 = vmatpush1.xpose.msra.mxu0 0.0
    %3117 = vmatprep.subr.mxu0 0.0
    %3118 = vmatpush1.xpose.msra.mxu0 0.0
    %3119 = vmatprep.subr.mxu0 0.0
    %3120 = vmatpush1.xpose.msra.mxu0 0.0
    %3121 = vmatprep.subr.mxu0 0.0
    %3122 = vmatpush1.xpose.msra.mxu0 0.0
    %3123 = vmatprep.subr.mxu0 0.0
    %3124 = vmatpush1.xpose.msra.mxu0 0.0
    %3125 = vmatprep.subr.mxu0 0.0
    %3126 = vmatpush1.xpose.msra.mxu0 0.0
    %3127 = vmatprep.subr.mxu0 0.0
    %3128 = vmatpush1.xpose.msra.mxu0 0.0
    %3129 = vmatprep.subr.mxu0 0.0
    %3130 = vmatpush1.xpose.msra.mxu0 0.0
    %3131 = vmatprep.subr.mxu0 0.0
    %3132 = vmatpush1.xpose.msra.mxu0 0.0
    %3133 = vmatprep.subr.mxu0 0.0
    %3134 = vmatpush1.xpose.msra.mxu0 0.0
    %3135 = vmatprep.subr.mxu0 0.0
    %3136 = vmatpush1.xpose.msra.mxu0 0.0
    %3137 = vmatprep.subr.mxu0 0.0
    %3138 = vmatpush1.xpose.msra.mxu0 0.0
    %3139 = vmatprep.subr.mxu0 0.0
    %3140 = vmatpush1.xpose.msra.mxu0 0.0
    %3141 = vmatprep.subr.mxu0 0.0
    %3142 = vmatpush1.xpose.msra.mxu0 0.0
    %3143 = vmatprep.subr.mxu0 0.0
    %3144 = vmatpush1.xpose.msra.mxu0 0.0
    %3145 = vmatprep.subr.mxu0 0.0
    %3146 = vmatpush1.xpose.msra.mxu0 0.0
    %3147 = vmatprep.subr.mxu0 0.0
    %3148 = vmatpush1.xpose.msra.mxu0 0.0
    %3149 = vmatprep.subr.mxu0 0.0
    %3150 = vmatpush1.xpose.msra.mxu0 0.0
    %3151 = vmatprep.subr.mxu0 0.0
    %3152 = vmatpush1.xpose.msra.mxu0 0.0
    %3153 = vmatprep.subr.mxu0 0.0
    %3154 = vmatpush1.xpose.msra.mxu0 0.0
    %3155 = vmatprep.subr.mxu0 0.0
    %3156 = vmatpush1.xpose.msra.mxu0 0.0
    %3157 = vmatprep.mubr.f32.mxu0 0.0
    %3158 = vmatmul.mubr.f32.gmra.mrb[0].mxu0 %v3089
    %v3159 = vpop.f32.mrb[0].mxu0
    %v3160 = vadd.f32 0.0, %v3159
    %v3161 = vpop.f32.mrb[0].mxu0
    %3162 = vdwg.mxu0
    %v3163 = vmul.f32 %v3160, 0.35355338
    %v3164 = vsel %vm242, %v3163, -inf
    %3165 = vmax.xlane.f32.xlu0 %v3164
    %v3166 = vpop.xlane.xlu0 %3165
    %v3167 = vsub.f32 %v3163, %v3166
    %v3168 = vmul.f32 %v3167, 1.442695
    %v3169 = vpow.pop %v3168
    %v3170 = vsel %vm242, %v3169, 0.0
    %3171 = vadd.xlane.f32.xlu0 %v3170
    %v3172 = vpop.xlane.xlu0 %3171
    %v3173 = vrcp.pop %v3172
    %v3174 = vmul.f32 %v3169, %v3173
    %3175 = vrot.lane.b32.xlu0 %v2239, 56
    %v3176 = vpop.permute.xlu0 %3175
    %v3179 = vsel %vm242, %v3174, 0
    %3181 = vmatprep.subr.mxu0 0.0
    %3182 = vmatpush1.msra.mxu0 %v3176
    %3183 = vmatprep.subr.mxu0 0.0
    %3184 = vmatpush1.msra.mxu0 0.0
    %3185 = vmatprep.subr.mxu0 0.0
    %3186 = vmatpush1.msra.mxu0 0.0
    %3187 = vmatprep.subr.mxu0 0.0
    %3188 = vmatpush1.msra.mxu0 0.0
    %3189 = vmatprep.subr.mxu0 0.0
    %3190 = vmatpush1.msra.mxu0 0.0
    %3191 = vmatprep.subr.mxu0 0.0
    %3192 = vmatpush1.msra.mxu0 0.0
    %3193 = vmatprep.subr.mxu0 0.0
    %3194 = vmatpush1.msra.mxu0 0.0
    %3195 = vmatprep.subr.mxu0 0.0
    %3196 = vmatpush1.msra.mxu0 0.0
    %3197 = vmatprep.subr.mxu0 0.0
    %3198 = vmatpush1.msra.mxu0 0.0
    %3199 = vmatprep.subr.mxu0 0.0
    %3200 = vmatpush1.msra.mxu0 0.0
    %3201 = vmatprep.subr.mxu0 0.0
    %3202 = vmatpush1.msra.mxu0 0.0
    %3203 = vmatprep.subr.mxu0 0.0
    %3204 = vmatpush1.msra.mxu0 0.0
    %3205 = vmatprep.subr.mxu0 0.0
    %3206 = vmatpush1.msra.mxu0 0.0
    %3207 = vmatprep.subr.mxu0 0.0
    %3208 = vmatpush1.msra.mxu0 0.0
    %3209 = vmatprep.subr.mxu0 0.0
    %3210 = vmatpush1.msra.mxu0 0.0
    %3211 = vmatprep.subr.mxu0 0.0
    %3212 = vmatpush1.msra.mxu0 0.0
    %3213 = vmatprep.subr.mxu0 0.0
    %3214 = vmatpush1.msra.mxu0 0.0
    %3215 = vmatprep.subr.mxu0 0.0
    %3216 = vmatpush1.msra.mxu0 0.0
    %3217 = vmatprep.subr.mxu0 0.0
    %3218 = vmatpush1.msra.mxu0 0.0
    %3219 = vmatprep.subr.mxu0 0.0
    %3220 = vmatpush1.msra.mxu0 0.0
    %3221 = vmatprep.subr.mxu0 0.0
    %3222 = vmatpush1.msra.mxu0 0.0
    %3223 = vmatprep.subr.mxu0 0.0
    %3224 = vmatpush1.msra.mxu0 0.0
    %3225 = vmatprep.subr.mxu0 0.0
    %3226 = vmatpush1.msra.mxu0 0.0
    %3227 = vmatprep.subr.mxu0 0.0
    %3228 = vmatpush1.msra.mxu0 0.0
    %3229 = vmatprep.subr.mxu0 0.0
    %3230 = vmatpush1.msra.mxu0 0.0
    %3231 = vmatprep.subr.mxu0 0.0
    %3232 = vmatpush1.msra.mxu0 0.0
    %3233 = vmatprep.subr.mxu0 0.0
    %3234 = vmatpush1.msra.mxu0 0.0
    %3235 = vmatprep.subr.mxu0 0.0
    %3236 = vmatpush1.msra.mxu0 0.0
    %3237 = vmatprep.subr.mxu0 0.0
    %3238 = vmatpush1.msra.mxu0 0.0
    %3239 = vmatprep.subr.mxu0 0.0
    %3240 = vmatpush1.msra.mxu0 0.0
    %3241 = vmatprep.subr.mxu0 0.0
    %3242 = vmatpush1.msra.mxu0 0.0
    %3243 = vmatprep.subr.mxu0 0.0
    %3244 = vmatpush1.msra.mxu0 0.0
    %3245 = vmatprep.mubr.f32.mxu0 0.0
    %3246 = vmatmul.mubr.f32.gmra.mrb[0].mxu0 %v3179
    %v3247 = vpop.f32.mrb[0].mxu0
    %v3248 = vadd.f32 0.0, %v3247
    %v3249 = vpop.f32.mrb[0].mxu0
    %3250 = vdwg.mxu0
    %3251 = vrot.lane.b32.xlu0 %v2239, 112
    %v3252 = vpop.permute.xlu0 %3251
    %3253 = vrot.lane.b32.xlu0 %v2239, 80
    %v3254 = vpop.permute.xlu0 %3253
    %v3255 = vsel %vm242, %v3252, 0
    %v3257 = vsel %vm242, %v3254, 0
    %3259 = vmatprep.subr.mxu0 0.0
    %3260 = vmatpush1.xpose.msra.mxu0 %v3257
    %3261 = vmatprep.subr.mxu0 0.0
    %3262 = vmatpush1.xpose.msra.mxu0 0.0
    %3263 = vmatprep.subr.mxu0 0.0
    %3264 = vmatpush1.xpose.msra.mxu0 0.0
    %3265 = vmatprep.subr.mxu0 0.0
    %3266 = vmatpush1.xpose.msra.mxu0 0.0
    %3267 = vmatprep.subr.mxu0 0.0
    %3268 = vmatpush1.xpose.msra.mxu0 0.0
    %3269 = vmatprep.subr.mxu0 0.0
    %3270 = vmatpush1.xpose.msra.mxu0 0.0
    %3271 = vmatprep.subr.mxu0 0.0
    %3272 = vmatpush1.xpose.msra.mxu0 0.0
    %3273 = vmatprep.subr.mxu0 0.0
    %3274 = vmatpush1.xpose.msra.mxu0 0.0
    %3275 = vmatprep.subr.mxu0 0.0
    %3276 = vmatpush1.xpose.msra.mxu0 0.0
    %3277 = vmatprep.subr.mxu0 0.0
    %3278 = vmatpush1.xpose.msra.mxu0 0.0
    %3279 = vmatprep.subr.mxu0 0.0
    %3280 = vmatpush1.xpose.msra.mxu0 0.0
    %3281 = vmatprep.subr.mxu0 0.0
    %3282 = vmatpush1.xpose.msra.mxu0 0.0
    %3283 = vmatprep.subr.mxu0 0.0
    %3284 = vmatpush1.xpose.msra.mxu0 0.0
    %3285 = vmatprep.subr.mxu0 0.0
    %3286 = vmatpush1.xpose.msra.mxu0 0.0
    %3287 = vmatprep.subr.mxu0 0.0
    %3288 = vmatpush1.xpose.msra.mxu0 0.0
    %3289 = vmatprep.subr.mxu0 0.0
    %3290 = vmatpush1.xpose.msra.mxu0 0.0
    %3291 = vmatprep.subr.mxu0 0.0
    %3292 = vmatpush1.xpose.msra.mxu0 0.0
    %3293 = vmatprep.subr.mxu0 0.0
    %3294 = vmatpush1.xpose.msra.mxu0 0.0
    %3295 = vmatprep.subr.mxu0 0.0
    %3296 = vmatpush1.xpose.msra.mxu0 0.0
    %3297 = vmatprep.subr.mxu0 0.0
    %3298 = vmatpush1.xpose.msra.mxu0 0.0
    %3299 = vmatprep.subr.mxu0 0.0
    %3300 = vmatpush1.xpose.msra.mxu0 0.0
    %3301 = vmatprep.subr.mxu0 0.0
    %3302 = vmatpush1.xpose.msra.mxu0 0.0
    %3303 = vmatprep.subr.mxu0 0.0
    %3304 = vmatpush1.xpose.msra.mxu0 0.0
    %3305 = vmatprep.subr.mxu0 0.0
    %3306 = vmatpush1.xpose.msra.mxu0 0.0
    %3307 = vmatprep.subr.mxu0 0.0
    %3308 = vmatpush1.xpose.msra.mxu0 0.0
    %3309 = vmatprep.subr.mxu0 0.0
    %3310 = vmatpush1.xpose.msra.mxu0 0.0
    %3311 = vmatprep.subr.mxu0 0.0
    %3312 = vmatpush1.xpose.msra.mxu0 0.0
    %3313 = vmatprep.subr.mxu0 0.0
    %3314 = vmatpush1.xpose.msra.mxu0 0.0
    %3315 = vmatprep.subr.mxu0 0.0
    %3316 = vmatpush1.xpose.msra.mxu0 0.0
    %3317 = vmatprep.subr.mxu0 0.0
    %3318 = vmatpush1.xpose.msra.mxu0 0.0
    %3319 = vmatprep.subr.mxu0 0.0
    %3320 = vmatpush1.xpose.msra.mxu0 0.0
    %3321 = vmatprep.subr.mxu0 0.0
    %3322 = vmatpush1.xpose.msra.mxu0 0.0
    %3323 = vmatprep.mubr.f32.mxu0 0.0
    %3324 = vmatmul.mubr.f32.gmra.mrb[0].mxu0 %v3255
    %v3325 = vpop.f32.mrb[0].mxu0
    %v3326 = vadd.f32 0.0, %v3325
    %v3327 = vpop.f32.mrb[0].mxu0
    %3328 = vdwg.mxu0
    %v3329 = vmul.f32 %v3326, 0.35355338
    %v3330 = vsel %vm242, %v3329, -inf
    %3331 = vmax.xlane.f32.xlu0 %v3330
    %v3332 = vpop.xlane.xlu0 %3331
    %v3333 = vsub.f32 %v3329, %v3332
    %v3334 = vmul.f32 %v3333, 1.442695
    %v3335 = vpow.pop %v3334
    %v3336 = vsel %vm242, %v3335, 0.0
    %3337 = vadd.xlane.f32.xlu0 %v3336
    %v3338 = vpop.xlane.xlu0 %3337
    %v3339 = vrcp.pop %v3338
    %v3340 = vmul.f32 %v3335, %v3339
    %3341 = vrot.lane.b32.xlu0 %v2239, 48
    %v3342 = vpop.permute.xlu0 %3341
    %v3345 = vsel %vm242, %v3340, 0
    %3347 = vmatprep.subr.mxu0 0.0
    %3348 = vmatpush1.msra.mxu0 %v3342
    %3349 = vmatprep.subr.mxu0 0.0
    %3350 = vmatpush1.msra.mxu0 0.0
    %3351 = vmatprep.subr.mxu0 0.0
    %3352 = vmatpush1.msra.mxu0 0.0
    %3353 = vmatprep.subr.mxu0 0.0
    %3354 = vmatpush1.msra.mxu0 0.0
    %3355 = vmatprep.subr.mxu0 0.0
    %3356 = vmatpush1.msra.mxu0 0.0
    %3357 = vmatprep.subr.mxu0 0.0
    %3358 = vmatpush1.msra.mxu0 0.0
    %3359 = vmatprep.subr.mxu0 0.0
    %3360 = vmatpush1.msra.mxu0 0.0
    %3361 = vmatprep.subr.mxu0 0.0
    %3362 = vmatpush1.msra.mxu0 0.0
    %3363 = vmatprep.subr.mxu0 0.0
    %3364 = vmatpush1.msra.mxu0 0.0
    %3365 = vmatprep.subr.mxu0 0.0
    %3366 = vmatpush1.msra.mxu0 0.0
    %3367 = vmatprep.subr.mxu0 0.0
    %3368 = vmatpush1.msra.mxu0 0.0
    %3369 = vmatprep.subr.mxu0 0.0
    %3370 = vmatpush1.msra.mxu0 0.0
    %3371 = vmatprep.subr.mxu0 0.0
    %3372 = vmatpush1.msra.mxu0 0.0
    %3373 = vmatprep.subr.mxu0 0.0
    %3374 = vmatpush1.msra.mxu0 0.0
    %3375 = vmatprep.subr.mxu0 0.0
    %3376 = vmatpush1.msra.mxu0 0.0
    %3377 = vmatprep.subr.mxu0 0.0
    %3378 = vmatpush1.msra.mxu0 0.0
    %3379 = vmatprep.subr.mxu0 0.0
    %3380 = vmatpush1.msra.mxu0 0.0
    %3381 = vmatprep.subr.mxu0 0.0
    %3382 = vmatpush1.msra.mxu0 0.0
    %3383 = vmatprep.subr.mxu0 0.0
    %3384 = vmatpush1.msra.mxu0 0.0
    %3385 = vmatprep.subr.mxu0 0.0
    %3386 = vmatpush1.msra.mxu0 0.0
    %3387 = vmatprep.subr.mxu0 0.0
    %3388 = vmatpush1.msra.mxu0 0.0
    %3389 = vmatprep.subr.mxu0 0.0
    %3390 = vmatpush1.msra.mxu0 0.0
    %3391 = vmatprep.subr.mxu0 0.0
    %3392 = vmatpush1.msra.mxu0 0.0
    %3393 = vmatprep.subr.mxu0 0.0
    %3394 = vmatpush1.msra.mxu0 0.0
    %3395 = vmatprep.subr.mxu0 0.0
    %3396 = vmatpush1.msra.mxu0 0.0
    %3397 = vmatprep.subr.mxu0 0.0
    %3398 = vmatpush1.msra.mxu0 0.0
    %3399 = vmatprep.subr.mxu0 0.0
    %3400 = vmatpush1.msra.mxu0 0.0
    %3401 = vmatprep.subr.mxu0 0.0
    %3402 = vmatpush1.msra.mxu0 0.0
    %3403 = vmatprep.subr.mxu0 0.0
    %3404 = vmatpush1.msra.mxu0 0.0
    %3405 = vmatprep.subr.mxu0 0.0
    %3406 = vmatpush1.msra.mxu0 0.0
    %3407 = vmatprep.subr.mxu0 0.0
    %3408 = vmatpush1.msra.mxu0 0.0
    %3409 = vmatprep.subr.mxu0 0.0
    %3410 = vmatpush1.msra.mxu0 0.0
    %3411 = vmatprep.mubr.f32.mxu0 0.0
    %3412 = vmatmul.mubr.f32.gmra.mrb[0].mxu0 %v3345
    %v3413 = vpop.f32.mrb[0].mxu0
    %v3414 = vadd.f32 0.0, %v3413
    %v3415 = vpop.f32.mrb[0].mxu0
    %3416 = vdwg.mxu0
    %3417 = vrot.lane.b32.xlu0 %v2239, 104
    %v3418 = vpop.permute.xlu0 %3417
    %3419 = vrot.lane.b32.xlu0 %v2239, 72
    %v3420 = vpop.permute.xlu0 %3419
    %v3421 = vsel %vm242, %v3418, 0
    %v3423 = vsel %vm242, %v3420, 0
    %3425 = vmatprep.subr.mxu0 0.0
    %3426 = vmatpush1.xpose.msra.mxu0 %v3423
    %3427 = vmatprep.subr.mxu0 0.0
    %3428 = vmatpush1.xpose.msra.mxu0 0.0
    %3429 = vmatprep.subr.mxu0 0.0
    %3430 = vmatpush1.xpose.msra.mxu0 0.0
    %3431 = vmatprep.subr.mxu0 0.0
    %3432 = vmatpush1.xpose.msra.mxu0 0.0
    %3433 = vmatprep.subr.mxu0 0.0
    %3434 = vmatpush1.xpose.msra.mxu0 0.0
    %3435 = vmatprep.subr.mxu0 0.0
    %3436 = vmatpush1.xpose.msra.mxu0 0.0
    %3437 = vmatprep.subr.mxu0 0.0
    %3438 = vmatpush1.xpose.msra.mxu0 0.0
    %3439 = vmatprep.subr.mxu0 0.0
    %3440 = vmatpush1.xpose.msra.mxu0 0.0
    %3441 = vmatprep.subr.mxu0 0.0
    %3442 = vmatpush1.xpose.msra.mxu0 0.0
    %3443 = vmatprep.subr.mxu0 0.0
    %3444 = vmatpush1.xpose.msra.mxu0 0.0
    %3445 = vmatprep.subr.mxu0 0.0
    %3446 = vmatpush1.xpose.msra.mxu0 0.0
    %3447 = vmatprep.subr.mxu0 0.0
    %3448 = vmatpush1.xpose.msra.mxu0 0.0
    %3449 = vmatprep.subr.mxu0 0.0
    %3450 = vmatpush1.xpose.msra.mxu0 0.0
    %3451 = vmatprep.subr.mxu0 0.0
    %3452 = vmatpush1.xpose.msra.mxu0 0.0
    %3453 = vmatprep.subr.mxu0 0.0
    %3454 = vmatpush1.xpose.msra.mxu0 0.0
    %3455 = vmatprep.subr.mxu0 0.0
    %3456 = vmatpush1.xpose.msra.mxu0 0.0
    %3457 = vmatprep.subr.mxu0 0.0
    %3458 = vmatpush1.xpose.msra.mxu0 0.0
    %3459 = vmatprep.subr.mxu0 0.0
    %3460 = vmatpush1.xpose.msra.mxu0 0.0
    %3461 = vmatprep.subr.mxu0 0.0
    %3462 = vmatpush1.xpose.msra.mxu0 0.0
    %3463 = vmatprep.subr.mxu0 0.0
    %3464 = vmatpush1.xpose.msra.mxu0 0.0
    %3465 = vmatprep.subr.mxu0 0.0
    %3466 = vmatpush1.xpose.msra.mxu0 0.0
    %3467 = vmatprep.subr.mxu0 0.0
    %3468 = vmatpush1.xpose.msra.mxu0 0.0
    %3469 = vmatprep.subr.mxu0 0.0
    %3470 = vmatpush1.xpose.msra.mxu0 0.0
    %3471 = vmatprep.subr.mxu0 0.0
    %3472 = vmatpush1.xpose.msra.mxu0 0.0
    %3473 = vmatprep.subr.mxu0 0.0
    %3474 = vmatpush1.xpose.msra.mxu0 0.0
    %3475 = vmatprep.subr.mxu0 0.0
    %3476 = vmatpush1.xpose.msra.mxu0 0.0
    %3477 = vmatprep.subr.mxu0 0.0
    %3478 = vmatpush1.xpose.msra.mxu0 0.0
    %3479 = vmatprep.subr.mxu0 0.0
    %3480 = vmatpush1.xpose.msra.mxu0 0.0
    %3481 = vmatprep.subr.mxu0 0.0
    %3482 = vmatpush1.xpose.msra.mxu0 0.0
    %3483 = vmatprep.subr.mxu0 0.0
    %3484 = vmatpush1.xpose.msra.mxu0 0.0
    %3485 = vmatprep.subr.mxu0 0.0
    %3486 = vmatpush1.xpose.msra.mxu0 0.0
    %3487 = vmatprep.subr.mxu0 0.0
    %3488 = vmatpush1.xpose.msra.mxu0 0.0
    %3489 = vmatprep.mubr.f32.mxu0 0.0
    %3490 = vmatmul.mubr.f32.gmra.mrb[0].mxu0 %v3421
    %v3491 = vpop.f32.mrb[0].mxu0
    %v3492 = vadd.f32 0.0, %v3491
    %v3493 = vpop.f32.mrb[0].mxu0
    %3494 = vdwg.mxu0
    %v3495 = vmul.f32 %v3492, 0.35355338
    %v3496 = vsel %vm242, %v3495, -inf
    %3497 = vmax.xlane.f32.xlu0 %v3496
    %v3498 = vpop.xlane.xlu0 %3497
    %v3499 = vsub.f32 %v3495, %v3498
    %v3500 = vmul.f32 %v3499, 1.442695
    %v3501 = vpow.pop %v3500
    %v3502 = vsel %vm242, %v3501, 0.0
    %3503 = vadd.xlane.f32.xlu0 %v3502
    %v3504 = vpop.xlane.xlu0 %3503
    %v3505 = vrcp.pop %v3504
    %v3506 = vmul.f32 %v3501, %v3505
    %3507 = vrot.lane.b32.xlu0 %v2239, 40
    %v3508 = vpop.permute.xlu0 %3507
    %v3511 = vsel %vm242, %v3506, 0
    %3513 = vmatprep.subr.mxu0 0.0
    %3514 = vmatpush1.msra.mxu0 %v3508
    %3515 = vmatprep.subr.mxu0 0.0
    %3516 = vmatpush1.msra.mxu0 0.0
    %3517 = vmatprep.subr.mxu0 0.0
    %3518 = vmatpush1.msra.mxu0 0.0
    %3519 = vmatprep.subr.mxu0 0.0
    %3520 = vmatpush1.msra.mxu0 0.0
    %3521 = vmatprep.subr.mxu0 0.0
    %3522 = vmatpush1.msra.mxu0 0.0
    %3523 = vmatprep.subr.mxu0 0.0
    %3524 = vmatpush1.msra.mxu0 0.0
    %3525 = vmatprep.subr.mxu0 0.0
    %3526 = vmatpush1.msra.mxu0 0.0
    %3527 = vmatprep.subr.mxu0 0.0
    %3528 = vmatpush1.msra.mxu0 0.0
    %3529 = vmatprep.subr.mxu0 0.0
    %3530 = vmatpush1.msra.mxu0 0.0
    %3531 = vmatprep.subr.mxu0 0.0
    %3532 = vmatpush1.msra.mxu0 0.0
    %3533 = vmatprep.subr.mxu0 0.0
    %3534 = vmatpush1.msra.mxu0 0.0
    %3535 = vmatprep.subr.mxu0 0.0
    %3536 = vmatpush1.msra.mxu0 0.0
    %3537 = vmatprep.subr.mxu0 0.0
    %3538 = vmatpush1.msra.mxu0 0.0
    %3539 = vmatprep.subr.mxu0 0.0
    %3540 = vmatpush1.msra.mxu0 0.0
    %3541 = vmatprep.subr.mxu0 0.0
    %3542 = vmatpush1.msra.mxu0 0.0
    %3543 = vmatprep.subr.mxu0 0.0
    %3544 = vmatpush1.msra.mxu0 0.0
    %3545 = vmatprep.subr.mxu0 0.0
    %3546 = vmatpush1.msra.mxu0 0.0
    %3547 = vmatprep.subr.mxu0 0.0
    %3548 = vmatpush1.msra.mxu0 0.0
    %3549 = vmatprep.subr.mxu0 0.0
    %3550 = vmatpush1.msra.mxu0 0.0
    %3551 = vmatprep.subr.mxu0 0.0
    %3552 = vmatpush1.msra.mxu0 0.0
    %3553 = vmatprep.subr.mxu0 0.0
    %3554 = vmatpush1.msra.mxu0 0.0
    %3555 = vmatprep.subr.mxu0 0.0
    %3556 = vmatpush1.msra.mxu0 0.0
    %3557 = vmatprep.subr.mxu0 0.0
    %3558 = vmatpush1.msra.mxu0 0.0
    %3559 = vmatprep.subr.mxu0 0.0
    %3560 = vmatpush1.msra.mxu0 0.0
    %3561 = vmatprep.subr.mxu0 0.0
    %3562 = vmatpush1.msra.mxu0 0.0
    %3563 = vmatprep.subr.mxu0 0.0
    %3564 = vmatpush1.msra.mxu0 0.0
    %3565 = vmatprep.subr.mxu0 0.0
    %3566 = vmatpush1.msra.mxu0 0.0
    %3567 = vmatprep.subr.mxu0 0.0
    %3568 = vmatpush1.msra.mxu0 0.0
    %3569 = vmatprep.subr.mxu0 0.0
    %3570 = vmatpush1.msra.mxu0 0.0
    %3571 = vmatprep.subr.mxu0 0.0
    %3572 = vmatpush1.msra.mxu0 0.0
    %3573 = vmatprep.subr.mxu0 0.0
    %3574 = vmatpush1.msra.mxu0 0.0
    %3575 = vmatprep.subr.mxu0 0.0
    %3576 = vmatpush1.msra.mxu0 0.0
    %3577 = vmatprep.mubr.f32.mxu0 0.0
    %3578 = vmatmul.mubr.f32.gmra.mrb[0].mxu0 %v3511
    %v3579 = vpop.f32.mrb[0].mxu0
    %v3580 = vadd.f32 0.0, %v3579
    %v3581 = vpop.f32.mrb[0].mxu0
    %3582 = vdwg.mxu0
    %3584 = vrot.lane.b32.xlu0 %v3248, 8
    %v3585 = vpop.permute.xlu0 %3584
    %3588 = vrot.lane.b32.xlu0 %v3414, 16
    %v3589 = vpop.permute.xlu0 %3588
    %3592 = vrot.lane.b32.xlu0 %v3580, 24
    %v3593 = vpop.permute.xlu0 %3592
    %v3595 = vsel %vm242, %v3082, %v3585
    %v3596 = vsel %vm916, %v3595, %v3589
    %v3597 = vsel %vm918, %v3596, %v3593
    %v3599 = vsel %vm112, %v2919, 0
    %v3602 = vsel %vm112, %v3597, 0
    %3604 = vmatprep.subr.mxu0 0.0
    %3605 = vmatpush1.msra.mxu0 %v2072
    %3606 = vmatprep.subr.mxu0 0.0
    %3607 = vmatpush1.msra.mxu0 %v2073
    %3608 = vmatprep.subr.mxu0 0.0
    %3609 = vmatpush1.msra.mxu0 %v2074
    %3610 = vmatprep.subr.mxu0 0.0
    %3611 = vmatpush1.msra.mxu0 %v2075
    %3612 = vmatprep.subr.mxu0 0.0
    %3613 = vmatpush1.msra.mxu0 0.0
    %3614 = vmatprep.subr.mxu0 0.0
    %3615 = vmatpush1.msra.mxu0 0.0
    %3616 = vmatprep.subr.mxu0 0.0
    %3617 = vmatpush1.msra.mxu0 0.0
    %3618 = vmatprep.subr.mxu0 0.0
    %3619 = vmatpush1.msra.mxu0 0.0
    %3620 = vmatprep.subr.mxu0 0.0
    %3621 = vmatpush1.msra.mxu0 0.0
    %3622 = vmatprep.subr.mxu0 0.0
    %3623 = vmatpush1.msra.mxu0 0.0
    %3624 = vmatprep.subr.mxu0 0.0
    %3625 = vmatpush1.msra.mxu0 0.0
    %3626 = vmatprep.subr.mxu0 0.0
    %3627 = vmatpush1.msra.mxu0 0.0
    %3628 = vmatprep.subr.mxu0 0.0
    %3629 = vmatpush1.msra.mxu0 0.0
    %3630 = vmatprep.subr.mxu0 0.0
    %3631 = vmatpush1.msra.mxu0 0.0
    %3632 = vmatprep.subr.mxu0 0.0
    %3633 = vmatpush1.msra.mxu0 0.0
    %3634 = vmatprep.subr.mxu0 0.0
    %3635 = vmatpush1.msra.mxu0 0.0
    %3636 = vmatprep.subr.mxu0 0.0
    %3637 = vmatpush1.msra.mxu0 0.0
    %3638 = vmatprep.subr.mxu0 0.0
    %3639 = vmatpush1.msra.mxu0 0.0
    %3640 = vmatprep.subr.mxu0 0.0
    %3641 = vmatpush1.msra.mxu0 0.0
    %3642 = vmatprep.subr.mxu0 0.0
    %3643 = vmatpush1.msra.mxu0 0.0
    %3644 = vmatprep.subr.mxu0 0.0
    %3645 = vmatpush1.msra.mxu0 0.0
    %3646 = vmatprep.subr.mxu0 0.0
    %3647 = vmatpush1.msra.mxu0 0.0
    %3648 = vmatprep.subr.mxu0 0.0
    %3649 = vmatpush1.msra.mxu0 0.0
    %3650 = vmatprep.subr.mxu0 0.0
    %3651 = vmatpush1.msra.mxu0 0.0
    %3652 = vmatprep.subr.mxu0 0.0
    %3653 = vmatpush1.msra.mxu0 0.0
    %3654 = vmatprep.subr.mxu0 0.0
    %3655 = vmatpush1.msra.mxu0 0.0
    %3656 = vmatprep.subr.mxu0 0.0
    %3657 = vmatpush1.msra.mxu0 0.0
    %3658 = vmatprep.subr.mxu0 0.0
    %3659 = vmatpush1.msra.mxu0 0.0
    %3660 = vmatprep.subr.mxu0 0.0
    %3661 = vmatpush1.msra.mxu0 0.0
    %3662 = vmatprep.subr.mxu0 0.0
    %3663 = vmatpush1.msra.mxu0 0.0
    %3664 = vmatprep.subr.mxu0 0.0
    %3665 = vmatpush1.msra.mxu0 0.0
    %3666 = vmatprep.subr.mxu0 0.0
    %3667 = vmatpush1.msra.mxu0 0.0
    %3668 = vmatprep.mubr.f32.mxu0 0.0
    %3669 = vmatmul.mubr.f32.gmra.mrb[0].mxu0 %v3599
    %v3670 = vpop.f32.mrb[0].mxu0
    %v3671 = vadd.f32 0.0, %v3670
    %v3672 = vpop.f32.mrb[0].mxu0
    %3673 = vmatprep.mubr.f32.mxu0 0.0
    %3674 = vmatmul.mubr.f32.gmra.mrb[0].mxu0 %v3602
    %v3675 = vpop.f32.mrb[0].mxu0
    %v3676 = vadd.f32 0.0, %v3675
    %v3677 = vpop.f32.mrb[0].mxu0
    %3678 = vdwg.mxu0
    %v3679 = vadd.f32 %v2066, %v3671
    %v3680 = vadd.f32 %v2067, %v3676
    %v3681 = vadd.f32 %v3679, %v2113
    %v3682 = vadd.f32 %v3680, %v2113
    %v3683 = vsel %vm112, %v3681, 0.0
    %3684 = vadd.xlane.f32.xlu0 %v3683
    %v3685 = vpop.xlane.xlu0 %3684
    %v3686 = vsel %vm112, %v3682, 0.0
    %3687 = vadd.xlane.f32.xlu0 %v3686
    %v3688 = vpop.xlane.xlu0 %3687
    %v3689 = vmul.f32 %v3685, %v119
    %v3690 = vmul.f32 %v3688, %v119
    %v3691 = vsub.f32 %v3681, %v3689
    %v3692 = vsub.f32 %v3682, %v3690
    %v3693 = vmul.f32 %v3691, %v3691
    %v3694 = vmul.f32 %v3692, %v3692
    %v3695 = vsel %vm112, %v3693, 0.0
    %3696 = vadd.xlane.f32.xlu0 %v3695
    %v3697 = vpop.xlane.xlu0 %3696
    %v3698 = vsel %vm112, %v3694, 0.0
    %3699 = vadd.xlane.f32.xlu0 %v3698
    %v3700 = vpop.xlane.xlu0 %3699
    %v3701 = vmul.f32 %v3697, 0.032258064
    %v3702 = vmul.f32 %v3700, 0.032258064
    %v3703 = vrsqrt.pop %v3701
    %v3704 = vmul.f32 %v3701, %v3703
    %vm3705 = vcmp.eq.f32.partialorder %v3701, inf
    %v3706 = vsel %vm3705, %v3701, %v3704
    %vm3707 = vcmp.eq.f32.partialorder %v3701, 0.0
    %v3708 = vand.u32 %v3701, 2147483648
    %v3709 = vsel %vm3707, %v3708, %v3706
    %v3710 = vrsqrt.pop %v3702
    %v3711 = vmul.f32 %v3702, %v3710
    %vm3712 = vcmp.eq.f32.partialorder %v3702, inf
    %v3713 = vsel %vm3712, %v3702, %v3711
    %vm3714 = vcmp.eq.f32.partialorder %v3702, 0.0
    %v3715 = vand.u32 %v3702, 2147483648
    %v3716 = vsel %vm3714, %v3715, %v3713
    %v3717 = vmul.f32 %v2114, %v3691
    %v3718 = vmul.f32 %v2114, %v3692
    %v3719 = vadd.f32 %v3709, 1e-06
    %v3720 = vadd.f32 %v3716, 1e-06
    %v3721 = vrcp.pop %v3719
    %v3722 = vrcp.pop %v3720
    %v3723 = vmul.f32 %v3717, %v3721
    %v3724 = vmul.f32 %v3718, %v3722
    %v3725 = vadd.f32 %v3723, %v2115
    %v3726 = vadd.f32 %v3724, %v2115
    %v3728 = vlaneseq
    %v3729 = vshrl.u32 %v3728, 7
    %v3730 = vsub.s32 0, %v3729
    %v3731 = vrot.slane %v2110, %v3730
    %v3732 = vlaneseq
    %v3733 = vshrl.u32 %v3732, 7
    %v3734 = vsub.s32 1, %v3733
    %v3735 = vrot.slane %v2110, %v3734
    %v3736 = vlaneseq
    %v3737 = vshrl.u32 %v3736, 7
    %v3738 = vsub.s32 2, %v3737
    %v3739 = vrot.slane %v2110, %v3738
    %v3740 = vlaneseq
    %v3741 = vshrl.u32 %v3740, 7
    %v3742 = vsub.s32 3, %v3741
    %v3743 = vrot.slane %v2110, %v3742
    %v3749 = vsel %vm112, %v3725, 0
    %v3752 = vsel %vm112, %v3726, 0
    %3754 = vmatprep.subr.mxu0 %v2077
    %3755 = vmatpush1.msra.mxu0 %v2076
    %3756 = vmatprep.subr.mxu0 %v2081
    %3757 = vmatpush1.msra.mxu0 %v2080
    %3758 = vmatprep.subr.mxu0 %v2085
    %3759 = vmatpush1.msra.mxu0 %v2084
    %3760 = vmatprep.subr.mxu0 %v2089
    %3761 = vmatpush1.msra.mxu0 %v2088
    %3762 = vmatprep.subr.mxu0 0.0
    %3763 = vmatpush1.msra.mxu0 0.0
    %3764 = vmatprep.subr.mxu0 0.0
    %3765 = vmatpush1.msra.mxu0 0.0
    %3766 = vmatprep.subr.mxu0 0.0
    %3767 = vmatpush1.msra.mxu0 0.0
    %3768 = vmatprep.subr.mxu0 0.0
    %3769 = vmatpush1.msra.mxu0 0.0
    %3770 = vmatprep.subr.mxu0 0.0
    %3771 = vmatpush1.msra.mxu0 0.0
    %3772 = vmatprep.subr.mxu0 0.0
    %3773 = vmatpush1.msra.mxu0 0.0
    %3774 = vmatprep.subr.mxu0 0.0
    %3775 = vmatpush1.msra.mxu0 0.0
    %3776 = vmatprep.subr.mxu0 0.0
    %3777 = vmatpush1.msra.mxu0 0.0
    %3778 = vmatprep.subr.mxu0 0.0
    %3779 = vmatpush1.msra.mxu0 0.0
    %3780 = vmatprep.subr.mxu0 0.0
    %3781 = vmatpush1.msra.mxu0 0.0
    %3782 = vmatprep.subr.mxu0 0.0
    %3783 = vmatpush1.msra.mxu0 0.0
    %3784 = vmatprep.subr.mxu0 0.0
    %3785 = vmatpush1.msra.mxu0 0.0
    %3786 = vmatprep.subr.mxu0 0.0
    %3787 = vmatpush1.msra.mxu0 0.0
    %3788 = vmatprep.subr.mxu0 0.0
    %3789 = vmatpush1.msra.mxu0 0.0
    %3790 = vmatprep.subr.mxu0 0.0
    %3791 = vmatpush1.msra.mxu0 0.0
    %3792 = vmatprep.subr.mxu0 0.0
    %3793 = vmatpush1.msra.mxu0 0.0
    %3794 = vmatprep.subr.mxu0 0.0
    %3795 = vmatpush1.msra.mxu0 0.0
    %3796 = vmatprep.subr.mxu0 0.0
    %3797 = vmatpush1.msra.mxu0 0.0
    %3798 = vmatprep.subr.mxu0 0.0
    %3799 = vmatpush1.msra.mxu0 0.0
    %3800 = vmatprep.subr.mxu0 0.0
    %3801 = vmatpush1.msra.mxu0 0.0
    %3802 = vmatprep.subr.mxu0 0.0
    %3803 = vmatpush1.msra.mxu0 0.0
    %3804 = vmatprep.subr.mxu0 0.0
    %3805 = vmatpush1.msra.mxu0 0.0
    %3806 = vmatprep.subr.mxu0 0.0
    %3807 = vmatpush1.msra.mxu0 0.0
    %3808 = vmatprep.subr.mxu0 0.0
    %3809 = vmatpush1.msra.mxu0 0.0
    %3810 = vmatprep.subr.mxu0 0.0
    %3811 = vmatpush1.msra.mxu0 0.0
    %3812 = vmatprep.subr.mxu0 0.0
    %3813 = vmatpush1.msra.mxu0 0.0
    %3814 = vmatprep.subr.mxu0 0.0
    %3815 = vmatpush1.msra.mxu0 0.0
    %3816 = vmatprep.subr.mxu0 0.0
    %3817 = vmatpush1.msra.mxu0 0.0
    %3818 = vmatprep.mubr.f32.mxu0 0.0
    %3819 = vmatmul.mubr.f32.gmra.mrb[0].mxu0 %v3749
    %v3820 = vpop.f32.mrb[0].mxu0
    %v3821 = vadd.f32 %v3731, %v3820
    %v3822 = vpop.f32.mrb[0].mxu0
    %v3823 = vadd.f32 %v3735, %v3822
    %3824 = vmatprep.mubr.f32.mxu0 0.0
    %3825 = vmatmul.mubr.f32.gmra.mrb[0].mxu0 %v3752
    %v3826 = vpop.f32.mrb[0].mxu0
    %v3827 = vadd.f32 %v3731, %v3826
    %v3828 = vpop.f32.mrb[0].mxu0
    %v3829 = vadd.f32 %v3735, %v3828
    %3830 = vdwg.mxu0
    %3831 = vmatprep.subr.mxu0 %v2079
    %3832 = vmatpush1.msra.mxu0 %v2078
    %3833 = vmatprep.subr.mxu0 %v2083
    %3834 = vmatpush1.msra.mxu0 %v2082
    %3835 = vmatprep.subr.mxu0 %v2087
    %3836 = vmatpush1.msra.mxu0 %v2086
    %3837 = vmatprep.subr.mxu0 %v2091
    %3838 = vmatpush1.msra.mxu0 %v2090
    %3839 = vmatprep.subr.mxu0 0.0
    %3840 = vmatpush1.msra.mxu0 0.0
    %3841 = vmatprep.subr.mxu0 0.0
    %3842 = vmatpush1.msra.mxu0 0.0
    %3843 = vmatprep.subr.mxu0 0.0
    %3844 = vmatpush1.msra.mxu0 0.0
    %3845 = vmatprep.subr.mxu0 0.0
    %3846 = vmatpush1.msra.mxu0 0.0
    %3847 = vmatprep.subr.mxu0 0.0
    %3848 = vmatpush1.msra.mxu0 0.0
    %3849 = vmatprep.subr.mxu0 0.0
    %3850 = vmatpush1.msra.mxu0 0.0
    %3851 = vmatprep.subr.mxu0 0.0
    %3852 = vmatpush1.msra.mxu0 0.0
    %3853 = vmatprep.subr.mxu0 0.0
    %3854 = vmatpush1.msra.mxu0 0.0
    %3855 = vmatprep.subr.mxu0 0.0
    %3856 = vmatpush1.msra.mxu0 0.0
    %3857 = vmatprep.subr.mxu0 0.0
    %3858 = vmatpush1.msra.mxu0 0.0
    %3859 = vmatprep.subr.mxu0 0.0
    %3860 = vmatpush1.msra.mxu0 0.0
    %3861 = vmatprep.subr.mxu0 0.0
    %3862 = vmatpush1.msra.mxu0 0.0
    %3863 = vmatprep.subr.mxu0 0.0
    %3864 = vmatpush1.msra.mxu0 0.0
    %3865 = vmatprep.subr.mxu0 0.0
    %3866 = vmatpush1.msra.mxu0 0.0
    %3867 = vmatprep.subr.mxu0 0.0
    %3868 = vmatpush1.msra.mxu0 0.0
    %3869 = vmatprep.subr.mxu0 0.0
    %3870 = vmatpush1.msra.mxu0 0.0
    %3871 = vmatprep.subr.mxu0 0.0
    %3872 = vmatpush1.msra.mxu0 0.0
    %3873 = vmatprep.subr.mxu0 0.0
    %3874 = vmatpush1.msra.mxu0 0.0
    %3875 = vmatprep.subr.mxu0 0.0
    %3876 = vmatpush1.msra.mxu0 0.0
    %3877 = vmatprep.subr.mxu0 0.0
    %3878 = vmatpush1.msra.mxu0 0.0
    %3879 = vmatprep.subr.mxu0 0.0
    %3880 = vmatpush1.msra.mxu0 0.0
    %3881 = vmatprep.subr.mxu0 0.0
    %3882 = vmatpush1.msra.mxu0 0.0
    %3883 = vmatprep.subr.mxu0 0.0
    %3884 = vmatpush1.msra.mxu0 0.0
    %3885 = vmatprep.subr.mxu0 0.0
    %3886 = vmatpush1.msra.mxu0 0.0
    %3887 = vmatprep.subr.mxu0 0.0
    %3888 = vmatpush1.msra.mxu0 0.0
    %3889 = vmatprep.subr.mxu0 0.0
    %3890 = vmatpush1.msra.mxu0 0.0
    %3891 = vmatprep.subr.mxu0 0.0
    %3892 = vmatpush1.msra.mxu0 0.0
    %3893 = vmatprep.subr.mxu0 0.0
    %3894 = vmatpush1.msra.mxu0 0.0
    %3895 = vmatprep.mubr.f32.mxu0 0.0
    %3896 = vmatmul.mubr.f32.gmra.mrb[0].mxu0 %v3749
    %v3897 = vpop.f32.mrb[0].mxu0
    %v3898 = vadd.f32 %v3739, %v3897
    %v3899 = vpop.f32.mrb[0].mxu0
    %v3900 = vadd.f32 %v3743, %v3899
    %3901 = vmatprep.mubr.f32.mxu0 0.0
    %3902 = vmatmul.mubr.f32.gmra.mrb[0].mxu0 %v3752
    %v3903 = vpop.f32.mrb[0].mxu0
    %v3904 = vadd.f32 %v3739, %v3903
    %v3905 = vpop.f32.mrb[0].mxu0
    %v3906 = vadd.f32 %v3743, %v3905
    %3907 = vdwg.mxu0
    %v3908 = vmax.f32 %v3821, 0.0
    %v3909 = vmax.f32 %v3823, 0.0
    %v3910 = vmax.f32 %v3898, 0.0
    %v3911 = vmax.f32 %v3900, 0.0
    %v3912 = vmax.f32 %v3827, 0.0
    %v3913 = vmax.f32 %v3829, 0.0
    %v3914 = vmax.f32 %v3904, 0.0
    %v3915 = vmax.f32 %v3906, 0.0
    %3916 = vmatprep.subr.mxu0 %v2093
    %3917 = vmatpush1.xpose.msra.mxu0 %v2092
    %3918 = vmatprep.subr.mxu0 %v2097
    %3919 = vmatpush1.xpose.msra.mxu0 %v2096
    %3920 = vmatprep.subr.mxu0 %v2101
    %3921 = vmatpush1.xpose.msra.mxu0 %v2100
    %3922 = vmatprep.subr.mxu0 %v2105
    %3923 = vmatpush1.xpose.msra.mxu0 %v2104
    %3924 = vmatprep.subr.mxu0 0.0
    %3925 = vmatpush1.xpose.msra.mxu0 0.0
    %3926 = vmatprep.subr.mxu0 0.0
    %3927 = vmatpush1.xpose.msra.mxu0 0.0
    %3928 = vmatprep.subr.mxu0 0.0
    %3929 = vmatpush1.xpose.msra.mxu0 0.0
    %3930 = vmatprep.subr.mxu0 0.0
    %3931 = vmatpush1.xpose.msra.mxu0 0.0
    %3932 = vmatprep.subr.mxu0 0.0
    %3933 = vmatpush1.xpose.msra.mxu0 0.0
    %3934 = vmatprep.subr.mxu0 0.0
    %3935 = vmatpush1.xpose.msra.mxu0 0.0
    %3936 = vmatprep.subr.mxu0 0.0
    %3937 = vmatpush1.xpose.msra.mxu0 0.0
    %3938 = vmatprep.subr.mxu0 0.0
    %3939 = vmatpush1.xpose.msra.mxu0 0.0
    %3940 = vmatprep.subr.mxu0 0.0
    %3941 = vmatpush1.xpose.msra.mxu0 0.0
    %3942 = vmatprep.subr.mxu0 0.0
    %3943 = vmatpush1.xpose.msra.mxu0 0.0
    %3944 = vmatprep.subr.mxu0 0.0
    %3945 = vmatpush1.xpose.msra.mxu0 0.0
    %3946 = vmatprep.subr.mxu0 0.0
    %3947 = vmatpush1.xpose.msra.mxu0 0.0
    %3948 = vmatprep.subr.mxu0 0.0
    %3949 = vmatpush1.xpose.msra.mxu0 0.0
    %3950 = vmatprep.subr.mxu0 0.0
    %3951 = vmatpush1.xpose.msra.mxu0 0.0
    %3952 = vmatprep.subr.mxu0 0.0
    %3953 = vmatpush1.xpose.msra.mxu0 0.0
    %3954 = vmatprep.subr.mxu0 0.0
    %3955 = vmatpush1.xpose.msra.mxu0 0.0
    %3956 = vmatprep.subr.mxu0 0.0
    %3957 = vmatpush1.xpose.msra.mxu0 0.0
    %3958 = vmatprep.subr.mxu0 0.0
    %3959 = vmatpush1.xpose.msra.mxu0 0.0
    %3960 = vmatprep.subr.mxu0 0.0
    %3961 = vmatpush1.xpose.msra.mxu0 0.0
    %3962 = vmatprep.subr.mxu0 0.0
    %3963 = vmatpush1.xpose.msra.mxu0 0.0
    %3964 = vmatprep.subr.mxu0 0.0
    %3965 = vmatpush1.xpose.msra.mxu0 0.0
    %3966 = vmatprep.subr.mxu0 0.0
    %3967 = vmatpush1.xpose.msra.mxu0 0.0
    %3968 = vmatprep.subr.mxu0 0.0
    %3969 = vmatpush1.xpose.msra.mxu0 0.0
    %3970 = vmatprep.subr.mxu0 0.0
    %3971 = vmatpush1.xpose.msra.mxu0 0.0
    %3972 = vmatprep.subr.mxu0 0.0
    %3973 = vmatpush1.xpose.msra.mxu0 0.0
    %3974 = vmatprep.subr.mxu0 0.0
    %3975 = vmatpush1.xpose.msra.mxu0 0.0
    %3976 = vmatprep.subr.mxu0 0.0
    %3977 = vmatpush1.xpose.msra.mxu0 0.0
    %3978 = vmatprep.subr.mxu0 0.0
    %3979 = vmatpush1.xpose.msra.mxu0 0.0
    %3980 = vmatprep.mubr.f32.mxu0 %v3909
    %3981 = vmatmul.mubr.f32.gmra.mrb[0].mxu0 %v3908
    %v3982 = vpop.f32.mrb[0].mxu0
    %v3983 = vadd.f32 %v2116, %v3982
    %v3984 = vpop.f32.mrb[0].mxu0
    %3985 = vmatprep.mubr.f32.mxu0 %v3913
    %3986 = vmatmul.mubr.f32.gmra.mrb[0].mxu0 %v3912
    %v3987 = vpop.f32.mrb[0].mxu0
    %v3988 = vadd.f32 %v2116, %v3987
    %v3989 = vpop.f32.mrb[0].mxu0
    %3990 = vdwg.mxu0
    %3991 = vmatprep.subr.mxu0 %v2095
    %3992 = vmatpush1.xpose.msra.mxu0 %v2094
    %3993 = vmatprep.subr.mxu0 %v2099
    %3994 = vmatpush1.xpose.msra.mxu0 %v2098
    %3995 = vmatprep.subr.mxu0 %v2103
    %3996 = vmatpush1.xpose.msra.mxu0 %v2102
    %3997 = vmatprep.subr.mxu0 %v2107
    %3998 = vmatpush1.xpose.msra.mxu0 %v2106
    %3999 = vmatprep.subr.mxu0 0.0
    %4000 = vmatpush1.xpose.msra.mxu0 0.0
    %4001 = vmatprep.subr.mxu0 0.0
    %4002 = vmatpush1.xpose.msra.mxu0 0.0
    %4003 = vmatprep.subr.mxu0 0.0
    %4004 = vmatpush1.xpose.msra.mxu0 0.0
    %4005 = vmatprep.subr.mxu0 0.0
    %4006 = vmatpush1.xpose.msra.mxu0 0.0
    %4007 = vmatprep.subr.mxu0 0.0
    %4008 = vmatpush1.xpose.msra.mxu0 0.0
    %4009 = vmatprep.subr.mxu0 0.0
    %4010 = vmatpush1.xpose.msra.mxu0 0.0
    %4011 = vmatprep.subr.mxu0 0.0
    %4012 = vmatpush1.xpose.msra.mxu0 0.0
    %4013 = vmatprep.subr.mxu0 0.0
    %4014 = vmatpush1.xpose.msra.mxu0 0.0
    %4015 = vmatprep.subr.mxu0 0.0
    %4016 = vmatpush1.xpose.msra.mxu0 0.0
    %4017 = vmatprep.subr.mxu0 0.0
    %4018 = vmatpush1.xpose.msra.mxu0 0.0
    %4019 = vmatprep.subr.mxu0 0.0
    %4020 = vmatpush1.xpose.msra.mxu0 0.0
    %4021 = vmatprep.subr.mxu0 0.0
    %4022 = vmatpush1.xpose.msra.mxu0 0.0
    %4023 = vmatprep.subr.mxu0 0.0
    %4024 = vmatpush1.xpose.msra.mxu0 0.0
    %4025 = vmatprep.subr.mxu0 0.0
    %4026 = vmatpush1.xpose.msra.mxu0 0.0
    %4027 = vmatprep.subr.mxu0 0.0
    %4028 = vmatpush1.xpose.msra.mxu0 0.0
    %4029 = vmatprep.subr.mxu0 0.0
    %4030 = vmatpush1.xpose.msra.mxu0 0.0
    %4031 = vmatprep.subr.mxu0 0.0
    %4032 = vmatpush1.xpose.msra.mxu0 0.0
    %4033 = vmatprep.subr.mxu0 0.0
    %4034 = vmatpush1.xpose.msra.mxu0 0.0
    %4035 = vmatprep.subr.mxu0 0.0
    %4036 = vmatpush1.xpose.msra.mxu0 0.0
    %4037 = vmatprep.subr.mxu0 0.0
    %4038 = vmatpush1.xpose.msra.mxu0 0.0
    %4039 = vmatprep.subr.mxu0 0.0
    %4040 = vmatpush1.xpose.msra.mxu0 0.0
    %4041 = vmatprep.subr.mxu0 0.0
    %4042 = vmatpush1.xpose.msra.mxu0 0.0
    %4043 = vmatprep.subr.mxu0 0.0
    %4044 = vmatpush1.xpose.msra.mxu0 0.0
    %4045 = vmatprep.subr.mxu0 0.0
    %4046 = vmatpush1.xpose.msra.mxu0 0.0
    %4047 = vmatprep.subr.mxu0 0.0
    %4048 = vmatpush1.xpose.msra.mxu0 0.0
    %4049 = vmatprep.subr.mxu0 0.0
    %4050 = vmatpush1.xpose.msra.mxu0 0.0
    %4051 = vmatprep.subr.mxu0 0.0
    %4052 = vmatpush1.xpose.msra.mxu0 0.0
    %4053 = vmatprep.subr.mxu0 0.0
    %4054 = vmatpush1.xpose.msra.mxu0 0.0
    %4055 = vmatprep.mubr.f32.mxu0 %v3911
    %4056 = vmatmul.mubr.f32.gmra.mrb[0].mxu0 %v3910
    %v4057 = vpop.f32.mrb[0].mxu0
    %v4058 = vadd.f32 %v3983, %v4057
    %v4059 = vpop.f32.mrb[0].mxu0
    %4060 = vmatprep.mubr.f32.mxu0 %v3915
    %4061 = vmatmul.mubr.f32.gmra.mrb[0].mxu0 %v3914
    %v4062 = vpop.f32.mrb[0].mxu0
    %v4063 = vadd.f32 %v3988, %v4062
    %v4064 = vpop.f32.mrb[0].mxu0
    %4065 = vdwg.mxu0
    %v4066 = vadd.f32 %v3681, %v4058
    %v4067 = vadd.f32 %v3682, %v4063
    %v4068 = vld [vmem:[#allocation7 + $0x60] ss:$0 sm:$0xff]
    %v4069 = vld [vmem:[#allocation7 + $0x61] ss:$0 sm:$0xff]
    %v4070 = vsel %vm112, %v4066, 0.0
    %4071 = vadd.xlane.f32.xlu0 %v4070
    %v4072 = vpop.xlane.xlu0 %4071
    %v4073 = vsel %vm112, %v4067, 0.0
    %4074 = vadd.xlane.f32.xlu0 %v4073
    %v4075 = vpop.xlane.xlu0 %4074
    %v4076 = vmul.f32 %v4072, %v119
    %v4077 = vmul.f32 %v4075, %v119
    %v4078 = vsub.f32 %v4066, %v4076
    %v4079 = vsub.f32 %v4067, %v4077
    %v4080 = vmul.f32 %v4078, %v4078
    %v4081 = vmul.f32 %v4079, %v4079
    %v4082 = vsel %vm112, %v4080, 0.0
    %4083 = vadd.xlane.f32.xlu0 %v4082
    %v4084 = vpop.xlane.xlu0 %4083
    %v4085 = vsel %vm112, %v4081, 0.0
    %4086 = vadd.xlane.f32.xlu0 %v4085
    %v4087 = vpop.xlane.xlu0 %4086
    %v4088 = vmul.f32 %v4084, 0.032258064
    %v4089 = vmul.f32 %v4087, 0.032258064
    %v4090 = vrsqrt.pop %v4088
    %v4091 = vmul.f32 %v4088, %v4090
    %vm4092 = vcmp.eq.f32.partialorder %v4088, inf
    %v4093 = vsel %vm4092, %v4088, %v4091
    %vm4094 = vcmp.eq.f32.partialorder %v4088, 0.0
    %v4095 = vand.u32 %v4088, 2147483648
    %v4096 = vsel %vm4094, %v4095, %v4093
    %v4097 = vrsqrt.pop %v4089
    %v4098 = vmul.f32 %v4089, %v4097
    %vm4099 = vcmp.eq.f32.partialorder %v4089, inf
    %v4100 = vsel %vm4099, %v4089, %v4098
    %vm4101 = vcmp.eq.f32.partialorder %v4089, 0.0
    %v4102 = vand.u32 %v4089, 2147483648
    %v4103 = vsel %vm4101, %v4102, %v4100
    %v4104 = vmul.f32 %v4068, %v4078
    %v4105 = vmul.f32 %v4068, %v4079
    %v4106 = vadd.f32 %v4096, 1e-06
    %v4107 = vadd.f32 %v4103, 1e-06
    %v4108 = vrcp.pop %v4106
    %v4109 = vrcp.pop %v4107
    %v4110 = vmul.f32 %v4104, %v4108
    %v4111 = vmul.f32 %v4105, %v4109
    %v4112 = vadd.f32 %v4110, %v4069
    %v4113 = vadd.f32 %v4111, %v4069
    %4114 = vst.msk [vmem:[#allocation8] sm:$0xff] %vm112, %v4112
    %4115 = vst.msk [vmem:[#allocation8 + $0x8] sm:$0xff] %vm112, %v4113
    // Predicated region
    $region26: #{encoder_forward.1} parent=1 // pred_check
      _
    $region27: #{encoder_forward.1} parent=1 // pred_check_branch
      %4117 = sbr.rel (0) target = $region29
    $region28: #{encoder_forward.1} parent=1 // pred_region
      %s4119 = ssub.s32 256, 256
      %4120 = vsyncadd [#allocation4], %s4119
      %s4121 = sshll.u32 [#allocation8], 4
      %s4122 = int_to_ptr.vmem [resolvable:$true] %s4121
      %4127 = dma.vmem_to_hbm [thread:$0]  %s4122, 256, %s3, [#allocation4], 128, 128, 8
    $region29: #{encoder_forward.1} parent=1 // pred_fallthru
      _
    // Predicated region
    $region30: #{encoder_forward.1} parent=1 // pred_check
      _
    $region31: #{encoder_forward.1} parent=1 // pred_check_branch
      %4129 = sbr.rel (0) target = $region33
    $region32: #{encoder_forward.1} parent=1 // pred_region
      %4130 = dma.done [#allocation4], 256
    $region33: #{encoder_forward.1} parent=1 // pred_fallthru
      _
    %4131 = vsyncpa [#allocation3], 1
    %4132 = vsyncpa [#allocation6], 1
    %4133 = vsyncpa [#allocation4], 1

</llo_original>
